<compile_context>
chip_gen: v7x
topology: tpu7x:2x2x1
jax: 0.10.0
libtpu: 0.0.40
codegen_flags: <defaults>
</compile_context>

<pallas_src>
import jax
import jax.numpy as jnp
from jax.experimental import pallas as pl
from jax.experimental.pallas import tpu as pltpu


# ---------------------------------------------------------------------------
# In-kernel helpers
# ---------------------------------------------------------------------------
def _conv3x3_wide(src, w_ref):
    """3x3 'same' conv over one row strip as a single dy-widened MXU matmul.

    src  : (rows_in, W+2, C) bf16 value; zero columns at 0 and W+1, halo rows
           already zeroed where they fall outside the image.
    w_ref: (3*C, 3*G) bf16 ref packed as [dx*C + ci, dy*G + co].
    Returns (rows_out*W, G) f32 with rows_out = rows_in - 2 (no bias / act).
    """
    rows_in, wp, c = src.shape
    w_out = wp - 2
    g = w_ref.shape[-1] // 3
    rows_out = rows_in - 2
    # dx im2col on the lane axis -> K = 3*C, one clean matmul per layer.
    x3 = jnp.concatenate([src[:, dx:dx + w_out, :] for dx in range(3)], axis=-1)
    lhs = x3.reshape(rows_in * w_out, 3 * c)
    r = jnp.dot(lhs, w_ref[...], preferred_element_type=jnp.float32)
    # dy combination: free row-shifted adds + lane-group extracts.
    m = rows_out * w_out
    return (r[0:m, 0:g]
            + r[w_out:w_out + m, g:2 * g]
            + r[2 * w_out:2 * w_out + m, 2 * g:3 * g])


def _relu_store_hidden(buf_ref, h2d, b_ref, n_halo):
    """bias + ReLU, store bf16 into (rows, W+2, C) scratch with zero side
    columns; zero out-of-image halo rows only on the first/last strip."""
    rows_out, wp, c = buf_ref.shape
    w_out = wp - 2
    h = jnp.maximum(h2d + b_ref[...], 0.0)
    buf_ref[:, 1:w_out + 1, :] = h.reshape(rows_out, w_out, c).astype(buf_ref.dtype)
    zcol = jnp.zeros((rows_out, 1, c), buf_ref.dtype)
    buf_ref[:, 0:1, :] = zcol
    buf_ref[:, w_out + 1:w_out + 2, :] = zcol

    zrows = jnp.zeros((n_halo, wp, c), buf_ref.dtype)
    t = pl.program_id(1)

    @pl.when(t == 0)
    def _():
        buf_ref[0:n_halo, :, :] = zrows

    @pl.when(t == pl.num_programs(1) - 1)
    def _():
        buf_ref[rows_out - n_halo:rows_out, :, :] = zrows


def _estmask_fused_kernel(x_ref, w1_ref, b1_ref, w2_ref, b2_ref, w3_ref,
                          b3_ref, w4_ref, b4_ref, o_ref,
                          h1_ref, h2_ref, h3_ref):
    """One grid step = one batch element x one output row strip, all 4 layers.

    x_ref : (1, tile_h+8, W+2, Cin) bf16  zero-padded input strip
    w*_ref: packed dy-widened weights (bf16), b*_ref biases (f32)
    o_ref : (1, Cout, tile_h*W) f32       lane-dense output slab
    h*_ref: VMEM scratch (rows_l, W+2, 64) bf16 fused intermediates
    """
    cout = o_ref.shape[1]

    # layer 1 (Cin -> 64) + ReLU
    _relu_store_hidden(h1_ref, _conv3x3_wide(x_ref[0], w1_ref), b1_ref, 3)
    # layer 2 (64 -> 64) + ReLU
    _relu_store_hidden(h2_ref, _conv3x3_wide(h1_ref[...], w2_ref), b2_ref, 2)
    # layer 3 (64 -> 64) + ReLU
    _relu_store_hidden(h3_ref, _conv3x3_wide(h2_ref[...], w3_ref), b3_ref, 1)
    # layer 4 (64 -> Cout), no activation. dy groups are padded to 128 lanes so
    # every slice is lane-aligned; one aligned 2-D transpose then yields the
    # lane-dense (Cout, tile_h*W) output slab.
    r = _conv3x3_wide(h3_ref[...], w4_ref)              # (tile_h*W, 128) f32
    out_t = jnp.transpose(r)                            # (128, tile_h*W)
    o_ref[...] = (out_t[0:cout, :] + b4_ref[...])[None].astype(o_ref.dtype)


# ---------------------------------------------------------------------------
# Wrapper
# ---------------------------------------------------------------------------
def _pack_hidden_weight(w):
    """HWIO (3,3,Ci,Co) -> (3*Ci, 3*Co), index [dx*Ci+ci, dy*Co+co]."""
    _, _, ci, co = w.shape
    return w.transpose(1, 2, 0, 3).reshape(3 * ci, 3 * co)


def _pack_last_weight(w):
    """HWIO (3,3,Ci,Cout) -> (3*Ci, 3*128); each dy group zero-padded to a full
    128-lane tile so the in-kernel combine/transpose stays lane-aligned."""
    _, _, ci, co = w.shape
    base = w.transpose(1, 2, 0, 3).reshape(3 * ci, 3, co)
    pad = jnp.zeros((3 * ci, 3, 128), w.dtype)
    pad = pad.at[:, :, :co].set(base)
    return pad.reshape(3 * ci, 3 * 128)


def _pick_tile_h(H, W, budget_bytes=28 * 1024 * 1024):
    """Largest multiple-of-8 divisor of H whose estimated VMEM fits the budget."""
    def est(th):
        wp = ((W + 2 + 15) // 16) * 16
        r1, r2, r3, r4 = th + 8, th + 6, th + 4, th + 2
        b = 2 * r1 * wp * 128 * 2                     # input strip (double buffered)
        b += (r2 + r3 + r4) * wp * 128 * 2            # hidden bf16 scratch (64->128 lanes)
        b += r1 * W * 256 * 2 + r1 * W * 256 * 4      # widened im2col + f32 result
        b += r4 * W * 384 * 4 + 2 * th * W * 128 * 4  # layer-4 result + transpose
        b += 2 * 8 * th * W * 4                       # output block
        b += 1 << 20                                  # weights / biases / slack
        return b

    cands = [d for d in range(8, min(H, 256) + 1, 8) if H % d == 0]
    ok = [d for d in cands if est(d) <= budget_bytes]
    return max(ok) if ok else min(cands)


def estmask_forward(input1_nchw, input2_nchw, params, *, tile_h=None,
                    vmem_limit_bytes=48 * 1024 * 1024):
    """EstMask.forward: channel concat, then 4x (conv3x3 [+ReLU]) fused."""
    x = jnp.concatenate([input1_nchw, input2_nchw], axis=1)     # (N, Cin, H, W)
    N, Cin, H, W = x.shape
    x = jnp.transpose(x, (0, 2, 3, 1))                          # (N, H, W, Cin), tiny

    hid = params[0][0].shape[-1]
    Cout = params[-1][0].shape[-1]
    assert W % 16 == 0, "W must be a multiple of 16 (bf16 sublane tile)"
    assert H % 8 == 0, "H must be a multiple of 8"
    assert Cout <= 128, "Cout > 128 not supported (see TODO)"

    if tile_h is None:
        tile_h = _pick_tile_h(H, W)
    assert H % tile_h == 0 and tile_h % 8 == 0, "tile_h must be mult of 8 and divide H"
    T = H // tile_h

    # Single spatial pad (4 halo rows + 1 zero column per side), cast once to
    # bf16, then cut into per-strip inputs so input VMEM stays O(tile_h * W).
    xp = jnp.pad(x, ((0, 0), (4, 4), (1, 1), (0, 0))).astype(jnp.bfloat16)
    strips = jnp.stack(
        [xp[:, t * tile_h:t * tile_h + tile_h + 8] for t in range(T)], axis=1)
    strips = strips.reshape(N * T, tile_h + 8, W + 2, Cin)

    # dy-widened weight packing (bf16) and biases (f32).
    w1 = _pack_hidden_weight(params[0][0]).astype(jnp.bfloat16)   # (3*Cin, 192)
    w2 = _pack_hidden_weight(params[1][0]).astype(jnp.bfloat16)   # (192, 192)
    w3 = _pack_hidden_weight(params[2][0]).astype(jnp.bfloat16)   # (192, 192)
    w4 = _pack_last_weight(params[3][0]).astype(jnp.bfloat16)     # (192, 384)
    b1 = params[0][1].reshape(1, hid).astype(jnp.float32)
    b2 = params[1][1].reshape(1, hid).astype(jnp.float32)
    b3 = params[2][1].reshape(1, hid).astype(jnp.float32)
    b4 = params[3][1].reshape(Cout, 1).astype(jnp.float32)

    def const_spec(arr):
        nd = arr.ndim
        return pl.BlockSpec(arr.shape, lambda n, t, _nd=nd: (0,) * _nd,
                            pipeline_mode=pl.Buffered(1))

    grid = (N, T)
    in_specs = [
        pl.BlockSpec((1, tile_h + 8, W + 2, Cin),
                     lambda n, t, _T=T: (n * _T + t, 0, 0, 0)),
        const_spec(w1), const_spec(b1),
        const_spec(w2), const_spec(b2),
        const_spec(w3), const_spec(b3),
        const_spec(w4), const_spec(b4),
    ]
    out_specs = pl.BlockSpec((1, Cout, tile_h * W), lambda n, t: (n, 0, t))
    scratch_shapes = [
        pltpu.VMEM((tile_h + 6, W + 2, hid), jnp.bfloat16),
        pltpu.VMEM((tile_h + 4, W + 2, hid), jnp.bfloat16),
        pltpu.VMEM((tile_h + 2, W + 2, hid), jnp.bfloat16),
    ]

    flops = 2 * N * H * W * 9 * (Cin * hid + 2 * hid * hid + hid * Cout)
    bytes_accessed = (strips.size * 2 + N * Cout * H * W * 4
                      + (w1.size + w2.size + w3.size + w4.size) * 2
                      + (b1.size + b2.size + b3.size + b4.size) * 4)
    cost = pl.CostEstimate(flops=int(flops), transcendentals=0,
                           bytes_accessed=int(bytes_accessed))

    out_flat = pl.pallas_call(
        _estmask_fused_kernel,
        out_shape=jax.ShapeDtypeStruct((N, Cout, H * W), jnp.float32),
        grid=grid,
        in_specs=in_specs,
        out_specs=out_specs,
        scratch_shapes=scratch_shapes,
        compiler_params=pltpu.CompilerParams(
            dimension_semantics=("parallel", "parallel"),
            vmem_limit_bytes=int(vmem_limit_bytes)),
        cost_estimate=cost,
    )(strips, w1, b1, w2, b2, w3, b3, w4, b4)

    # Lane-dense kernel output is already channel-major: free reshape to NCHW.
    return out_flat.reshape(N, Cout, H, W)


# ---------------------------------------------------------------------------
# Synthetic params + pure-JAX reference
# ---------------------------------------------------------------------------
def init_estmask_params(key, input_channel, output_channel):
    """Deterministic synthetic init matching the module's shapes (HWIO)."""
    dims = [(input_channel, 64), (64, 64), (64, 64), (64, output_channel)]
    params = []
    for i, (cin, cout) in enumerate(dims):
        kw, kb = jax.random.split(jax.random.fold_in(key, i))
        scale = 1.0 / jnp.sqrt(float(cin * 9))
        w = jax.random.uniform(kw, (3, 3, cin, cout), jnp.float32, -scale, scale)
        b = jax.random.uniform(kb, (cout,), jnp.float32, -scale, scale)
        params.append((w, b))
    return params


def _reference_forward(input1_nchw, input2_nchw, params):
    """Pure-JAX reference with the same precision policy (bf16 MXU, f32 acc)."""
    x1 = jnp.transpose(input1_nchw, (0, 2, 3, 1))
    x2 = jnp.transpose(input2_nchw, (0, 2, 3, 1))
    x = jnp.concatenate([x1, x2], axis=-1)
    relu_flags = [True, True, True, False]
    for (w, b), relu in zip(params, relu_flags):
        x = jax.lax.conv_general_dilated(
            x.astype(jnp.bfloat16), w.astype(jnp.bfloat16),
            window_strides=(1, 1), padding="SAME",
            dimension_numbers=("NHWC", "HWIO", "NHWC"),
            preferred_element_type=jnp.float32) + b
        if relu:
            x = jnp.maximum(x, 0.0)
    return jnp.transpose(x, (0, 3, 1, 2))


if __name__ == "__main__":
    key = jax.random.PRNGKey(0)
    k1, k2, kp = jax.random.split(key, 3)

    # Two NCHW inputs of 2 channels each -> input_channel = 4, output_channel = 1.
    B, C_each, Hs, Ws = 2, 2, 16, 16
    input_channel, output_channel = 2 * C_each, 1

    input1 = jax.random.normal(k1, (B, C_each, Hs, Ws), jnp.float32)
    input2 = jax.random.normal(k2, (B, C_each, Hs, Ws), jnp.float32)
    params = init_estmask_params(kp, input_channel, output_channel)

    fwd = jax.jit(lambda a, b, p: estmask_forward(a, b, p, tile_h=8))
    out = jax.block_until_ready(fwd(input1, input2, params))
    ref = jax.block_until_ready(_reference_forward(input1, input2, params))

    assert out.shape == (B, output_channel, Hs, Ws), out.shape
    max_err = float(jnp.max(jnp.abs(out - ref)))
    assert jnp.allclose(out, ref, atol=1e-2, rtol=1e-2), max_err

    print("KERNEL_OK")
</pallas_src>

<mosaic_0001>
module attributes {stable_mosaic.version = 11 : i64} {
  func.func @_estmask_fused_kernel(%arg0: i32, %arg1: i32, %arg2: memref<1x16x18x4xbf16, #tpu.memory_space<vmem>>, %arg3: memref<12x192xbf16, #tpu.memory_space<vmem>>, %arg4: memref<1x64xf32, #tpu.memory_space<vmem>>, %arg5: memref<192x192xbf16, #tpu.memory_space<vmem>>, %arg6: memref<1x64xf32, #tpu.memory_space<vmem>>, %arg7: memref<192x192xbf16, #tpu.memory_space<vmem>>, %arg8: memref<1x64xf32, #tpu.memory_space<vmem>>, %arg9: memref<192x384xbf16, #tpu.memory_space<vmem>>, %arg10: memref<1x1xf32, #tpu.memory_space<vmem>>, %arg11: memref<1x1x128xf32, #tpu.memory_space<vmem>>, %arg12: memref<14x18x64xbf16, #tpu.memory_space<vmem>>, %arg13: memref<12x18x64xbf16, #tpu.memory_space<vmem>>, %arg14: memref<10x18x64xbf16, #tpu.memory_space<vmem>>) attributes {dimension_semantics = [#tpu.dimension_semantics<parallel>, #tpu.dimension_semantics<parallel>], iteration_bounds = array<i64: 2, 2>, scalar_prefetch = 0 : i64, scratch_operands = 3 : i64, tpu.core_type = #tpu.core_type<tc>, window_params = [{transform_indices = @transform_0, window_bounds = array<i64: 1, 16, 18, 4>}, {pipeline_mode = #tpu.pipeline_mode<synchronous>, transform_indices = @transform_1, window_bounds = array<i64: 12, 192>}, {pipeline_mode = #tpu.pipeline_mode<synchronous>, transform_indices = @transform_2, window_bounds = array<i64: 1, 64>}, {pipeline_mode = #tpu.pipeline_mode<synchronous>, transform_indices = @transform_3, window_bounds = array<i64: 192, 192>}, {pipeline_mode = #tpu.pipeline_mode<synchronous>, transform_indices = @transform_4, window_bounds = array<i64: 1, 64>}, {pipeline_mode = #tpu.pipeline_mode<synchronous>, transform_indices = @transform_5, window_bounds = array<i64: 192, 192>}, {pipeline_mode = #tpu.pipeline_mode<synchronous>, transform_indices = @transform_6, window_bounds = array<i64: 1, 64>}, {pipeline_mode = #tpu.pipeline_mode<synchronous>, transform_indices = @transform_7, window_bounds = array<i64: 192, 384>}, {pipeline_mode = #tpu.pipeline_mode<synchronous>, transform_indices = @transform_8, window_bounds = array<i64: 1, 1>}, {transform_indices = @transform_9, window_bounds = array<i64: 1, 1, 128>}]} {
    %c0 = arith.constant 0 : index
    %c0_0 = arith.constant 0 : index
    %c0_1 = arith.constant 0 : index
    %c0_2 = arith.constant 0 : index
    %0 = vector.load %arg2[%c0, %c0_0, %c0_1, %c0_2] : memref<1x16x18x4xbf16, #tpu.memory_space<vmem>>, vector<1x16x18x4xbf16>
    %1 = vector.shape_cast %0 : vector<1x16x18x4xbf16> to vector<16x18x4xbf16>
    %2 = vector.extract_strided_slice %1 {offsets = [0, 0, 0], sizes = [16, 16, 4], strides = [1, 1, 1]} : vector<16x18x4xbf16> to vector<16x16x4xbf16>
    %3 = vector.extract_strided_slice %1 {offsets = [0, 1, 0], sizes = [16, 16, 4], strides = [1, 1, 1]} : vector<16x18x4xbf16> to vector<16x16x4xbf16>
    %4 = vector.extract_strided_slice %1 {offsets = [0, 2, 0], sizes = [16, 16, 4], strides = [1, 1, 1]} : vector<16x18x4xbf16> to vector<16x16x4xbf16>
    %5 = tpu.concatenate %2, %3, %4 in 2 : vector<16x16x4xbf16>, vector<16x16x4xbf16>, vector<16x16x4xbf16> -> vector<16x16x12xbf16>
    %6 = vector.shape_cast %5 : vector<16x16x12xbf16> to vector<256x12xbf16>
    %c0_3 = arith.constant 0 : index
    %c0_4 = arith.constant 0 : index
    %7 = vector.load %arg3[%c0_3, %c0_4] : memref<12x192xbf16, #tpu.memory_space<vmem>>, vector<12x192xbf16>
    %cst = arith.constant dense<0.000000e+00> : vector<256x192xf32>
    %8 = tpu.matmul %6, %7, %cst {dimension_numbers = #tpu.dot_dimension_numbers<[1], [0], [0], [1], [0, 0, 1, 1], [], []>} : vector<256x12xbf16>, vector<12x192xbf16>, vector<256x192xf32> -> vector<256x192xf32>
    %9 = vector.extract_strided_slice %8 {offsets = [0, 0], sizes = [224, 64], strides = [1, 1]} : vector<256x192xf32> to vector<224x64xf32>
    %10 = vector.extract_strided_slice %8 {offsets = [16, 64], sizes = [224, 64], strides = [1, 1]} : vector<256x192xf32> to vector<224x64xf32>
    %11 = arith.addf %9, %10 : vector<224x64xf32>
    %12 = vector.extract_strided_slice %8 {offsets = [32, 128], sizes = [224, 64], strides = [1, 1]} : vector<256x192xf32> to vector<224x64xf32>
    %13 = arith.addf %11, %12 : vector<224x64xf32>
    %c0_5 = arith.constant 0 : index
    %c0_6 = arith.constant 0 : index
    %14 = vector.load %arg4[%c0_5, %c0_6] : memref<1x64xf32, #tpu.memory_space<vmem>>, vector<1x64xf32>
    %15 = vector.broadcast %14 : vector<1x64xf32> to vector<224x64xf32>
    %16 = arith.addf %13, %15 : vector<224x64xf32>
    %cst_7 = arith.constant 0.000000e+00 : f32
    %17 = vector.broadcast %cst_7 : f32 to vector<224x64xf32>
    %18 = arith.maximumf %16, %17 : vector<224x64xf32>
    %19 = vector.shape_cast %18 : vector<224x64xf32> to vector<14x16x64xf32>
    %20 = arith.truncf %19 : vector<14x16x64xf32> to vector<14x16x64xbf16>
    %c0_8 = arith.constant 0 : index
    %c1 = arith.constant 1 : index
    %c0_9 = arith.constant 0 : index
    %21 = vector.load %arg12[%c0_8, %c1, %c0_9] : memref<14x18x64xbf16, #tpu.memory_space<vmem>>, vector<14x16x64xbf16>
    tpu.vector_store %arg12[%c0_8, %c1, %c0_9], %20 {strides = array<i32>} : memref<14x18x64xbf16, #tpu.memory_space<vmem>>, vector<14x16x64xbf16>,
    %cst_10 = arith.constant 0.000000e+00 : bf16
    %22 = vector.broadcast %cst_10 : bf16 to vector<14x1x64xbf16>
    %c0_11 = arith.constant 0 : index
    %c0_12 = arith.constant 0 : index
    %c0_13 = arith.constant 0 : index
    %23 = vector.load %arg12[%c0_11, %c0_12, %c0_13] : memref<14x18x64xbf16, #tpu.memory_space<vmem>>, vector<14x1x64xbf16>
    tpu.vector_store %arg12[%c0_11, %c0_12, %c0_13], %22 {strides = array<i32>} : memref<14x18x64xbf16, #tpu.memory_space<vmem>>, vector<14x1x64xbf16>,
    %c0_14 = arith.constant 0 : index
    %c17 = arith.constant 17 : index
    %c0_15 = arith.constant 0 : index
    %24 = vector.load %arg12[%c0_14, %c17, %c0_15] : memref<14x18x64xbf16, #tpu.memory_space<vmem>>, vector<14x1x64xbf16>
    tpu.vector_store %arg12[%c0_14, %c17, %c0_15], %22 {strides = array<i32>} : memref<14x18x64xbf16, #tpu.memory_space<vmem>>, vector<14x1x64xbf16>,
    %cst_16 = arith.constant 0.000000e+00 : bf16
    %25 = vector.broadcast %cst_16 : bf16 to vector<3x18x64xbf16>
    %c0_i32 = arith.constant 0 : i32
    %26 = arith.cmpi eq, %arg1, %c0_i32 : i32
    %27 = arith.extui %26 : i1 to i32
    %c0_i32_17 = arith.constant 0 : i32
    %28 = arith.cmpi ne, %27, %c0_i32_17 : i32
    scf.if %28 {
      %c0_78 = arith.constant 0 : index
      %c0_79 = arith.constant 0 : index
      %c0_80 = arith.constant 0 : index
      %114 = vector.load %arg12[%c0_78, %c0_79, %c0_80] : memref<14x18x64xbf16, #tpu.memory_space<vmem>>, vector<3x18x64xbf16>
      tpu.vector_store %arg12[%c0_78, %c0_79, %c0_80], %25 {strides = array<i32>} : memref<14x18x64xbf16, #tpu.memory_space<vmem>>, vector<3x18x64xbf16>,
    } else {
    }
    %c1_i32 = arith.constant 1 : i32
    %29 = arith.cmpi eq, %arg1, %c1_i32 : i32
    %30 = arith.extui %29 : i1 to i32
    %c0_i32_18 = arith.constant 0 : i32
    %31 = arith.cmpi ne, %30, %c0_i32_18 : i32
    scf.if %31 {
      %c11 = arith.constant 11 : index
      %c0_78 = arith.constant 0 : index
      %c0_79 = arith.constant 0 : index
      %114 = vector.load %arg12[%c11, %c0_78, %c0_79] : memref<14x18x64xbf16, #tpu.memory_space<vmem>>, vector<3x18x64xbf16>
      tpu.vector_store %arg12[%c11, %c0_78, %c0_79], %25 {strides = array<i32>} : memref<14x18x64xbf16, #tpu.memory_space<vmem>>, vector<3x18x64xbf16>,
    } else {
    }
    %c0_19 = arith.constant 0 : index
    %c0_20 = arith.constant 0 : index
    %c0_21 = arith.constant 0 : index
    %32 = vector.load %arg12[%c0_19, %c0_20, %c0_21] : memref<14x18x64xbf16, #tpu.memory_space<vmem>>, vector<14x18x64xbf16>
    %33 = vector.extract_strided_slice %32 {offsets = [0, 0, 0], sizes = [14, 16, 64], strides = [1, 1, 1]} : vector<14x18x64xbf16> to vector<14x16x64xbf16>
    %34 = vector.extract_strided_slice %32 {offsets = [0, 1, 0], sizes = [14, 16, 64], strides = [1, 1, 1]} : vector<14x18x64xbf16> to vector<14x16x64xbf16>
    %35 = vector.extract_strided_slice %32 {offsets = [0, 2, 0], sizes = [14, 16, 64], strides = [1, 1, 1]} : vector<14x18x64xbf16> to vector<14x16x64xbf16>
    %36 = tpu.concatenate %33, %34, %35 in 2 : vector<14x16x64xbf16>, vector<14x16x64xbf16>, vector<14x16x64xbf16> -> vector<14x16x192xbf16>
    %37 = vector.shape_cast %36 : vector<14x16x192xbf16> to vector<224x192xbf16>
    %c0_22 = arith.constant 0 : index
    %c0_23 = arith.constant 0 : index
    %38 = vector.load %arg5[%c0_22, %c0_23] : memref<192x192xbf16, #tpu.memory_space<vmem>>, vector<192x192xbf16>
    %cst_24 = arith.constant dense<0.000000e+00> : vector<224x192xf32>
    %39 = tpu.matmul %37, %38, %cst_24 {dimension_numbers = #tpu.dot_dimension_numbers<[1], [0], [0], [1], [0, 0, 1, 1], [], []>} : vector<224x192xbf16>, vector<192x192xbf16>, vector<224x192xf32> -> vector<224x192xf32>
    %40 = vector.extract_strided_slice %39 {offsets = [0, 0], sizes = [192, 64], strides = [1, 1]} : vector<224x192xf32> to vector<192x64xf32>
    %41 = vector.extract_strided_slice %39 {offsets = [16, 64], sizes = [192, 64], strides = [1, 1]} : vector<224x192xf32> to vector<192x64xf32>
    %42 = arith.addf %40, %41 : vector<192x64xf32>
    %43 = vector.extract_strided_slice %39 {offsets = [32, 128], sizes = [192, 64], strides = [1, 1]} : vector<224x192xf32> to vector<192x64xf32>
    %44 = arith.addf %42, %43 : vector<192x64xf32>
    %c0_25 = arith.constant 0 : index
    %c0_26 = arith.constant 0 : index
    %45 = vector.load %arg6[%c0_25, %c0_26] : memref<1x64xf32, #tpu.memory_space<vmem>>, vector<1x64xf32>
    %46 = vector.broadcast %45 : vector<1x64xf32> to vector<192x64xf32>
    %47 = arith.addf %44, %46 : vector<192x64xf32>
    %cst_27 = arith.constant 0.000000e+00 : f32
    %48 = vector.broadcast %cst_27 : f32 to vector<192x64xf32>
    %49 = arith.maximumf %47, %48 : vector<192x64xf32>
    %50 = vector.shape_cast %49 : vector<192x64xf32> to vector<12x16x64xf32>
    %51 = arith.truncf %50 : vector<12x16x64xf32> to vector<12x16x64xbf16>
    %c0_28 = arith.constant 0 : index
    %c1_29 = arith.constant 1 : index
    %c0_30 = arith.constant 0 : index
    %52 = vector.load %arg13[%c0_28, %c1_29, %c0_30] : memref<12x18x64xbf16, #tpu.memory_space<vmem>>, vector<12x16x64xbf16>
    tpu.vector_store %arg13[%c0_28, %c1_29, %c0_30], %51 {strides = array<i32>} : memref<12x18x64xbf16, #tpu.memory_space<vmem>>, vector<12x16x64xbf16>,
    %cst_31 = arith.constant 0.000000e+00 : bf16
    %53 = vector.broadcast %cst_31 : bf16 to vector<12x1x64xbf16>
    %c0_32 = arith.constant 0 : index
    %c0_33 = arith.constant 0 : index
    %c0_34 = arith.constant 0 : index
    %54 = vector.load %arg13[%c0_32, %c0_33, %c0_34] : memref<12x18x64xbf16, #tpu.memory_space<vmem>>, vector<12x1x64xbf16>
    tpu.vector_store %arg13[%c0_32, %c0_33, %c0_34], %53 {strides = array<i32>} : memref<12x18x64xbf16, #tpu.memory_space<vmem>>, vector<12x1x64xbf16>,
    %c0_35 = arith.constant 0 : index
    %c17_36 = arith.constant 17 : index
    %c0_37 = arith.constant 0 : index
    %55 = vector.load %arg13[%c0_35, %c17_36, %c0_37] : memref<12x18x64xbf16, #tpu.memory_space<vmem>>, vector<12x1x64xbf16>
    tpu.vector_store %arg13[%c0_35, %c17_36, %c0_37], %53 {strides = array<i32>} : memref<12x18x64xbf16, #tpu.memory_space<vmem>>, vector<12x1x64xbf16>,
    %cst_38 = arith.constant 0.000000e+00 : bf16
    %56 = vector.broadcast %cst_38 : bf16 to vector<2x18x64xbf16>
    %c0_i32_39 = arith.constant 0 : i32
    %57 = arith.cmpi eq, %arg1, %c0_i32_39 : i32
    %58 = arith.extui %57 : i1 to i32
    %c0_i32_40 = arith.constant 0 : i32
    %59 = arith.cmpi ne, %58, %c0_i32_40 : i32
    scf.if %59 {
      %c0_78 = arith.constant 0 : index
      %c0_79 = arith.constant 0 : index
      %c0_80 = arith.constant 0 : index
      %114 = vector.load %arg13[%c0_78, %c0_79, %c0_80] : memref<12x18x64xbf16, #tpu.memory_space<vmem>>, vector<2x18x64xbf16>
      tpu.vector_store %arg13[%c0_78, %c0_79, %c0_80], %56 {strides = array<i32>} : memref<12x18x64xbf16, #tpu.memory_space<vmem>>, vector<2x18x64xbf16>,
    } else {
    }
    %c1_i32_41 = arith.constant 1 : i32
    %60 = arith.cmpi eq, %arg1, %c1_i32_41 : i32
    %61 = arith.extui %60 : i1 to i32
    %c0_i32_42 = arith.constant 0 : i32
    %62 = arith.cmpi ne, %61, %c0_i32_42 : i32
    scf.if %62 {
      %c10 = arith.constant 10 : index
      %c0_78 = arith.constant 0 : index
      %c0_79 = arith.constant 0 : index
      %114 = vector.load %arg13[%c10, %c0_78, %c0_79] : memref<12x18x64xbf16, #tpu.memory_space<vmem>>, vector<2x18x64xbf16>
      tpu.vector_store %arg13[%c10, %c0_78, %c0_79], %56 {strides = array<i32>} : memref<12x18x64xbf16, #tpu.memory_space<vmem>>, vector<2x18x64xbf16>,
    } else {
    }
    %c0_43 = arith.constant 0 : index
    %c0_44 = arith.constant 0 : index
    %c0_45 = arith.constant 0 : index
    %63 = vector.load %arg13[%c0_43, %c0_44, %c0_45] : memref<12x18x64xbf16, #tpu.memory_space<vmem>>, vector<12x18x64xbf16>
    %64 = vector.extract_strided_slice %63 {offsets = [0, 0, 0], sizes = [12, 16, 64], strides = [1, 1, 1]} : vector<12x18x64xbf16> to vector<12x16x64xbf16>
    %65 = vector.extract_strided_slice %63 {offsets = [0, 1, 0], sizes = [12, 16, 64], strides = [1, 1, 1]} : vector<12x18x64xbf16> to vector<12x16x64xbf16>
    %66 = vector.extract_strided_slice %63 {offsets = [0, 2, 0], sizes = [12, 16, 64], strides = [1, 1, 1]} : vector<12x18x64xbf16> to vector<12x16x64xbf16>
    %67 = tpu.concatenate %64, %65, %66 in 2 : vector<12x16x64xbf16>, vector<12x16x64xbf16>, vector<12x16x64xbf16> -> vector<12x16x192xbf16>
    %68 = vector.shape_cast %67 : vector<12x16x192xbf16> to vector<192x192xbf16>
    %c0_46 = arith.constant 0 : index
    %c0_47 = arith.constant 0 : index
    %69 = vector.load %arg7[%c0_46, %c0_47] : memref<192x192xbf16, #tpu.memory_space<vmem>>, vector<192x192xbf16>
    %cst_48 = arith.constant dense<0.000000e+00> : vector<192x192xf32>
    %70 = tpu.matmul %68, %69, %cst_48 {dimension_numbers = #tpu.dot_dimension_numbers<[1], [0], [0], [1], [0, 0, 1, 1], [], []>} : vector<192x192xbf16>, vector<192x192xbf16>, vector<192x192xf32> -> vector<192x192xf32>
    %71 = vector.extract_strided_slice %70 {offsets = [0, 0], sizes = [160, 64], strides = [1, 1]} : vector<192x192xf32> to vector<160x64xf32>
    %72 = vector.extract_strided_slice %70 {offsets = [16, 64], sizes = [160, 64], strides = [1, 1]} : vector<192x192xf32> to vector<160x64xf32>
    %73 = arith.addf %71, %72 : vector<160x64xf32>
    %74 = vector.extract_strided_slice %70 {offsets = [32, 128], sizes = [160, 64], strides = [1, 1]} : vector<192x192xf32> to vector<160x64xf32>
    %75 = arith.addf %73, %74 : vector<160x64xf32>
    %c0_49 = arith.constant 0 : index
    %c0_50 = arith.constant 0 : index
    %76 = vector.load %arg8[%c0_49, %c0_50] : memref<1x64xf32, #tpu.memory_space<vmem>>, vector<1x64xf32>
    %77 = vector.broadcast %76 : vector<1x64xf32> to vector<160x64xf32>
    %78 = arith.addf %75, %77 : vector<160x64xf32>
    %cst_51 = arith.constant 0.000000e+00 : f32
    %79 = vector.broadcast %cst_51 : f32 to vector<160x64xf32>
    %80 = arith.maximumf %78, %79 : vector<160x64xf32>
    %81 = vector.shape_cast %80 : vector<160x64xf32> to vector<10x16x64xf32>
    %82 = arith.truncf %81 : vector<10x16x64xf32> to vector<10x16x64xbf16>
    %c0_52 = arith.constant 0 : index
    %c1_53 = arith.constant 1 : index
    %c0_54 = arith.constant 0 : index
    %83 = vector.load %arg14[%c0_52, %c1_53, %c0_54] : memref<10x18x64xbf16, #tpu.memory_space<vmem>>, vector<10x16x64xbf16>
    tpu.vector_store %arg14[%c0_52, %c1_53, %c0_54], %82 {strides = array<i32>} : memref<10x18x64xbf16, #tpu.memory_space<vmem>>, vector<10x16x64xbf16>,
    %cst_55 = arith.constant 0.000000e+00 : bf16
    %84 = vector.broadcast %cst_55 : bf16 to vector<10x1x64xbf16>
    %c0_56 = arith.constant 0 : index
    %c0_57 = arith.constant 0 : index
    %c0_58 = arith.constant 0 : index
    %85 = vector.load %arg14[%c0_56, %c0_57, %c0_58] : memref<10x18x64xbf16, #tpu.memory_space<vmem>>, vector<10x1x64xbf16>
    tpu.vector_store %arg14[%c0_56, %c0_57, %c0_58], %84 {strides = array<i32>} : memref<10x18x64xbf16, #tpu.memory_space<vmem>>, vector<10x1x64xbf16>,
    %c0_59 = arith.constant 0 : index
    %c17_60 = arith.constant 17 : index
    %c0_61 = arith.constant 0 : index
    %86 = vector.load %arg14[%c0_59, %c17_60, %c0_61] : memref<10x18x64xbf16, #tpu.memory_space<vmem>>, vector<10x1x64xbf16>
    tpu.vector_store %arg14[%c0_59, %c17_60, %c0_61], %84 {strides = array<i32>} : memref<10x18x64xbf16, #tpu.memory_space<vmem>>, vector<10x1x64xbf16>,
    %cst_62 = arith.constant 0.000000e+00 : bf16
    %87 = vector.broadcast %cst_62 : bf16 to vector<1x18x64xbf16>
    %c0_i32_63 = arith.constant 0 : i32
    %88 = arith.cmpi eq, %arg1, %c0_i32_63 : i32
    %89 = arith.extui %88 : i1 to i32
    %c0_i32_64 = arith.constant 0 : i32
    %90 = arith.cmpi ne, %89, %c0_i32_64 : i32
    scf.if %90 {
      %c0_78 = arith.constant 0 : index
      %c0_79 = arith.constant 0 : index
      %c0_80 = arith.constant 0 : index
      %114 = vector.load %arg14[%c0_78, %c0_79, %c0_80] : memref<10x18x64xbf16, #tpu.memory_space<vmem>>, vector<1x18x64xbf16>
      tpu.vector_store %arg14[%c0_78, %c0_79, %c0_80], %87 {strides = array<i32>} : memref<10x18x64xbf16, #tpu.memory_space<vmem>>, vector<1x18x64xbf16>,
    } else {
    }
    %c1_i32_65 = arith.constant 1 : i32
    %91 = arith.cmpi eq, %arg1, %c1_i32_65 : i32
    %92 = arith.extui %91 : i1 to i32
    %c0_i32_66 = arith.constant 0 : i32
    %93 = arith.cmpi ne, %92, %c0_i32_66 : i32
    scf.if %93 {
      %c9 = arith.constant 9 : index
      %c0_78 = arith.constant 0 : index
      %c0_79 = arith.constant 0 : index
      %114 = vector.load %arg14[%c9, %c0_78, %c0_79] : memref<10x18x64xbf16, #tpu.memory_space<vmem>>, vector<1x18x64xbf16>
      tpu.vector_store %arg14[%c9, %c0_78, %c0_79], %87 {strides = array<i32>} : memref<10x18x64xbf16, #tpu.memory_space<vmem>>, vector<1x18x64xbf16>,
    } else {
    }
    %c0_67 = arith.constant 0 : index
    %c0_68 = arith.constant 0 : index
    %c0_69 = arith.constant 0 : index
    %94 = vector.load %arg14[%c0_67, %c0_68, %c0_69] : memref<10x18x64xbf16, #tpu.memory_space<vmem>>, vector<10x18x64xbf16>
    %95 = vector.extract_strided_slice %94 {offsets = [0, 0, 0], sizes = [10, 16, 64], strides = [1, 1, 1]} : vector<10x18x64xbf16> to vector<10x16x64xbf16>
    %96 = vector.extract_strided_slice %94 {offsets = [0, 1, 0], sizes = [10, 16, 64], strides = [1, 1, 1]} : vector<10x18x64xbf16> to vector<10x16x64xbf16>
    %97 = vector.extract_strided_slice %94 {offsets = [0, 2, 0], sizes = [10, 16, 64], strides = [1, 1, 1]} : vector<10x18x64xbf16> to vector<10x16x64xbf16>
    %98 = tpu.concatenate %95, %96, %97 in 2 : vector<10x16x64xbf16>, vector<10x16x64xbf16>, vector<10x16x64xbf16> -> vector<10x16x192xbf16>
    %99 = vector.shape_cast %98 : vector<10x16x192xbf16> to vector<160x192xbf16>
    %c0_70 = arith.constant 0 : index
    %c0_71 = arith.constant 0 : index
    %100 = vector.load %arg9[%c0_70, %c0_71] : memref<192x384xbf16, #tpu.memory_space<vmem>>, vector<192x384xbf16>
    %cst_72 = arith.constant dense<0.000000e+00> : vector<160x384xf32>
    %101 = tpu.matmul %99, %100, %cst_72 {dimension_numbers = #tpu.dot_dimension_numbers<[1], [0], [0], [1], [0, 0, 1, 1], [], []>} : vector<160x192xbf16>, vector<192x384xbf16>, vector<160x384xf32> -> vector<160x384xf32>
    %102 = vector.extract_strided_slice %101 {offsets = [0, 0], sizes = [128, 128], strides = [1, 1]} : vector<160x384xf32> to vector<128x128xf32>
    %103 = vector.extract_strided_slice %101 {offsets = [16, 128], sizes = [128, 128], strides = [1, 1]} : vector<160x384xf32> to vector<128x128xf32>
    %104 = arith.addf %102, %103 : vector<128x128xf32>
    %105 = vector.extract_strided_slice %101 {offsets = [32, 256], sizes = [128, 128], strides = [1, 1]} : vector<160x384xf32> to vector<128x128xf32>
    %106 = arith.addf %104, %105 : vector<128x128xf32>
    %107 = tpu.transpose %106, [1, 0] : vector<128x128xf32> -> vector<128x128xf32>
    %108 = vector.extract_strided_slice %107 {offsets = [0, 0], sizes = [1, 128], strides = [1, 1]} : vector<128x128xf32> to vector<1x128xf32>
    %c0_73 = arith.constant 0 : index
    %c0_74 = arith.constant 0 : index
    %109 = vector.load %arg10[%c0_73, %c0_74] : memref<1x1xf32, #tpu.memory_space<vmem>>, vector<1x1xf32>
    %110 = vector.broadcast %109 : vector<1x1xf32> to vector<1x128xf32>
    %111 = arith.addf %108, %110 : vector<1x128xf32>
    %112 = vector.shape_cast %111 : vector<1x128xf32> to vector<1x1x128xf32>
    %c0_75 = arith.constant 0 : index
    %c0_76 = arith.constant 0 : index
    %c0_77 = arith.constant 0 : index
    %113 = vector.load %arg11[%c0_75, %c0_76, %c0_77] : memref<1x1x128xf32, #tpu.memory_space<vmem>>, vector<1x1x128xf32>
    tpu.vector_store %arg11[%c0_75, %c0_76, %c0_77], %112 {strides = array<i32>} : memref<1x1x128xf32, #tpu.memory_space<vmem>>, vector<1x1x128xf32>,
    return
  }
  func.func @transform_0(%arg0: i32, %arg1: i32) -> (i32, i32, i32, i32) {
    %c2_i32 = arith.constant 2 : i32
    %0 = arith.muli %arg0, %c2_i32 : i32
    %1 = arith.addi %0, %arg1 : i32
    %c0_i32 = arith.constant 0 : i32
    %c0_i32_0 = arith.constant 0 : i32
    %c0_i32_1 = arith.constant 0 : i32
    %c0_i32_2 = arith.constant 0 : i32
    return %1, %c0_i32, %c0_i32_0, %c0_i32_1 : i32, i32, i32, i32
  }
  func.func @transform_1(%arg0: i32, %arg1: i32) -> (i32, i32) {
    %c0_i32 = arith.constant 0 : i32
    %c0_i32_0 = arith.constant 0 : i32
    %c0_i32_1 = arith.constant 0 : i32
    return %c0_i32, %c0_i32_0 : i32, i32
  }
  func.func @transform_2(%arg0: i32, %arg1: i32) -> (i32, i32) {
    %c0_i32 = arith.constant 0 : i32
    %c0_i32_0 = arith.constant 0 : i32
    %c0_i32_1 = arith.constant 0 : i32
    return %c0_i32, %c0_i32_0 : i32, i32
  }
  func.func @transform_3(%arg0: i32, %arg1: i32) -> (i32, i32) {
    %c0_i32 = arith.constant 0 : i32
    %c0_i32_0 = arith.constant 0 : i32
    %c0_i32_1 = arith.constant 0 : i32
    return %c0_i32, %c0_i32_0 : i32, i32
  }
  func.func @transform_4(%arg0: i32, %arg1: i32) -> (i32, i32) {
    %c0_i32 = arith.constant 0 : i32
    %c0_i32_0 = arith.constant 0 : i32
    %c0_i32_1 = arith.constant 0 : i32
    return %c0_i32, %c0_i32_0 : i32, i32
  }
  func.func @transform_5(%arg0: i32, %arg1: i32) -> (i32, i32) {
    %c0_i32 = arith.constant 0 : i32
    %c0_i32_0 = arith.constant 0 : i32
    %c0_i32_1 = arith.constant 0 : i32
    return %c0_i32, %c0_i32_0 : i32, i32
  }
  func.func @transform_6(%arg0: i32, %arg1: i32) -> (i32, i32) {
    %c0_i32 = arith.constant 0 : i32
    %c0_i32_0 = arith.constant 0 : i32
    %c0_i32_1 = arith.constant 0 : i32
    return %c0_i32, %c0_i32_0 : i32, i32
  }
  func.func @transform_7(%arg0: i32, %arg1: i32) -> (i32, i32) {
    %c0_i32 = arith.constant 0 : i32
    %c0_i32_0 = arith.constant 0 : i32
    %c0_i32_1 = arith.constant 0 : i32
    return %c0_i32, %c0_i32_0 : i32, i32
  }
  func.func @transform_8(%arg0: i32, %arg1: i32) -> (i32, i32) {
    %c0_i32 = arith.constant 0 : i32
    %c0_i32_0 = arith.constant 0 : i32
    %c0_i32_1 = arith.constant 0 : i32
    return %c0_i32, %c0_i32_0 : i32, i32
  }
  func.func @transform_9(%arg0: i32, %arg1: i32) -> (i32, i32, i32) {
    %c0_i32 = arith.constant 0 : i32
    %c0_i32_0 = arith.constant 0 : i32
    return %arg0, %c0_i32, %arg1 : i32, i32, i32
  }
}

</mosaic_0001>

<llo_original>
// kernel: _lambda_.1
$region0: #{_lambda_.1}
  #allocation0 [shape = 'u32[]', space=smem, size = 0x4, offset = 0x4, fixed_abs, tag = 'smem constant byte address 0x4 - core index']
  #allocation1 [shape = 'u32[144,128]{1,0:T(1,128)}', space=vmem, size = 0x12000, scoped, tag = 'internal scratch']
  #allocation2 [shape = 'bf16[14,18,64]{2,1,0:T(8,128)(2,1)}', space=vmem, size = 0x15000, scoped, tag = 'scratch operand']
  #allocation3 [shape = 'bf16[12,18,64]{2,1,0:T(8,128)(2,1)}', space=vmem, size = 0x12000, scoped, tag = 'scratch operand']
  #allocation4 [shape = 'bf16[10,18,64]{2,1,0:T(8,128)(2,1)}', space=vmem, size = 0xf000, scoped, tag = 'scratch operand']
  #allocation5 [shape = 'f32[1,1]{1,0:T(1,128)S(1)}', space=vmem, size = 0x200, scoped, tag = 'scoped memory for _lambda_.1']
  %s0 = inlined_call_operand.vmem [shape: bf16[4,16,18,4], index: 0, kind: input, shape index: {}]
  %s1 = inlined_call_operand.vmem [shape: bf16[12,192], index: 1, kind: input, shape index: {}]
  %s2 = inlined_call_operand.vmem [shape: f32[1,64], index: 2, kind: input, shape index: {}]
  %s3 = inlined_call_operand.vmem [shape: bf16[192,192], index: 3, kind: input, shape index: {}]
  %s4 = inlined_call_operand.vmem [shape: f32[1,64], index: 4, kind: input, shape index: {}]
  %s5 = inlined_call_operand.vmem [shape: bf16[192,192], index: 5, kind: input, shape index: {}]
  %s6 = inlined_call_operand.vmem [shape: f32[1,64], index: 6, kind: input, shape index: {}]
  %s7 = inlined_call_operand.vmem [shape: bf16[192,384], index: 7, kind: input, shape index: {}]
  %s8 = inlined_call_operand.<no memory space> [shape: f32[1,1], index: 8, kind: input, shape index: {}]
  %s9 = inlined_call_operand.vmem [shape: f32[2,1,256], index: 9, kind: output, shape index: {}]
  %s10 = sld [smem:[#allocation0]]
  $region93: #{_lambda_.1} parent=0
    _
  %s12 = ssub.s32 1, %s10
  %s13 = scalar_select 0, %s12, %s10
  %v14 = vstv %s8
  %15 = vst [vmem:[#allocation5] sm:$0x1] %v14
  loop: start=0, step=1, limit=6
  $region2: #{_lambda_.1} parent=0 // loop_pre_header
    _
  $region3: #{_lambda_.1} parent=0 // loop_header
    %s17 = sphi 0, %s21
    %p18 = scmp.ge.s32.totalorder %s17, 6
    %s24 = sphi 0, %s36
    %s25 = sphi 0, %s32
    %s26 = sphi 0, %s24
    %s27 = sphi 0, %s25
    %s28 = sphi 0, %s26
    %s29 = sphi 0, %s27
    %s43 = sphi 0, %s45
    %s46 = sphi 0, %s43
    %s47 = sphi 0, %s46
    %s63 = sphi 0, %s47
    %s67 = sphi 0, %s67
    %s69 = sphi 0, %s67
    %s70 = sphi 0, %s69
    %s84 = sphi 0, %s70
    %s88 = sphi 0, %s88
    %s90 = sphi 0, %s88
    %s91 = sphi 0, %s90
    %s105 = sphi 0, %s91
    %s109 = sphi 0, %s109
    %s111 = sphi 0, %s109
    %s112 = sphi 0, %s111
    %s126 = sphi 0, %s112
    %s130 = sphi 0, %s130
    %s132 = sphi 0, %s130
    %s133 = sphi 0, %s132
    %s147 = sphi 0, %s133
    %s151 = sphi 0, %s151
    %s153 = sphi 0, %s151
    %s154 = sphi 0, %s153
    %s168 = sphi 0, %s154
    %s172 = sphi 0, %s172
    %s174 = sphi 0, %s172
    %s175 = sphi 0, %s174
    %s189 = sphi 0, %s175
    %s193 = sphi 0, %s193
    %s195 = sphi 0, %s193
    %s196 = sphi 0, %s195
    %s210 = sphi 0, %s196
    %s214 = sphi 0, %s214
    %s216 = sphi 0, %s214
    %s217 = sphi 0, %s216
    %s231 = sphi 0, %s217
    %s239 = sphi 0, %s241
    %s242 = sphi 0, %s239
    %s243 = sphi 0, %s242
    %s259 = sphi 0, %s243
  $region4: #{_lambda_.1} parent=0 // loop_header_branch
    %20 = sbr.rel (%p18) target = $region8
  $region5: #{_lambda_.1} parent=0 // loop_body
    %s22 = ssub.s32 %s17, 1
    %s23 = ssub.s32 %s17, 2
    %s30 = sadd.s32 1, %s25
    %p31 = scmp.ge.s32.totalorder %s30, 2
    %s32 = scalar_select %p31, 0, %s30
    %s33 = sadd.s32 1, %s24
    %s34 = scalar_select %p31, %s33, %s24
    %p35 = scmp.ge.s32.totalorder %s34, 2
    %s36 = scalar_select %p35, 0, %s34
    %s37 = smul.u32 %s24, 2
    %s38 = sadd.s32 %s37, %s25
    %s39 = smul.u32 %s36, 2
    %s40 = sadd.s32 %s39, %s32
    %s41 = ssub.s32 %s38, %s40
    %p42 = scmp.eq.s32.totalorder %s41, 0
    %s44 = sadd.s32 %s43, 1
    %s45 = scalar_select %p42, %s43, %s44
    %p48 = pneg %p42
    %p49 = scmp.eq.s32.totalorder %s17, 3
    %p50 = por %p48, %p49
    %p51 = scmp.ne.s32.totalorder %s43, %s46
    %p52 = scmp.eq.s32.totalorder %s17, 0
    %p53 = por %p51, %p52
    %p54 = scmp.ne.s32.totalorder %s43, %s46
    %p55 = scmp.eq.s32.totalorder %s22, 3
    %p56 = por %p54, %p55
    %p57 = scmp.ne.s32.totalorder %s46, %s47
    %p58 = scmp.eq.s32.totalorder %s22, 0
    %p59 = por %p57, %p58
    %p60 = scmp.ne.s32.totalorder %s46, %s47
    %p61 = scmp.eq.s32.totalorder %s23, 3
    %p62 = por %p60, %p61
    %p64 = scmp.ne.s32.totalorder %s47, %s63
    %p65 = scmp.eq.s32.totalorder %s23, 0
    %p66 = por %p64, %p65
    %s68 = sadd.s32 %s67, 1
    %p71 = scmp.eq.s32.totalorder %s17, 3
    %p72 = scmp.ne.s32.totalorder %s67, %s69
    %p73 = scmp.eq.s32.totalorder %s17, 0
    %p74 = por %p72, %p73
    %p75 = scmp.ne.s32.totalorder %s67, %s69
    %p76 = scmp.eq.s32.totalorder %s22, 3
    %p77 = por %p75, %p76
    %p78 = scmp.ne.s32.totalorder %s69, %s70
    %p79 = scmp.eq.s32.totalorder %s22, 0
    %p80 = por %p78, %p79
    %p81 = scmp.ne.s32.totalorder %s69, %s70
    %p82 = scmp.eq.s32.totalorder %s23, 3
    %p83 = por %p81, %p82
    %p85 = scmp.ne.s32.totalorder %s70, %s84
    %p86 = scmp.eq.s32.totalorder %s23, 0
    %p87 = por %p85, %p86
    %s89 = sadd.s32 %s88, 1
    %p92 = scmp.eq.s32.totalorder %s17, 3
    %p93 = scmp.ne.s32.totalorder %s88, %s90
    %p94 = scmp.eq.s32.totalorder %s17, 0
    %p95 = por %p93, %p94
    %p96 = scmp.ne.s32.totalorder %s88, %s90
    %p97 = scmp.eq.s32.totalorder %s22, 3
    %p98 = por %p96, %p97
    %p99 = scmp.ne.s32.totalorder %s90, %s91
    %p100 = scmp.eq.s32.totalorder %s22, 0
    %p101 = por %p99, %p100
    %p102 = scmp.ne.s32.totalorder %s90, %s91
    %p103 = scmp.eq.s32.totalorder %s23, 3
    %p104 = por %p102, %p103
    %p106 = scmp.ne.s32.totalorder %s91, %s105
    %p107 = scmp.eq.s32.totalorder %s23, 0
    %p108 = por %p106, %p107
    %s110 = sadd.s32 %s109, 1
    %p113 = scmp.eq.s32.totalorder %s17, 3
    %p114 = scmp.ne.s32.totalorder %s109, %s111
    %p115 = scmp.eq.s32.totalorder %s17, 0
    %p116 = por %p114, %p115
    %p117 = scmp.ne.s32.totalorder %s109, %s111
    %p118 = scmp.eq.s32.totalorder %s22, 3
    %p119 = por %p117, %p118
    %p120 = scmp.ne.s32.totalorder %s111, %s112
    %p121 = scmp.eq.s32.totalorder %s22, 0
    %p122 = por %p120, %p121
    %p123 = scmp.ne.s32.totalorder %s111, %s112
    %p124 = scmp.eq.s32.totalorder %s23, 3
    %p125 = por %p123, %p124
    %p127 = scmp.ne.s32.totalorder %s112, %s126
    %p128 = scmp.eq.s32.totalorder %s23, 0
    %p129 = por %p127, %p128
    %s131 = sadd.s32 %s130, 1
    %p134 = scmp.eq.s32.totalorder %s17, 3
    %p135 = scmp.ne.s32.totalorder %s130, %s132
    %p136 = scmp.eq.s32.totalorder %s17, 0
    %p137 = por %p135, %p136
    %p138 = scmp.ne.s32.totalorder %s130, %s132
    %p139 = scmp.eq.s32.totalorder %s22, 3
    %p140 = por %p138, %p139
    %p141 = scmp.ne.s32.totalorder %s132, %s133
    %p142 = scmp.eq.s32.totalorder %s22, 0
    %p143 = por %p141, %p142
    %p144 = scmp.ne.s32.totalorder %s132, %s133
    %p145 = scmp.eq.s32.totalorder %s23, 3
    %p146 = por %p144, %p145
    %p148 = scmp.ne.s32.totalorder %s133, %s147
    %p149 = scmp.eq.s32.totalorder %s23, 0
    %p150 = por %p148, %p149
    %s152 = sadd.s32 %s151, 1
    %p155 = scmp.eq.s32.totalorder %s17, 3
    %p156 = scmp.ne.s32.totalorder %s151, %s153
    %p157 = scmp.eq.s32.totalorder %s17, 0
    %p158 = por %p156, %p157
    %p159 = scmp.ne.s32.totalorder %s151, %s153
    %p160 = scmp.eq.s32.totalorder %s22, 3
    %p161 = por %p159, %p160
    %p162 = scmp.ne.s32.totalorder %s153, %s154
    %p163 = scmp.eq.s32.totalorder %s22, 0
    %p164 = por %p162, %p163
    %p165 = scmp.ne.s32.totalorder %s153, %s154
    %p166 = scmp.eq.s32.totalorder %s23, 3
    %p167 = por %p165, %p166
    %p169 = scmp.ne.s32.totalorder %s154, %s168
    %p170 = scmp.eq.s32.totalorder %s23, 0
    %p171 = por %p169, %p170
    %s173 = sadd.s32 %s172, 1
    %p176 = scmp.eq.s32.totalorder %s17, 3
    %p177 = scmp.ne.s32.totalorder %s172, %s174
    %p178 = scmp.eq.s32.totalorder %s17, 0
    %p179 = por %p177, %p178
    %p180 = scmp.ne.s32.totalorder %s172, %s174
    %p181 = scmp.eq.s32.totalorder %s22, 3
    %p182 = por %p180, %p181
    %p183 = scmp.ne.s32.totalorder %s174, %s175
    %p184 = scmp.eq.s32.totalorder %s22, 0
    %p185 = por %p183, %p184
    %p186 = scmp.ne.s32.totalorder %s174, %s175
    %p187 = scmp.eq.s32.totalorder %s23, 3
    %p188 = por %p186, %p187
    %p190 = scmp.ne.s32.totalorder %s175, %s189
    %p191 = scmp.eq.s32.totalorder %s23, 0
    %p192 = por %p190, %p191
    %s194 = sadd.s32 %s193, 1
    %p197 = scmp.eq.s32.totalorder %s17, 3
    %p198 = scmp.ne.s32.totalorder %s193, %s195
    %p199 = scmp.eq.s32.totalorder %s17, 0
    %p200 = por %p198, %p199
    %p201 = scmp.ne.s32.totalorder %s193, %s195
    %p202 = scmp.eq.s32.totalorder %s22, 3
    %p203 = por %p201, %p202
    %p204 = scmp.ne.s32.totalorder %s195, %s196
    %p205 = scmp.eq.s32.totalorder %s22, 0
    %p206 = por %p204, %p205
    %p207 = scmp.ne.s32.totalorder %s195, %s196
    %p208 = scmp.eq.s32.totalorder %s23, 3
    %p209 = por %p207, %p208
    %p211 = scmp.ne.s32.totalorder %s196, %s210
    %p212 = scmp.eq.s32.totalorder %s23, 0
    %p213 = por %p211, %p212
    %s215 = sadd.s32 %s214, 1
    %p218 = scmp.eq.s32.totalorder %s17, 3
    %p219 = scmp.ne.s32.totalorder %s214, %s216
    %p220 = scmp.eq.s32.totalorder %s17, 0
    %p221 = por %p219, %p220
    %p222 = scmp.ne.s32.totalorder %s214, %s216
    %p223 = scmp.eq.s32.totalorder %s22, 3
    %p224 = por %p222, %p223
    %p225 = scmp.ne.s32.totalorder %s216, %s217
    %p226 = scmp.eq.s32.totalorder %s22, 0
    %p227 = por %p225, %p226
    %p228 = scmp.ne.s32.totalorder %s216, %s217
    %p229 = scmp.eq.s32.totalorder %s23, 3
    %p230 = por %p228, %p229
    %p232 = scmp.ne.s32.totalorder %s217, %s231
    %p233 = scmp.eq.s32.totalorder %s23, 0
    %p234 = por %p232, %p233
    %s235 = ssub.s32 %s24, %s36
    %s236 = ssub.s32 %s25, %s32
    %s237 = sor.u32 %s235, %s236
    %p238 = scmp.eq.s32.totalorder %s237, 0
    %s240 = sadd.s32 %s239, 1
    %s241 = scalar_select %p238, %s239, %s240
    %p244 = pneg %p238
    %p245 = scmp.eq.s32.totalorder %s17, 3
    %p246 = por %p244, %p245
    %p247 = scmp.ne.s32.totalorder %s239, %s242
    %p248 = scmp.eq.s32.totalorder %s17, 0
    %p249 = por %p247, %p248
    %p250 = scmp.ne.s32.totalorder %s239, %s242
    %p251 = scmp.eq.s32.totalorder %s22, 3
    %p252 = por %p250, %p251
    %p253 = scmp.ne.s32.totalorder %s242, %s243
    %p254 = scmp.eq.s32.totalorder %s22, 0
    %p255 = por %p253, %p254
    %p256 = scmp.ne.s32.totalorder %s242, %s243
    %p257 = scmp.eq.s32.totalorder %s23, 3
    %p258 = por %p256, %p257
    %p260 = scmp.ne.s32.totalorder %s243, %s259
    %p261 = scmp.eq.s32.totalorder %s23, 0
    %p262 = por %p260, %p261
    %p263 = scmp.le.s32.totalorder 1, %s17
    %p264 = scmp.lt.s32.totalorder %s17, 5
    %p265 = pnand %p263, %p264
    %p266 = pneg %p265
    // Predicated region
    $region9: #{_lambda_.1} parent=5 // pred_check
      _
    $region10: #{_lambda_.1} parent=5 // pred_check_branch
      %268 = sbr.rel (%p265) target = $region12
    $region11: #{_lambda_.1} parent=5 // pred_region
      %s269 = ssub.s32 %s17, 1
      // Predicated region
      $region13: #{_lambda_.1} parent=11 // pred_check
        %p270 = pneg %p80
      $region14: #{_lambda_.1} parent=11 // pred_check_branch
        %272 = sbr.rel (%p270) target = $region16
      $region15: #{_lambda_.1} parent=11 // pred_region
        _
      $region16: #{_lambda_.1} parent=11 // pred_fallthru
        _
      // Predicated region
      $region17: #{_lambda_.1} parent=11 // pred_check
        %p273 = pneg %p101
      $region18: #{_lambda_.1} parent=11 // pred_check_branch
        %275 = sbr.rel (%p273) target = $region20
      $region19: #{_lambda_.1} parent=11 // pred_region
        _
      $region20: #{_lambda_.1} parent=11 // pred_fallthru
        _
      // Predicated region
      $region21: #{_lambda_.1} parent=11 // pred_check
        %p276 = pneg %p122
      $region22: #{_lambda_.1} parent=11 // pred_check_branch
        %278 = sbr.rel (%p276) target = $region24
      $region23: #{_lambda_.1} parent=11 // pred_region
        _
      $region24: #{_lambda_.1} parent=11 // pred_fallthru
        _
      // Predicated region
      $region25: #{_lambda_.1} parent=11 // pred_check
        %p279 = pneg %p143
      $region26: #{_lambda_.1} parent=11 // pred_check_branch
        %281 = sbr.rel (%p279) target = $region28
      $region27: #{_lambda_.1} parent=11 // pred_region
        _
      $region28: #{_lambda_.1} parent=11 // pred_fallthru
        _
      // Predicated region
      $region29: #{_lambda_.1} parent=11 // pred_check
        %p282 = pneg %p164
      $region30: #{_lambda_.1} parent=11 // pred_check_branch
        %284 = sbr.rel (%p282) target = $region32
      $region31: #{_lambda_.1} parent=11 // pred_region
        _
      $region32: #{_lambda_.1} parent=11 // pred_fallthru
        _
      // Predicated region
      $region33: #{_lambda_.1} parent=11 // pred_check
        %p285 = pneg %p185
      $region34: #{_lambda_.1} parent=11 // pred_check_branch
        %287 = sbr.rel (%p285) target = $region36
      $region35: #{_lambda_.1} parent=11 // pred_region
        _
      $region36: #{_lambda_.1} parent=11 // pred_fallthru
        _
      // Predicated region
      $region37: #{_lambda_.1} parent=11 // pred_check
        %p288 = pneg %p206
      $region38: #{_lambda_.1} parent=11 // pred_check_branch
        %290 = sbr.rel (%p288) target = $region40
      $region39: #{_lambda_.1} parent=11 // pred_region
        _
      $region40: #{_lambda_.1} parent=11 // pred_fallthru
        _
      // Predicated region
      $region41: #{_lambda_.1} parent=11 // pred_check
        %p291 = pneg %p227
      $region42: #{_lambda_.1} parent=11 // pred_check_branch
        %293 = sbr.rel (%p291) target = $region44
      $region43: #{_lambda_.1} parent=11 // pred_region
        _
      $region44: #{_lambda_.1} parent=11 // pred_fallthru
        _
    $region12: #{_lambda_.1} parent=5 // pred_fallthru
      _
    %p294 = scmp.lt.s32.totalorder %s17, 4
    // Predicated region
    $region45: #{_lambda_.1} parent=5 // pred_check
      %p295 = pneg %p294
    $region46: #{_lambda_.1} parent=5 // pred_check_branch
      %297 = sbr.rel (%p295) target = $region48
    $region47: #{_lambda_.1} parent=5 // pred_region
      // Predicated region
      $region49: #{_lambda_.1} parent=47 // pred_check
        %p298 = pneg %p53
      $region50: #{_lambda_.1} parent=47 // pred_check_branch
        %300 = sbr.rel (%p298) target = $region52
      $region51: #{_lambda_.1} parent=47 // pred_region
        %s301 = smul.u32 %s24, 2
        %s302 = sadd.s32 %s301, %s25
        %p303 = scmp.lt.s32.totalorder %s302, 3
        %s304 = scalar_select %p303, %s302, 3
        %s305 = smul.addr %s304, 48
        %s306 = smul.addr %s305, 4
        %s307 = scalar_lea.vmem %s0, %s306
        %s308 = smul.u32 %s24, 2
        %s309 = sadd.s32 %s308, %s25
      $region52: #{_lambda_.1} parent=47 // pred_fallthru
        _
    $region48: #{_lambda_.1} parent=5 // pred_fallthru
      _
    %p310 = scmp.le.s32.totalorder 1, %s17
    %p311 = scmp.lt.s32.totalorder %s17, 5
    %p312 = pnand %p310, %p311
    %p313 = pneg %p312
    // Predicated region
    $region53: #{_lambda_.1} parent=5 // pred_check
      _
    $region54: #{_lambda_.1} parent=5 // pred_check_branch
      %315 = sbr.rel (%p312) target = $region56
    $region55: #{_lambda_.1} parent=5 // pred_region
      %s316 = ssub.s32 %s17, 1
      %s317 = smul.u32 %s26, 2
      %s318 = sadd.s32 %s317, %s27
      %p319 = scmp.lt.s32.totalorder %s318, 3
      %s320 = scalar_select %p319, %s318, 3
      %s321 = smul.addr %s320, 48
      %s322 = smul.addr %s321, 4
      %s323 = scalar_lea.vmem %s0, %s322
      %p324 = pneg %p59
      %p325 = pneg %p56
      %p326 = pneg %p80
      %p327 = pneg %p77
      %p328 = pneg %p101
      %p329 = pneg %p98
      %p330 = pneg %p122
      %p331 = pneg %p119
      %p332 = pneg %p143
      %p333 = pneg %p140
      %p334 = pneg %p164
      %p335 = pneg %p161
      %p336 = pneg %p185
      %p337 = pneg %p182
      %p338 = pneg %p206
      %p339 = pneg %p203
      %p340 = pneg %p227
      %p341 = pneg %p224
      %p342 = pneg %p255
      %p343 = pneg %p252
      %p344 = scmp.lt.s32.totalorder %s26, 1
      %s345 = scalar_select %p344, %s26, 1
      %p346 = scmp.lt.s32.totalorder %s27, 1
      %s347 = scalar_select %p346, %s27, 1
      %s348 = smul.addr %s345, 2
      %s349 = sadd.s32 %s347, %s348
      %s350 = scalar_lea.vmem %s9, %s349
      %s351 = smul.u32 %s26, 2
      %s352 = sadd.s32 %s351, %s27
      %p353 = scmp.lt.s32.totalorder %s352, 3
      %s354 = scalar_select %p353, %s352, 3
      %s355 = smul.addr %s354, 48
      %s356 = smul.addr %s355, 4
      %s357 = scalar_lea.vmem %s0, %s356
      %s358 = smul.u32 %s26, 2
      %s359 = sadd.s32 %s358, %s27
      %p360 = scmp.lt.s32.totalorder %s26, 1
      %s361 = scalar_select %p360, %s26, 1
      %p362 = scmp.lt.s32.totalorder %s27, 1
      %s363 = scalar_select %p362, %s27, 1
      %s364 = smul.addr %s361, 2
      %s365 = sadd.s32 %s363, %s364
      %s366 = scalar_lea.vmem %s9, %s365
      %v368 = vld [vmem:[%s357] sm:$0xf]
      %v369 = vld [vmem:[%s357 + $0x4] sm:$0xf]
      %v370 = vld [vmem:[%s357 + $0x8] sm:$0x1]
      %v371 = vld [vmem:[%s357 + $0xc] sm:$0xf]
      %v372 = vld [vmem:[%s357 + $0x10] sm:$0xf]
      %v373 = vld [vmem:[%s357 + $0x14] sm:$0x1]
      %v374 = vld [vmem:[%s357 + $0x18] sm:$0xf]
      %v375 = vld [vmem:[%s357 + $0x1c] sm:$0xf]
      %v376 = vld [vmem:[%s357 + $0x20] sm:$0x1]
      %v377 = vld [vmem:[%s357 + $0x24] sm:$0xf]
      %v378 = vld [vmem:[%s357 + $0x28] sm:$0xf]
      %v379 = vld [vmem:[%s357 + $0x2c] sm:$0x1]
      %v380 = vld [vmem:[%s357 + $0x30] sm:$0xf]
      %v381 = vld [vmem:[%s357 + $0x34] sm:$0xf]
      %v382 = vld [vmem:[%s357 + $0x38] sm:$0x1]
      %v383 = vld [vmem:[%s357 + $0x3c] sm:$0xf]
      %v384 = vld [vmem:[%s357 + $0x40] sm:$0xf]
      %v385 = vld [vmem:[%s357 + $0x44] sm:$0x1]
      %v386 = vld [vmem:[%s357 + $0x48] sm:$0xf]
      %v387 = vld [vmem:[%s357 + $0x4c] sm:$0xf]
      %v388 = vld [vmem:[%s357 + $0x50] sm:$0x1]
      %v389 = vld [vmem:[%s357 + $0x54] sm:$0xf]
      %v390 = vld [vmem:[%s357 + $0x58] sm:$0xf]
      %v391 = vld [vmem:[%s357 + $0x5c] sm:$0x1]
      %v392 = vld [vmem:[%s357 + $0x60] sm:$0xf]
      %v393 = vld [vmem:[%s357 + $0x64] sm:$0xf]
      %v394 = vld [vmem:[%s357 + $0x68] sm:$0x1]
      %v395 = vld [vmem:[%s357 + $0x6c] sm:$0xf]
      %v396 = vld [vmem:[%s357 + $0x70] sm:$0xf]
      %v397 = vld [vmem:[%s357 + $0x74] sm:$0x1]
      %v398 = vld [vmem:[%s357 + $0x78] sm:$0xf]
      %v399 = vld [vmem:[%s357 + $0x7c] sm:$0xf]
      %v400 = vld [vmem:[%s357 + $0x80] sm:$0x1]
      %v401 = vld [vmem:[%s357 + $0x84] sm:$0xf]
      %v402 = vld [vmem:[%s357 + $0x88] sm:$0xf]
      %v403 = vld [vmem:[%s357 + $0x8c] sm:$0x1]
      %v404 = vld [vmem:[%s357 + $0x90] sm:$0xf]
      %v405 = vld [vmem:[%s357 + $0x94] sm:$0xf]
      %v406 = vld [vmem:[%s357 + $0x98] sm:$0x1]
      %v407 = vld [vmem:[%s357 + $0x9c] sm:$0xf]
      %v408 = vld [vmem:[%s357 + $0xa0] sm:$0xf]
      %v409 = vld [vmem:[%s357 + $0xa4] sm:$0x1]
      %v410 = vld [vmem:[%s357 + $0xa8] sm:$0xf]
      %v411 = vld [vmem:[%s357 + $0xac] sm:$0xf]
      %v412 = vld [vmem:[%s357 + $0xb0] sm:$0x1]
      %v413 = vld [vmem:[%s357 + $0xb4] sm:$0xf]
      %v414 = vld [vmem:[%s357 + $0xb8] sm:$0xf]
      %v415 = vld [vmem:[%s357 + $0xbc] sm:$0x1]
      %v448 = vunpack.c.l.b16 %v368
      %v449 = vunpack.c.l.b16 %v369
      %v450 = vunpack.c.l.b16 %v371
      %v451 = vunpack.c.l.b16 %v372
      %v452 = vunpack.c.l.b16 %v374
      %v453 = vunpack.c.l.b16 %v375
      %v454 = vunpack.c.l.b16 %v377
      %v455 = vunpack.c.l.b16 %v378
      %v456 = vunpack.c.l.b16 %v380
      %v457 = vunpack.c.l.b16 %v381
      %v458 = vunpack.c.l.b16 %v383
      %v459 = vunpack.c.l.b16 %v384
      %v460 = vunpack.c.l.b16 %v386
      %v461 = vunpack.c.l.b16 %v387
      %v462 = vunpack.c.l.b16 %v389
      %v463 = vunpack.c.l.b16 %v390
      %v464 = vunpack.c.l.b16 %v392
      %v465 = vunpack.c.l.b16 %v393
      %v466 = vunpack.c.l.b16 %v395
      %v467 = vunpack.c.l.b16 %v396
      %v468 = vunpack.c.l.b16 %v398
      %v469 = vunpack.c.l.b16 %v399
      %v470 = vunpack.c.l.b16 %v401
      %v471 = vunpack.c.l.b16 %v402
      %v472 = vunpack.c.l.b16 %v404
      %v473 = vunpack.c.l.b16 %v405
      %v474 = vunpack.c.l.b16 %v407
      %v475 = vunpack.c.l.b16 %v408
      %v476 = vunpack.c.l.b16 %v410
      %v477 = vunpack.c.l.b16 %v411
      %v478 = vunpack.c.l.b16 %v413
      %v479 = vunpack.c.l.b16 %v414
      %v480 = vpack.c.b16 %v449, %v448
      %v481 = vpack.c.b16 %v451, %v450
      %v482 = vpack.c.b16 %v453, %v452
      %v483 = vpack.c.b16 %v455, %v454
      %v484 = vpack.c.b16 %v457, %v456
      %v485 = vpack.c.b16 %v459, %v458
      %v486 = vpack.c.b16 %v461, %v460
      %v487 = vpack.c.b16 %v463, %v462
      %v488 = vpack.c.b16 %v465, %v464
      %v489 = vpack.c.b16 %v467, %v466
      %v490 = vpack.c.b16 %v469, %v468
      %v491 = vpack.c.b16 %v471, %v470
      %v492 = vpack.c.b16 %v473, %v472
      %v493 = vpack.c.b16 %v475, %v474
      %v494 = vpack.c.b16 %v477, %v476
      %v495 = vpack.c.b16 %v479, %v478
      %v512 = vunpack.c.l.b16 %v370
      %v513 = vunpack.c.l.b16 %v373
      %v514 = vunpack.c.l.b16 %v376
      %v515 = vunpack.c.l.b16 %v379
      %v516 = vunpack.c.l.b16 %v382
      %v517 = vunpack.c.l.b16 %v385
      %v518 = vunpack.c.l.b16 %v388
      %v519 = vunpack.c.l.b16 %v391
      %v520 = vunpack.c.l.b16 %v394
      %v521 = vunpack.c.l.b16 %v397
      %v522 = vunpack.c.l.b16 %v400
      %v523 = vunpack.c.l.b16 %v403
      %v524 = vunpack.c.l.b16 %v406
      %v525 = vunpack.c.l.b16 %v409
      %v526 = vunpack.c.l.b16 %v412
      %v527 = vunpack.c.l.b16 %v415
      %v528 = vpack.c.b16 %v512, %v512
      %v529 = vpack.c.b16 %v513, %v513
      %v530 = vpack.c.b16 %v514, %v514
      %v531 = vpack.c.b16 %v515, %v515
      %v532 = vpack.c.b16 %v516, %v516
      %v533 = vpack.c.b16 %v517, %v517
      %v534 = vpack.c.b16 %v518, %v518
      %v535 = vpack.c.b16 %v519, %v519
      %v536 = vpack.c.b16 %v520, %v520
      %v537 = vpack.c.b16 %v521, %v521
      %v538 = vpack.c.b16 %v522, %v522
      %v539 = vpack.c.b16 %v523, %v523
      %v540 = vpack.c.b16 %v524, %v524
      %v541 = vpack.c.b16 %v525, %v525
      %v542 = vpack.c.b16 %v526, %v526
      %v543 = vpack.c.b16 %v527, %v527
      %vm544 = vsmask.f32 7424
      %v546 = vshrl.u32 %v480, 16
      %v548 = vshll.u32 %v480, 16
      %v550 = vrot.slane %v548, 1
      %v551 = vor.u32 %v546, %v550
      %v553 = vshll.u32 %v528, 16
      %v555 = vrot.slane %v553, 1
      %v556 = vsel %vm544, %v551, %v555
      %v558 = vshrl.u32 %v481, 16
      %v560 = vshll.u32 %v481, 16
      %v562 = vrot.slane %v560, 1
      %v563 = vor.u32 %v558, %v562
      %v565 = vshll.u32 %v529, 16
      %v567 = vrot.slane %v565, 1
      %v568 = vsel %vm544, %v563, %v567
      %v570 = vshrl.u32 %v482, 16
      %v572 = vshll.u32 %v482, 16
      %v574 = vrot.slane %v572, 1
      %v575 = vor.u32 %v570, %v574
      %v577 = vshll.u32 %v530, 16
      %v579 = vrot.slane %v577, 1
      %v580 = vsel %vm544, %v575, %v579
      %v582 = vshrl.u32 %v483, 16
      %v584 = vshll.u32 %v483, 16
      %v586 = vrot.slane %v584, 1
      %v587 = vor.u32 %v582, %v586
      %v589 = vshll.u32 %v531, 16
      %v591 = vrot.slane %v589, 1
      %v592 = vsel %vm544, %v587, %v591
      %v594 = vshrl.u32 %v484, 16
      %v596 = vshll.u32 %v484, 16
      %v598 = vrot.slane %v596, 1
      %v599 = vor.u32 %v594, %v598
      %v601 = vshll.u32 %v532, 16
      %v603 = vrot.slane %v601, 1
      %v604 = vsel %vm544, %v599, %v603
      %v606 = vshrl.u32 %v485, 16
      %v608 = vshll.u32 %v485, 16
      %v610 = vrot.slane %v608, 1
      %v611 = vor.u32 %v606, %v610
      %v613 = vshll.u32 %v533, 16
      %v615 = vrot.slane %v613, 1
      %v616 = vsel %vm544, %v611, %v615
      %v618 = vshrl.u32 %v486, 16
      %v620 = vshll.u32 %v486, 16
      %v622 = vrot.slane %v620, 1
      %v623 = vor.u32 %v618, %v622
      %v625 = vshll.u32 %v534, 16
      %v627 = vrot.slane %v625, 1
      %v628 = vsel %vm544, %v623, %v627
      %v630 = vshrl.u32 %v487, 16
      %v632 = vshll.u32 %v487, 16
      %v634 = vrot.slane %v632, 1
      %v635 = vor.u32 %v630, %v634
      %v637 = vshll.u32 %v535, 16
      %v639 = vrot.slane %v637, 1
      %v640 = vsel %vm544, %v635, %v639
      %v642 = vshrl.u32 %v488, 16
      %v644 = vshll.u32 %v488, 16
      %v646 = vrot.slane %v644, 1
      %v647 = vor.u32 %v642, %v646
      %v649 = vshll.u32 %v536, 16
      %v651 = vrot.slane %v649, 1
      %v652 = vsel %vm544, %v647, %v651
      %v654 = vshrl.u32 %v489, 16
      %v656 = vshll.u32 %v489, 16
      %v658 = vrot.slane %v656, 1
      %v659 = vor.u32 %v654, %v658
      %v661 = vshll.u32 %v537, 16
      %v663 = vrot.slane %v661, 1
      %v664 = vsel %vm544, %v659, %v663
      %v666 = vshrl.u32 %v490, 16
      %v668 = vshll.u32 %v490, 16
      %v670 = vrot.slane %v668, 1
      %v671 = vor.u32 %v666, %v670
      %v673 = vshll.u32 %v538, 16
      %v675 = vrot.slane %v673, 1
      %v676 = vsel %vm544, %v671, %v675
      %v678 = vshrl.u32 %v491, 16
      %v680 = vshll.u32 %v491, 16
      %v682 = vrot.slane %v680, 1
      %v683 = vor.u32 %v678, %v682
      %v685 = vshll.u32 %v539, 16
      %v687 = vrot.slane %v685, 1
      %v688 = vsel %vm544, %v683, %v687
      %v690 = vshrl.u32 %v492, 16
      %v692 = vshll.u32 %v492, 16
      %v694 = vrot.slane %v692, 1
      %v695 = vor.u32 %v690, %v694
      %v697 = vshll.u32 %v540, 16
      %v699 = vrot.slane %v697, 1
      %v700 = vsel %vm544, %v695, %v699
      %v702 = vshrl.u32 %v493, 16
      %v704 = vshll.u32 %v493, 16
      %v706 = vrot.slane %v704, 1
      %v707 = vor.u32 %v702, %v706
      %v709 = vshll.u32 %v541, 16
      %v711 = vrot.slane %v709, 1
      %v712 = vsel %vm544, %v707, %v711
      %v714 = vshrl.u32 %v494, 16
      %v716 = vshll.u32 %v494, 16
      %v718 = vrot.slane %v716, 1
      %v719 = vor.u32 %v714, %v718
      %v721 = vshll.u32 %v542, 16
      %v723 = vrot.slane %v721, 1
      %v724 = vsel %vm544, %v719, %v723
      %v726 = vshrl.u32 %v495, 16
      %v728 = vshll.u32 %v495, 16
      %v730 = vrot.slane %v728, 1
      %v731 = vor.u32 %v726, %v730
      %v733 = vshll.u32 %v543, 16
      %v735 = vrot.slane %v733, 1
      %v736 = vsel %vm544, %v731, %v735
      %737 = vrot.lane.b32.xlu0 %v556, 4
      %v738 = vpop.permute.xlu0 %737
      %739 = vrot.lane.b32.xlu0 %v568, 4
      %v740 = vpop.permute.xlu0 %739
      %741 = vrot.lane.b32.xlu0 %v580, 4
      %v742 = vpop.permute.xlu0 %741
      %743 = vrot.lane.b32.xlu0 %v592, 4
      %v744 = vpop.permute.xlu0 %743
      %745 = vrot.lane.b32.xlu0 %v604, 4
      %v746 = vpop.permute.xlu0 %745
      %747 = vrot.lane.b32.xlu0 %v616, 4
      %v748 = vpop.permute.xlu0 %747
      %749 = vrot.lane.b32.xlu0 %v628, 4
      %v750 = vpop.permute.xlu0 %749
      %751 = vrot.lane.b32.xlu0 %v640, 4
      %v752 = vpop.permute.xlu0 %751
      %753 = vrot.lane.b32.xlu0 %v652, 4
      %v754 = vpop.permute.xlu0 %753
      %755 = vrot.lane.b32.xlu0 %v664, 4
      %v756 = vpop.permute.xlu0 %755
      %757 = vrot.lane.b32.xlu0 %v676, 4
      %v758 = vpop.permute.xlu0 %757
      %759 = vrot.lane.b32.xlu0 %v688, 4
      %v760 = vpop.permute.xlu0 %759
      %761 = vrot.lane.b32.xlu0 %v700, 4
      %v762 = vpop.permute.xlu0 %761
      %763 = vrot.lane.b32.xlu0 %v712, 4
      %v764 = vpop.permute.xlu0 %763
      %765 = vrot.lane.b32.xlu0 %v724, 4
      %v766 = vpop.permute.xlu0 %765
      %767 = vrot.lane.b32.xlu0 %v736, 4
      %v768 = vpop.permute.xlu0 %767
      %vm769 = vcmask 1046528
      %v770 = vrot.slane %v480, 1
      %v771 = vrot.slane %v528, 1
      %v772 = vsel %vm769, %v770, %v771
      %v773 = vrot.slane %v481, 1
      %v774 = vrot.slane %v529, 1
      %v775 = vsel %vm769, %v773, %v774
      %v776 = vrot.slane %v482, 1
      %v777 = vrot.slane %v530, 1
      %v778 = vsel %vm769, %v776, %v777
      %v779 = vrot.slane %v483, 1
      %v780 = vrot.slane %v531, 1
      %v781 = vsel %vm769, %v779, %v780
      %v782 = vrot.slane %v484, 1
      %v783 = vrot.slane %v532, 1
      %v784 = vsel %vm769, %v782, %v783
      %v785 = vrot.slane %v485, 1
      %v786 = vrot.slane %v533, 1
      %v787 = vsel %vm769, %v785, %v786
      %v788 = vrot.slane %v486, 1
      %v789 = vrot.slane %v534, 1
      %v790 = vsel %vm769, %v788, %v789
      %v791 = vrot.slane %v487, 1
      %v792 = vrot.slane %v535, 1
      %v793 = vsel %vm769, %v791, %v792
      %v794 = vrot.slane %v488, 1
      %v795 = vrot.slane %v536, 1
      %v796 = vsel %vm769, %v794, %v795
      %v797 = vrot.slane %v489, 1
      %v798 = vrot.slane %v537, 1
      %v799 = vsel %vm769, %v797, %v798
      %v800 = vrot.slane %v490, 1
      %v801 = vrot.slane %v538, 1
      %v802 = vsel %vm769, %v800, %v801
      %v803 = vrot.slane %v491, 1
      %v804 = vrot.slane %v539, 1
      %v805 = vsel %vm769, %v803, %v804
      %v806 = vrot.slane %v492, 1
      %v807 = vrot.slane %v540, 1
      %v808 = vsel %vm769, %v806, %v807
      %v809 = vrot.slane %v493, 1
      %v810 = vrot.slane %v541, 1
      %v811 = vsel %vm769, %v809, %v810
      %v812 = vrot.slane %v494, 1
      %v813 = vrot.slane %v542, 1
      %v814 = vsel %vm769, %v812, %v813
      %v815 = vrot.slane %v495, 1
      %v816 = vrot.slane %v543, 1
      %v817 = vsel %vm769, %v815, %v816
      %818 = vrot.lane.b32.xlu0 %v772, 8
      %v819 = vpop.permute.xlu0 %818
      %820 = vrot.lane.b32.xlu0 %v775, 8
      %v821 = vpop.permute.xlu0 %820
      %822 = vrot.lane.b32.xlu0 %v778, 8
      %v823 = vpop.permute.xlu0 %822
      %824 = vrot.lane.b32.xlu0 %v781, 8
      %v825 = vpop.permute.xlu0 %824
      %826 = vrot.lane.b32.xlu0 %v784, 8
      %v827 = vpop.permute.xlu0 %826
      %828 = vrot.lane.b32.xlu0 %v787, 8
      %v829 = vpop.permute.xlu0 %828
      %830 = vrot.lane.b32.xlu0 %v790, 8
      %v831 = vpop.permute.xlu0 %830
      %832 = vrot.lane.b32.xlu0 %v793, 8
      %v833 = vpop.permute.xlu0 %832
      %834 = vrot.lane.b32.xlu0 %v796, 8
      %v835 = vpop.permute.xlu0 %834
      %836 = vrot.lane.b32.xlu0 %v799, 8
      %v837 = vpop.permute.xlu0 %836
      %838 = vrot.lane.b32.xlu0 %v802, 8
      %v839 = vpop.permute.xlu0 %838
      %840 = vrot.lane.b32.xlu0 %v805, 8
      %v841 = vpop.permute.xlu0 %840
      %842 = vrot.lane.b32.xlu0 %v808, 8
      %v843 = vpop.permute.xlu0 %842
      %844 = vrot.lane.b32.xlu0 %v811, 8
      %v845 = vpop.permute.xlu0 %844
      %846 = vrot.lane.b32.xlu0 %v814, 8
      %v847 = vpop.permute.xlu0 %846
      %848 = vrot.lane.b32.xlu0 %v817, 8
      %v849 = vpop.permute.xlu0 %848
      %vm850 = vcmask 31744
      %v852 = vsel %vm850, %v480, %v738
      %v854 = vsel %vm850, %v481, %v740
      %v856 = vsel %vm850, %v482, %v742
      %v858 = vsel %vm850, %v483, %v744
      %v860 = vsel %vm850, %v484, %v746
      %v862 = vsel %vm850, %v485, %v748
      %v864 = vsel %vm850, %v486, %v750
      %v866 = vsel %vm850, %v487, %v752
      %v868 = vsel %vm850, %v488, %v754
      %v870 = vsel %vm850, %v489, %v756
      %v872 = vsel %vm850, %v490, %v758
      %v874 = vsel %vm850, %v491, %v760
      %v876 = vsel %vm850, %v492, %v762
      %v878 = vsel %vm850, %v493, %v764
      %v880 = vsel %vm850, %v494, %v766
      %v882 = vsel %vm850, %v495, %v768
      %vm883 = vcmask 64512
      %v885 = vsel %vm883, %v852, %v819
      %v887 = vsel %vm883, %v854, %v821
      %v889 = vsel %vm883, %v856, %v823
      %v891 = vsel %vm883, %v858, %v825
      %v893 = vsel %vm883, %v860, %v827
      %v895 = vsel %vm883, %v862, %v829
      %v897 = vsel %vm883, %v864, %v831
      %v899 = vsel %vm883, %v866, %v833
      %v901 = vsel %vm883, %v868, %v835
      %v903 = vsel %vm883, %v870, %v837
      %v905 = vsel %vm883, %v872, %v839
      %v907 = vsel %vm883, %v874, %v841
      %v909 = vsel %vm883, %v876, %v843
      %v911 = vsel %vm883, %v878, %v845
      %v913 = vsel %vm883, %v880, %v847
      %v915 = vsel %vm883, %v882, %v849
      %v916 = vld [vmem:[%s1] sm:$0xff]
      %v917 = vld [vmem:[%s1 + $0x8] sm:$0x33]
      %v920 = vunpack.c.l.b16 %v916
      %v921 = vunpack.c.h.b16 %v916
      %v922 = vunpack.c.l.b16 %v917
      %v923 = vunpack.c.h.b16 %v917
      %v924 = vpack.c.b16 %v922, %v920
      %v925 = vpack.c.b16 %v923, %v921
      %vm926 = vcmask 97280
      %v927 = vsel %vm926, %v885, 0
      %v929 = vsel %vm926, %v887, 0
      %v931 = vsel %vm926, %v889, 0
      %v933 = vsel %vm926, %v891, 0
      %v935 = vsel %vm926, %v893, 0
      %v937 = vsel %vm926, %v895, 0
      %v939 = vsel %vm926, %v897, 0
      %v941 = vsel %vm926, %v899, 0
      %v943 = vsel %vm926, %v901, 0
      %v945 = vsel %vm926, %v903, 0
      %v947 = vsel %vm926, %v905, 0
      %v949 = vsel %vm926, %v907, 0
      %v951 = vsel %vm926, %v909, 0
      %v953 = vsel %vm926, %v911, 0
      %v955 = vsel %vm926, %v913, 0
      %v957 = vsel %vm926, %v915, 0
      %vm959 = vcmask 1045504
      %v961 = vsel %vm959, %v924, 0
      %v964 = vsel %vm959, %v925, 0
      %966 = vmatprep.subr.bf16.mxu0 %v964
      %967 = vmatpush1.bf16.msra.mxu0 %v961
      %968 = vmatprep.subr.bf16.mxu0 0
      %969 = vmatpush1.bf16.msra.mxu0 0
      %970 = vmatprep.subr.bf16.mxu0 0
      %971 = vmatpush1.bf16.msra.mxu0 0
      %972 = vmatprep.subr.bf16.mxu0 0
      %973 = vmatpush1.bf16.msra.mxu0 0
      %974 = vmatprep.subr.bf16.mxu0 0
      %975 = vmatpush1.bf16.msra.mxu0 0
      %976 = vmatprep.subr.bf16.mxu0 0
      %977 = vmatpush1.bf16.msra.mxu0 0
      %978 = vmatprep.subr.bf16.mxu0 0
      %979 = vmatpush1.bf16.msra.mxu0 0
      %980 = vmatprep.subr.bf16.mxu0 0
      %981 = vmatpush1.bf16.msra.mxu0 0
      %982 = vmatprep.subr.bf16.mxu0 0
      %983 = vmatpush1.bf16.msra.mxu0 0
      %984 = vmatprep.subr.bf16.mxu0 0
      %985 = vmatpush1.bf16.msra.mxu0 0
      %986 = vmatprep.subr.bf16.mxu0 0
      %987 = vmatpush1.bf16.msra.mxu0 0
      %988 = vmatprep.subr.bf16.mxu0 0
      %989 = vmatpush1.bf16.msra.mxu0 0
      %990 = vmatprep.subr.bf16.mxu0 0
      %991 = vmatpush1.bf16.msra.mxu0 0
      %992 = vmatprep.subr.bf16.mxu0 0
      %993 = vmatpush1.bf16.msra.mxu0 0
      %994 = vmatprep.subr.bf16.mxu0 0
      %995 = vmatpush1.bf16.msra.mxu0 0
      %996 = vmatprep.subr.bf16.mxu0 0
      %997 = vmatpush1.bf16.msra.mxu0 0
      %998 = vmatprep.mubr.bf16.mxu0 0
      %999 = vmatmul.mubr.bf16.gmra.mrb[0].mxu0 %v927
      %v1000 = vpop.f32.mrb[0].mxu0
      %v1001 = vadd.f32 0.0, %v1000
      %v1002 = vpop.f32.mrb[0].mxu0
      %v1003 = vpop.f32.mrb[0].mxu0
      %v1004 = vadd.f32 0.0, %v1003
      %v1005 = vpop.f32.mrb[0].mxu0
      %1006 = vmatprep.mubr.bf16.mxu0 0
      %1007 = vmatmul.mubr.bf16.gmra.mrb[0].mxu0 %v929
      %v1008 = vpop.f32.mrb[0].mxu0
      %v1009 = vadd.f32 0.0, %v1008
      %v1010 = vpop.f32.mrb[0].mxu0
      %v1011 = vpop.f32.mrb[0].mxu0
      %v1012 = vadd.f32 0.0, %v1011
      %v1013 = vpop.f32.mrb[0].mxu0
      %1014 = vmatprep.mubr.bf16.mxu0 0
      %1015 = vmatmul.mubr.bf16.gmra.mrb[0].mxu0 %v931
      %v1016 = vpop.f32.mrb[0].mxu0
      %v1017 = vadd.f32 0.0, %v1016
      %v1018 = vpop.f32.mrb[0].mxu0
      %v1019 = vadd.f32 0.0, %v1018
      %v1020 = vpop.f32.mrb[0].mxu0
      %v1021 = vadd.f32 0.0, %v1020
      %v1022 = vpop.f32.mrb[0].mxu0
      %v1023 = vadd.f32 0.0, %v1022
      %1024 = vmatprep.mubr.bf16.mxu0 0
      %1025 = vmatmul.mubr.bf16.gmra.mrb[0].mxu0 %v933
      %v1026 = vpop.f32.mrb[0].mxu0
      %v1027 = vadd.f32 0.0, %v1026
      %v1028 = vpop.f32.mrb[0].mxu0
      %v1029 = vadd.f32 0.0, %v1028
      %v1030 = vpop.f32.mrb[0].mxu0
      %v1031 = vadd.f32 0.0, %v1030
      %v1032 = vpop.f32.mrb[0].mxu0
      %v1033 = vadd.f32 0.0, %v1032
      %1034 = vmatprep.mubr.bf16.mxu0 0
      %1035 = vmatmul.mubr.bf16.gmra.mrb[0].mxu0 %v935
      %v1036 = vpop.f32.mrb[0].mxu0
      %v1037 = vadd.f32 0.0, %v1036
      %v1038 = vpop.f32.mrb[0].mxu0
      %v1039 = vadd.f32 0.0, %v1038
      %v1040 = vpop.f32.mrb[0].mxu0
      %v1041 = vadd.f32 0.0, %v1040
      %v1042 = vpop.f32.mrb[0].mxu0
      %v1043 = vadd.f32 0.0, %v1042
      %1044 = vmatprep.mubr.bf16.mxu0 0
      %1045 = vmatmul.mubr.bf16.gmra.mrb[0].mxu0 %v937
      %v1046 = vpop.f32.mrb[0].mxu0
      %v1047 = vadd.f32 0.0, %v1046
      %v1048 = vpop.f32.mrb[0].mxu0
      %v1049 = vadd.f32 0.0, %v1048
      %v1050 = vpop.f32.mrb[0].mxu0
      %v1051 = vadd.f32 0.0, %v1050
      %v1052 = vpop.f32.mrb[0].mxu0
      %v1053 = vadd.f32 0.0, %v1052
      %1054 = vmatprep.mubr.bf16.mxu0 0
      %1055 = vmatmul.mubr.bf16.gmra.mrb[0].mxu0 %v939
      %v1056 = vpop.f32.mrb[0].mxu0
      %v1057 = vadd.f32 0.0, %v1056
      %v1058 = vpop.f32.mrb[0].mxu0
      %v1059 = vadd.f32 0.0, %v1058
      %v1060 = vpop.f32.mrb[0].mxu0
      %v1061 = vadd.f32 0.0, %v1060
      %v1062 = vpop.f32.mrb[0].mxu0
      %v1063 = vadd.f32 0.0, %v1062
      %1064 = vmatprep.mubr.bf16.mxu0 0
      %1065 = vmatmul.mubr.bf16.gmra.mrb[0].mxu0 %v941
      %v1066 = vpop.f32.mrb[0].mxu0
      %v1067 = vadd.f32 0.0, %v1066
      %v1068 = vpop.f32.mrb[0].mxu0
      %v1069 = vadd.f32 0.0, %v1068
      %v1070 = vpop.f32.mrb[0].mxu0
      %v1071 = vadd.f32 0.0, %v1070
      %v1072 = vpop.f32.mrb[0].mxu0
      %v1073 = vadd.f32 0.0, %v1072
      %1074 = vmatprep.mubr.bf16.mxu0 0
      %1075 = vmatmul.mubr.bf16.gmra.mrb[0].mxu0 %v943
      %v1076 = vpop.f32.mrb[0].mxu0
      %v1077 = vadd.f32 0.0, %v1076
      %v1078 = vpop.f32.mrb[0].mxu0
      %v1079 = vadd.f32 0.0, %v1078
      %v1080 = vpop.f32.mrb[0].mxu0
      %v1081 = vadd.f32 0.0, %v1080
      %v1082 = vpop.f32.mrb[0].mxu0
      %v1083 = vadd.f32 0.0, %v1082
      %1084 = vmatprep.mubr.bf16.mxu0 0
      %1085 = vmatmul.mubr.bf16.gmra.mrb[0].mxu0 %v945
      %v1086 = vpop.f32.mrb[0].mxu0
      %v1087 = vadd.f32 0.0, %v1086
      %v1088 = vpop.f32.mrb[0].mxu0
      %v1089 = vadd.f32 0.0, %v1088
      %v1090 = vpop.f32.mrb[0].mxu0
      %v1091 = vadd.f32 0.0, %v1090
      %v1092 = vpop.f32.mrb[0].mxu0
      %v1093 = vadd.f32 0.0, %v1092
      %1094 = vmatprep.mubr.bf16.mxu0 0
      %1095 = vmatmul.mubr.bf16.gmra.mrb[0].mxu0 %v947
      %v1096 = vpop.f32.mrb[0].mxu0
      %v1097 = vadd.f32 0.0, %v1096
      %v1098 = vpop.f32.mrb[0].mxu0
      %v1099 = vadd.f32 0.0, %v1098
      %v1100 = vpop.f32.mrb[0].mxu0
      %v1101 = vadd.f32 0.0, %v1100
      %v1102 = vpop.f32.mrb[0].mxu0
      %v1103 = vadd.f32 0.0, %v1102
      %1104 = vmatprep.mubr.bf16.mxu0 0
      %1105 = vmatmul.mubr.bf16.gmra.mrb[0].mxu0 %v949
      %v1106 = vpop.f32.mrb[0].mxu0
      %v1107 = vadd.f32 0.0, %v1106
      %v1108 = vpop.f32.mrb[0].mxu0
      %v1109 = vadd.f32 0.0, %v1108
      %v1110 = vpop.f32.mrb[0].mxu0
      %v1111 = vadd.f32 0.0, %v1110
      %v1112 = vpop.f32.mrb[0].mxu0
      %v1113 = vadd.f32 0.0, %v1112
      %1114 = vmatprep.mubr.bf16.mxu0 0
      %1115 = vmatmul.mubr.bf16.gmra.mrb[0].mxu0 %v951
      %v1116 = vpop.f32.mrb[0].mxu0
      %v1117 = vadd.f32 0.0, %v1116
      %v1118 = vpop.f32.mrb[0].mxu0
      %v1119 = vadd.f32 0.0, %v1118
      %v1120 = vpop.f32.mrb[0].mxu0
      %v1121 = vadd.f32 0.0, %v1120
      %v1122 = vpop.f32.mrb[0].mxu0
      %v1123 = vadd.f32 0.0, %v1122
      %1124 = vmatprep.mubr.bf16.mxu0 0
      %1125 = vmatmul.mubr.bf16.gmra.mrb[0].mxu0 %v953
      %v1126 = vpop.f32.mrb[0].mxu0
      %v1127 = vadd.f32 0.0, %v1126
      %v1128 = vpop.f32.mrb[0].mxu0
      %v1129 = vadd.f32 0.0, %v1128
      %v1130 = vpop.f32.mrb[0].mxu0
      %v1131 = vadd.f32 0.0, %v1130
      %v1132 = vpop.f32.mrb[0].mxu0
      %v1133 = vadd.f32 0.0, %v1132
      %1134 = vmatprep.mubr.bf16.mxu0 0
      %1135 = vmatmul.mubr.bf16.gmra.mrb[0].mxu0 %v955
      %v1136 = vpop.f32.mrb[0].mxu0
      %v1137 = vadd.f32 0.0, %v1136
      %v1138 = vpop.f32.mrb[0].mxu0
      %v1139 = vadd.f32 0.0, %v1138
      %v1140 = vpop.f32.mrb[0].mxu0
      %v1141 = vadd.f32 0.0, %v1140
      %v1142 = vpop.f32.mrb[0].mxu0
      %v1143 = vadd.f32 0.0, %v1142
      %1144 = vmatprep.mubr.bf16.mxu0 0
      %1145 = vmatmul.mubr.bf16.gmra.mrb[0].mxu0 %v957
      %v1146 = vpop.f32.mrb[0].mxu0
      %v1147 = vpop.f32.mrb[0].mxu0
      %v1148 = vadd.f32 0.0, %v1147
      %v1149 = vpop.f32.mrb[0].mxu0
      %v1150 = vpop.f32.mrb[0].mxu0
      %v1151 = vadd.f32 0.0, %v1150
      %1152 = vdwg.mxu0
      %1181 = vrot.lane.b32.xlu0 %v1009, 64
      %v1182 = vpop.permute.xlu0 %1181
      %1183 = vrot.lane.b32.xlu0 %v1012, 64
      %v1184 = vpop.permute.xlu0 %1183
      %1185 = vrot.lane.b32.xlu0 %v1017, 64
      %v1186 = vpop.permute.xlu0 %1185
      %1187 = vrot.lane.b32.xlu0 %v1021, 64
      %v1188 = vpop.permute.xlu0 %1187
      %1189 = vrot.lane.b32.xlu0 %v1027, 64
      %v1190 = vpop.permute.xlu0 %1189
      %1191 = vrot.lane.b32.xlu0 %v1031, 64
      %v1192 = vpop.permute.xlu0 %1191
      %1193 = vrot.lane.b32.xlu0 %v1037, 64
      %v1194 = vpop.permute.xlu0 %1193
      %1195 = vrot.lane.b32.xlu0 %v1041, 64
      %v1196 = vpop.permute.xlu0 %1195
      %1197 = vrot.lane.b32.xlu0 %v1047, 64
      %v1198 = vpop.permute.xlu0 %1197
      %1199 = vrot.lane.b32.xlu0 %v1051, 64
      %v1200 = vpop.permute.xlu0 %1199
      %1201 = vrot.lane.b32.xlu0 %v1057, 64
      %v1202 = vpop.permute.xlu0 %1201
      %1203 = vrot.lane.b32.xlu0 %v1061, 64
      %v1204 = vpop.permute.xlu0 %1203
      %1205 = vrot.lane.b32.xlu0 %v1067, 64
      %v1206 = vpop.permute.xlu0 %1205
      %1207 = vrot.lane.b32.xlu0 %v1071, 64
      %v1208 = vpop.permute.xlu0 %1207
      %1209 = vrot.lane.b32.xlu0 %v1077, 64
      %v1210 = vpop.permute.xlu0 %1209
      %1211 = vrot.lane.b32.xlu0 %v1081, 64
      %v1212 = vpop.permute.xlu0 %1211
      %1213 = vrot.lane.b32.xlu0 %v1087, 64
      %v1214 = vpop.permute.xlu0 %1213
      %1215 = vrot.lane.b32.xlu0 %v1091, 64
      %v1216 = vpop.permute.xlu0 %1215
      %1217 = vrot.lane.b32.xlu0 %v1097, 64
      %v1218 = vpop.permute.xlu0 %1217
      %1219 = vrot.lane.b32.xlu0 %v1101, 64
      %v1220 = vpop.permute.xlu0 %1219
      %1221 = vrot.lane.b32.xlu0 %v1107, 64
      %v1222 = vpop.permute.xlu0 %1221
      %1223 = vrot.lane.b32.xlu0 %v1111, 64
      %v1224 = vpop.permute.xlu0 %1223
      %1225 = vrot.lane.b32.xlu0 %v1117, 64
      %v1226 = vpop.permute.xlu0 %1225
      %1227 = vrot.lane.b32.xlu0 %v1121, 64
      %v1228 = vpop.permute.xlu0 %1227
      %1229 = vrot.lane.b32.xlu0 %v1127, 64
      %v1230 = vpop.permute.xlu0 %1229
      %1231 = vrot.lane.b32.xlu0 %v1131, 64
      %v1232 = vpop.permute.xlu0 %1231
      %1233 = vrot.lane.b32.xlu0 %v1137, 64
      %v1234 = vpop.permute.xlu0 %1233
      %1235 = vrot.lane.b32.xlu0 %v1141, 64
      %v1236 = vpop.permute.xlu0 %1235
      %v1265 = vadd.f32 %v1001, %v1182
      %v1266 = vadd.f32 %v1004, %v1184
      %v1267 = vadd.f32 %v1009, %v1186
      %v1268 = vadd.f32 %v1012, %v1188
      %v1269 = vadd.f32 %v1017, %v1190
      %v1270 = vadd.f32 %v1021, %v1192
      %v1271 = vadd.f32 %v1027, %v1194
      %v1272 = vadd.f32 %v1031, %v1196
      %v1273 = vadd.f32 %v1037, %v1198
      %v1274 = vadd.f32 %v1041, %v1200
      %v1275 = vadd.f32 %v1047, %v1202
      %v1276 = vadd.f32 %v1051, %v1204
      %v1277 = vadd.f32 %v1057, %v1206
      %v1278 = vadd.f32 %v1061, %v1208
      %v1279 = vadd.f32 %v1067, %v1210
      %v1280 = vadd.f32 %v1071, %v1212
      %v1281 = vadd.f32 %v1077, %v1214
      %v1282 = vadd.f32 %v1081, %v1216
      %v1283 = vadd.f32 %v1087, %v1218
      %v1284 = vadd.f32 %v1091, %v1220
      %v1285 = vadd.f32 %v1097, %v1222
      %v1286 = vadd.f32 %v1101, %v1224
      %v1287 = vadd.f32 %v1107, %v1226
      %v1288 = vadd.f32 %v1111, %v1228
      %v1289 = vadd.f32 %v1117, %v1230
      %v1290 = vadd.f32 %v1121, %v1232
      %v1291 = vadd.f32 %v1127, %v1234
      %v1292 = vadd.f32 %v1131, %v1236
      %v1293 = vadd.f32 %v1265, %v1019
      %v1294 = vadd.f32 %v1266, %v1023
      %v1295 = vadd.f32 %v1267, %v1029
      %v1296 = vadd.f32 %v1268, %v1033
      %v1297 = vadd.f32 %v1269, %v1039
      %v1298 = vadd.f32 %v1270, %v1043
      %v1299 = vadd.f32 %v1271, %v1049
      %v1300 = vadd.f32 %v1272, %v1053
      %v1301 = vadd.f32 %v1273, %v1059
      %v1302 = vadd.f32 %v1274, %v1063
      %v1303 = vadd.f32 %v1275, %v1069
      %v1304 = vadd.f32 %v1276, %v1073
      %v1305 = vadd.f32 %v1277, %v1079
      %v1306 = vadd.f32 %v1278, %v1083
      %v1307 = vadd.f32 %v1279, %v1089
      %v1308 = vadd.f32 %v1280, %v1093
      %v1309 = vadd.f32 %v1281, %v1099
      %v1310 = vadd.f32 %v1282, %v1103
      %v1311 = vadd.f32 %v1283, %v1109
      %v1312 = vadd.f32 %v1284, %v1113
      %v1313 = vadd.f32 %v1285, %v1119
      %v1314 = vadd.f32 %v1286, %v1123
      %v1315 = vadd.f32 %v1287, %v1129
      %v1316 = vadd.f32 %v1288, %v1133
      %v1317 = vadd.f32 %v1289, %v1139
      %v1318 = vadd.f32 %v1290, %v1143
      %v1319 = vadd.f32 %v1291, %v1148
      %v1320 = vadd.f32 %v1292, %v1151
      %v1321 = vld [vmem:[%s2] sm:$0x1]
      %v1323 = vlaneseq
      %v1324 = vshrl.u32 %v1323, 7
      %v1325 = vsub.s32 0, %v1324
      %v1326 = vrot.slane %v1321, %v1325
      %v1328 = vadd.f32 %v1293, %v1326
      %v1329 = vadd.f32 %v1294, %v1326
      %v1330 = vadd.f32 %v1295, %v1326
      %v1331 = vadd.f32 %v1296, %v1326
      %v1332 = vadd.f32 %v1297, %v1326
      %v1333 = vadd.f32 %v1298, %v1326
      %v1334 = vadd.f32 %v1299, %v1326
      %v1335 = vadd.f32 %v1300, %v1326
      %v1336 = vadd.f32 %v1301, %v1326
      %v1337 = vadd.f32 %v1302, %v1326
      %v1338 = vadd.f32 %v1303, %v1326
      %v1339 = vadd.f32 %v1304, %v1326
      %v1340 = vadd.f32 %v1305, %v1326
      %v1341 = vadd.f32 %v1306, %v1326
      %v1342 = vadd.f32 %v1307, %v1326
      %v1343 = vadd.f32 %v1308, %v1326
      %v1344 = vadd.f32 %v1309, %v1326
      %v1345 = vadd.f32 %v1310, %v1326
      %v1346 = vadd.f32 %v1311, %v1326
      %v1347 = vadd.f32 %v1312, %v1326
      %v1348 = vadd.f32 %v1313, %v1326
      %v1349 = vadd.f32 %v1314, %v1326
      %v1350 = vadd.f32 %v1315, %v1326
      %v1351 = vadd.f32 %v1316, %v1326
      %v1352 = vadd.f32 %v1317, %v1326
      %v1353 = vadd.f32 %v1318, %v1326
      %v1354 = vadd.f32 %v1319, %v1326
      %v1355 = vadd.f32 %v1320, %v1326
      %v1356 = vmax.f32 %v1328, 0.0
      %v1357 = vmax.f32 %v1329, 0.0
      %v1358 = vmax.f32 %v1330, 0.0
      %v1359 = vmax.f32 %v1331, 0.0
      %v1360 = vmax.f32 %v1332, 0.0
      %v1361 = vmax.f32 %v1333, 0.0
      %v1362 = vmax.f32 %v1334, 0.0
      %v1363 = vmax.f32 %v1335, 0.0
      %v1364 = vmax.f32 %v1336, 0.0
      %v1365 = vmax.f32 %v1337, 0.0
      %v1366 = vmax.f32 %v1338, 0.0
      %v1367 = vmax.f32 %v1339, 0.0
      %v1368 = vmax.f32 %v1340, 0.0
      %v1369 = vmax.f32 %v1341, 0.0
      %v1370 = vmax.f32 %v1342, 0.0
      %v1371 = vmax.f32 %v1343, 0.0
      %v1372 = vmax.f32 %v1344, 0.0
      %v1373 = vmax.f32 %v1345, 0.0
      %v1374 = vmax.f32 %v1346, 0.0
      %v1375 = vmax.f32 %v1347, 0.0
      %v1376 = vmax.f32 %v1348, 0.0
      %v1377 = vmax.f32 %v1349, 0.0
      %v1378 = vmax.f32 %v1350, 0.0
      %v1379 = vmax.f32 %v1351, 0.0
      %v1380 = vmax.f32 %v1352, 0.0
      %v1381 = vmax.f32 %v1353, 0.0
      %v1382 = vmax.f32 %v1354, 0.0
      %v1383 = vmax.f32 %v1355, 0.0
      %v1384 = vpack.c.bf16 %v1357, %v1356
      %v1385 = vpack.c.bf16 %v1359, %v1358
      %v1386 = vpack.c.bf16 %v1361, %v1360
      %v1387 = vpack.c.bf16 %v1363, %v1362
      %v1388 = vpack.c.bf16 %v1365, %v1364
      %v1389 = vpack.c.bf16 %v1367, %v1366
      %v1390 = vpack.c.bf16 %v1369, %v1368
      %v1391 = vpack.c.bf16 %v1371, %v1370
      %v1392 = vpack.c.bf16 %v1373, %v1372
      %v1393 = vpack.c.bf16 %v1375, %v1374
      %v1394 = vpack.c.bf16 %v1377, %v1376
      %v1395 = vpack.c.bf16 %v1379, %v1378
      %v1396 = vpack.c.bf16 %v1381, %v1380
      %v1397 = vpack.c.bf16 %v1383, %v1382
      %v1412 = vunpack.c.l.b16 %v1384
      %v1413 = vunpack.c.h.b16 %v1384
      %v1414 = vunpack.c.l.b16 %v1385
      %v1415 = vunpack.c.h.b16 %v1385
      %v1416 = vunpack.c.l.b16 %v1386
      %v1417 = vunpack.c.h.b16 %v1386
      %v1418 = vunpack.c.l.b16 %v1387
      %v1419 = vunpack.c.h.b16 %v1387
      %v1420 = vunpack.c.l.b16 %v1388
      %v1421 = vunpack.c.h.b16 %v1388
      %v1422 = vunpack.c.l.b16 %v1389
      %v1423 = vunpack.c.h.b16 %v1389
      %v1424 = vunpack.c.l.b16 %v1390
      %v1425 = vunpack.c.h.b16 %v1390
      %v1426 = vunpack.c.l.b16 %v1391
      %v1427 = vunpack.c.h.b16 %v1391
      %v1428 = vunpack.c.l.b16 %v1392
      %v1429 = vunpack.c.h.b16 %v1392
      %v1430 = vunpack.c.l.b16 %v1393
      %v1431 = vunpack.c.h.b16 %v1393
      %v1432 = vunpack.c.l.b16 %v1394
      %v1433 = vunpack.c.h.b16 %v1394
      %v1434 = vunpack.c.l.b16 %v1395
      %v1435 = vunpack.c.h.b16 %v1395
      %v1436 = vunpack.c.l.b16 %v1396
      %v1437 = vunpack.c.h.b16 %v1396
      %v1438 = vunpack.c.l.b16 %v1397
      %v1439 = vunpack.c.h.b16 %v1397
      %v1440 = vpack.c.b16 %v1412, %v1412
      %v1441 = vpack.c.b16 %v1413, %v1413
      %v1442 = vpack.c.b16 %v1414, %v1414
      %v1443 = vpack.c.b16 %v1415, %v1415
      %v1444 = vpack.c.b16 %v1416, %v1416
      %v1445 = vpack.c.b16 %v1417, %v1417
      %v1446 = vpack.c.b16 %v1418, %v1418
      %v1447 = vpack.c.b16 %v1419, %v1419
      %v1448 = vpack.c.b16 %v1420, %v1420
      %v1449 = vpack.c.b16 %v1421, %v1421
      %v1450 = vpack.c.b16 %v1422, %v1422
      %v1451 = vpack.c.b16 %v1423, %v1423
      %v1452 = vpack.c.b16 %v1424, %v1424
      %v1453 = vpack.c.b16 %v1425, %v1425
      %v1454 = vpack.c.b16 %v1426, %v1426
      %v1455 = vpack.c.b16 %v1427, %v1427
      %v1456 = vpack.c.b16 %v1428, %v1428
      %v1457 = vpack.c.b16 %v1429, %v1429
      %v1458 = vpack.c.b16 %v1430, %v1430
      %v1459 = vpack.c.b16 %v1431, %v1431
      %v1460 = vpack.c.b16 %v1432, %v1432
      %v1461 = vpack.c.b16 %v1433, %v1433
      %v1462 = vpack.c.b16 %v1434, %v1434
      %v1463 = vpack.c.b16 %v1435, %v1435
      %v1464 = vpack.c.b16 %v1436, %v1436
      %v1465 = vpack.c.b16 %v1437, %v1437
      %v1466 = vpack.c.b16 %v1438, %v1438
      %v1467 = vpack.c.b16 %v1439, %v1439
      %vm1468 = vsmask.f32 256
      %vm1469 = vsmask.f32 4368
      %vm1470 = vmor %vm1468, %vm1469
      %v1472 = vshrl.u32 %v1440, 16
      %v1474 = vrot.slane %v1472, 7
      %v1475 = vshll.u32 %v1440, 16
      %v1477 = vor.u32 %v1474, %v1475
      %v1478 = vrot.slane %v1474, 4
      %v1480 = vshrl.u32 %v1441, 16
      %v1482 = vrot.slane %v1480, 7
      %v1483 = vshll.u32 %v1441, 16
      %v1485 = vor.u32 %v1482, %v1483
      %v1486 = vsel %vm1470, %v1478, %v1485
      %v1487 = vrot.slane %v1482, 4
      %v1489 = vshrl.u32 %v1442, 16
      %v1491 = vrot.slane %v1489, 7
      %v1492 = vshll.u32 %v1442, 16
      %v1494 = vor.u32 %v1491, %v1492
      %v1495 = vrot.slane %v1491, 4
      %v1497 = vshrl.u32 %v1443, 16
      %v1499 = vrot.slane %v1497, 7
      %v1500 = vshll.u32 %v1443, 16
      %v1502 = vor.u32 %v1499, %v1500
      %v1503 = vsel %vm1470, %v1495, %v1502
      %v1504 = vrot.slane %v1499, 4
      %v1506 = vshrl.u32 %v1444, 16
      %v1508 = vrot.slane %v1506, 7
      %v1509 = vshll.u32 %v1444, 16
      %v1511 = vor.u32 %v1508, %v1509
      %v1512 = vrot.slane %v1508, 4
      %v1514 = vshrl.u32 %v1445, 16
      %v1516 = vrot.slane %v1514, 7
      %v1517 = vshll.u32 %v1445, 16
      %v1519 = vor.u32 %v1516, %v1517
      %v1520 = vsel %vm1470, %v1512, %v1519
      %v1521 = vrot.slane %v1516, 4
      %v1523 = vshrl.u32 %v1446, 16
      %v1525 = vrot.slane %v1523, 7
      %v1526 = vshll.u32 %v1446, 16
      %v1528 = vor.u32 %v1525, %v1526
      %v1529 = vrot.slane %v1525, 4
      %v1531 = vshrl.u32 %v1447, 16
      %v1533 = vrot.slane %v1531, 7
      %v1534 = vshll.u32 %v1447, 16
      %v1536 = vor.u32 %v1533, %v1534
      %v1537 = vsel %vm1470, %v1529, %v1536
      %v1538 = vrot.slane %v1533, 4
      %v1540 = vshrl.u32 %v1448, 16
      %v1542 = vrot.slane %v1540, 7
      %v1543 = vshll.u32 %v1448, 16
      %v1545 = vor.u32 %v1542, %v1543
      %v1546 = vrot.slane %v1542, 4
      %v1548 = vshrl.u32 %v1449, 16
      %v1550 = vrot.slane %v1548, 7
      %v1551 = vshll.u32 %v1449, 16
      %v1553 = vor.u32 %v1550, %v1551
      %v1554 = vsel %vm1470, %v1546, %v1553
      %v1555 = vrot.slane %v1550, 4
      %v1557 = vshrl.u32 %v1450, 16
      %v1559 = vrot.slane %v1557, 7
      %v1560 = vshll.u32 %v1450, 16
      %v1562 = vor.u32 %v1559, %v1560
      %v1563 = vrot.slane %v1559, 4
      %v1565 = vshrl.u32 %v1451, 16
      %v1567 = vrot.slane %v1565, 7
      %v1568 = vshll.u32 %v1451, 16
      %v1570 = vor.u32 %v1567, %v1568
      %v1571 = vsel %vm1470, %v1563, %v1570
      %v1572 = vrot.slane %v1567, 4
      %v1574 = vshrl.u32 %v1452, 16
      %v1576 = vrot.slane %v1574, 7
      %v1577 = vshll.u32 %v1452, 16
      %v1579 = vor.u32 %v1576, %v1577
      %v1580 = vrot.slane %v1576, 4
      %v1582 = vshrl.u32 %v1453, 16
      %v1584 = vrot.slane %v1582, 7
      %v1585 = vshll.u32 %v1453, 16
      %v1587 = vor.u32 %v1584, %v1585
      %v1588 = vsel %vm1470, %v1580, %v1587
      %v1589 = vrot.slane %v1584, 4
      %v1591 = vshrl.u32 %v1454, 16
      %v1593 = vrot.slane %v1591, 7
      %v1594 = vshll.u32 %v1454, 16
      %v1596 = vor.u32 %v1593, %v1594
      %v1597 = vrot.slane %v1593, 4
      %v1599 = vshrl.u32 %v1455, 16
      %v1601 = vrot.slane %v1599, 7
      %v1602 = vshll.u32 %v1455, 16
      %v1604 = vor.u32 %v1601, %v1602
      %v1605 = vsel %vm1470, %v1597, %v1604
      %v1606 = vrot.slane %v1601, 4
      %v1608 = vshrl.u32 %v1456, 16
      %v1610 = vrot.slane %v1608, 7
      %v1611 = vshll.u32 %v1456, 16
      %v1613 = vor.u32 %v1610, %v1611
      %v1614 = vrot.slane %v1610, 4
      %v1616 = vshrl.u32 %v1457, 16
      %v1618 = vrot.slane %v1616, 7
      %v1619 = vshll.u32 %v1457, 16
      %v1621 = vor.u32 %v1618, %v1619
      %v1622 = vsel %vm1470, %v1614, %v1621
      %v1623 = vrot.slane %v1618, 4
      %v1625 = vshrl.u32 %v1458, 16
      %v1627 = vrot.slane %v1625, 7
      %v1628 = vshll.u32 %v1458, 16
      %v1630 = vor.u32 %v1627, %v1628
      %v1631 = vrot.slane %v1627, 4
      %v1633 = vshrl.u32 %v1459, 16
      %v1635 = vrot.slane %v1633, 7
      %v1636 = vshll.u32 %v1459, 16
      %v1638 = vor.u32 %v1635, %v1636
      %v1639 = vsel %vm1470, %v1631, %v1638
      %v1640 = vrot.slane %v1635, 4
      %v1642 = vshrl.u32 %v1460, 16
      %v1644 = vrot.slane %v1642, 7
      %v1645 = vshll.u32 %v1460, 16
      %v1647 = vor.u32 %v1644, %v1645
      %v1648 = vrot.slane %v1644, 4
      %v1650 = vshrl.u32 %v1461, 16
      %v1652 = vrot.slane %v1650, 7
      %v1653 = vshll.u32 %v1461, 16
      %v1655 = vor.u32 %v1652, %v1653
      %v1656 = vsel %vm1470, %v1648, %v1655
      %v1657 = vrot.slane %v1652, 4
      %v1659 = vshrl.u32 %v1462, 16
      %v1661 = vrot.slane %v1659, 7
      %v1662 = vshll.u32 %v1462, 16
      %v1664 = vor.u32 %v1661, %v1662
      %v1665 = vrot.slane %v1661, 4
      %v1667 = vshrl.u32 %v1463, 16
      %v1669 = vrot.slane %v1667, 7
      %v1670 = vshll.u32 %v1463, 16
      %v1672 = vor.u32 %v1669, %v1670
      %v1673 = vsel %vm1470, %v1665, %v1672
      %v1674 = vrot.slane %v1669, 4
      %v1676 = vshrl.u32 %v1464, 16
      %v1678 = vrot.slane %v1676, 7
      %v1679 = vshll.u32 %v1464, 16
      %v1681 = vor.u32 %v1678, %v1679
      %v1682 = vrot.slane %v1678, 4
      %v1684 = vshrl.u32 %v1465, 16
      %v1686 = vrot.slane %v1684, 7
      %v1687 = vshll.u32 %v1465, 16
      %v1689 = vor.u32 %v1686, %v1687
      %v1690 = vsel %vm1470, %v1682, %v1689
      %v1691 = vrot.slane %v1686, 4
      %v1693 = vshrl.u32 %v1466, 16
      %v1695 = vrot.slane %v1693, 7
      %v1696 = vshll.u32 %v1466, 16
      %v1698 = vor.u32 %v1695, %v1696
      %v1699 = vrot.slane %v1695, 4
      %v1701 = vshrl.u32 %v1467, 16
      %v1703 = vrot.slane %v1701, 7
      %v1704 = vshll.u32 %v1467, 16
      %v1706 = vor.u32 %v1703, %v1704
      %v1707 = vsel %vm1470, %v1699, %v1706
      %v1708 = vrot.slane %v1703, 4
      %vm1751 = vcmask 519168
      %vm1752 = vsmask.f32 7938
      %vm1753 = vmand %vm1751, %vm1752
      %v1754 = vld [vmem:[#allocation2] sm:$0xf]
      %v1755 = vsel %vm1753, %v1477, %v1754
      %1756 = vst [vmem:[#allocation2] sm:$0xf] %v1755
      %vm1757 = vcmask 519168
      %1758 = vst.msk [vmem:[#allocation2 + $0x4] sm:$0xf] %vm1757, %v1486
      %vm1759 = vcmask 516096
      %vm1760 = vmand %vm1759, %vm1468
      %v1761 = vld [vmem:[#allocation2 + $0x8] sm:$0x1]
      %v1762 = vsel %vm1760, %v1487, %v1761
      %1763 = vst [vmem:[#allocation2 + $0x8] sm:$0x1] %v1762
      %v1764 = vld [vmem:[#allocation2 + $0xc] sm:$0xf]
      %v1765 = vsel %vm1753, %v1494, %v1764
      %1766 = vst [vmem:[#allocation2 + $0xc] sm:$0xf] %v1765
      %1767 = vst.msk [vmem:[#allocation2 + $0x10] sm:$0xf] %vm1757, %v1503
      %v1768 = vld [vmem:[#allocation2 + $0x14] sm:$0x1]
      %v1769 = vsel %vm1760, %v1504, %v1768
      %1770 = vst [vmem:[#allocation2 + $0x14] sm:$0x1] %v1769
      %v1771 = vld [vmem:[#allocation2 + $0x18] sm:$0xf]
      %v1772 = vsel %vm1753, %v1511, %v1771
      %1773 = vst [vmem:[#allocation2 + $0x18] sm:$0xf] %v1772
      %1774 = vst.msk [vmem:[#allocation2 + $0x1c] sm:$0xf] %vm1757, %v1520
      %v1775 = vld [vmem:[#allocation2 + $0x20] sm:$0x1]
      %v1776 = vsel %vm1760, %v1521, %v1775
      %1777 = vst [vmem:[#allocation2 + $0x20] sm:$0x1] %v1776
      %v1778 = vld [vmem:[#allocation2 + $0x24] sm:$0xf]
      %v1779 = vsel %vm1753, %v1528, %v1778
      %1780 = vst [vmem:[#allocation2 + $0x24] sm:$0xf] %v1779
      %1781 = vst.msk [vmem:[#allocation2 + $0x28] sm:$0xf] %vm1757, %v1537
      %v1782 = vld [vmem:[#allocation2 + $0x2c] sm:$0x1]
      %v1783 = vsel %vm1760, %v1538, %v1782
      %1784 = vst [vmem:[#allocation2 + $0x2c] sm:$0x1] %v1783
      %v1785 = vld [vmem:[#allocation2 + $0x30] sm:$0xf]
      %v1786 = vsel %vm1753, %v1545, %v1785
      %1787 = vst [vmem:[#allocation2 + $0x30] sm:$0xf] %v1786
      %1788 = vst.msk [vmem:[#allocation2 + $0x34] sm:$0xf] %vm1757, %v1554
      %v1789 = vld [vmem:[#allocation2 + $0x38] sm:$0x1]
      %v1790 = vsel %vm1760, %v1555, %v1789
      %1791 = vst [vmem:[#allocation2 + $0x38] sm:$0x1] %v1790
      %v1792 = vld [vmem:[#allocation2 + $0x3c] sm:$0xf]
      %v1793 = vsel %vm1753, %v1562, %v1792
      %1794 = vst [vmem:[#allocation2 + $0x3c] sm:$0xf] %v1793
      %1795 = vst.msk [vmem:[#allocation2 + $0x40] sm:$0xf] %vm1757, %v1571
      %v1796 = vld [vmem:[#allocation2 + $0x44] sm:$0x1]
      %v1797 = vsel %vm1760, %v1572, %v1796
      %1798 = vst [vmem:[#allocation2 + $0x44] sm:$0x1] %v1797
      %v1799 = vld [vmem:[#allocation2 + $0x48] sm:$0xf]
      %v1800 = vsel %vm1753, %v1579, %v1799
      %1801 = vst [vmem:[#allocation2 + $0x48] sm:$0xf] %v1800
      %1802 = vst.msk [vmem:[#allocation2 + $0x4c] sm:$0xf] %vm1757, %v1588
      %v1803 = vld [vmem:[#allocation2 + $0x50] sm:$0x1]
      %v1804 = vsel %vm1760, %v1589, %v1803
      %1805 = vst [vmem:[#allocation2 + $0x50] sm:$0x1] %v1804
      %v1806 = vld [vmem:[#allocation2 + $0x54] sm:$0xf]
      %v1807 = vsel %vm1753, %v1596, %v1806
      %1808 = vst [vmem:[#allocation2 + $0x54] sm:$0xf] %v1807
      %1809 = vst.msk [vmem:[#allocation2 + $0x58] sm:$0xf] %vm1757, %v1605
      %v1810 = vld [vmem:[#allocation2 + $0x5c] sm:$0x1]
      %v1811 = vsel %vm1760, %v1606, %v1810
      %1812 = vst [vmem:[#allocation2 + $0x5c] sm:$0x1] %v1811
      %v1813 = vld [vmem:[#allocation2 + $0x60] sm:$0xf]
      %v1814 = vsel %vm1753, %v1613, %v1813
      %1815 = vst [vmem:[#allocation2 + $0x60] sm:$0xf] %v1814
      %1816 = vst.msk [vmem:[#allocation2 + $0x64] sm:$0xf] %vm1757, %v1622
      %v1817 = vld [vmem:[#allocation2 + $0x68] sm:$0x1]
      %v1818 = vsel %vm1760, %v1623, %v1817
      %1819 = vst [vmem:[#allocation2 + $0x68] sm:$0x1] %v1818
      %v1820 = vld [vmem:[#allocation2 + $0x6c] sm:$0xf]
      %v1821 = vsel %vm1753, %v1630, %v1820
      %1822 = vst [vmem:[#allocation2 + $0x6c] sm:$0xf] %v1821
      %1823 = vst.msk [vmem:[#allocation2 + $0x70] sm:$0xf] %vm1757, %v1639
      %v1824 = vld [vmem:[#allocation2 + $0x74] sm:$0x1]
      %v1825 = vsel %vm1760, %v1640, %v1824
      %1826 = vst [vmem:[#allocation2 + $0x74] sm:$0x1] %v1825
      %v1827 = vld [vmem:[#allocation2 + $0x78] sm:$0xf]
      %v1828 = vsel %vm1753, %v1647, %v1827
      %1829 = vst [vmem:[#allocation2 + $0x78] sm:$0xf] %v1828
      %1830 = vst.msk [vmem:[#allocation2 + $0x7c] sm:$0xf] %vm1757, %v1656
      %v1831 = vld [vmem:[#allocation2 + $0x80] sm:$0x1]
      %v1832 = vsel %vm1760, %v1657, %v1831
      %1833 = vst [vmem:[#allocation2 + $0x80] sm:$0x1] %v1832
      %v1834 = vld [vmem:[#allocation2 + $0x84] sm:$0xf]
      %v1835 = vsel %vm1753, %v1664, %v1834
      %1836 = vst [vmem:[#allocation2 + $0x84] sm:$0xf] %v1835
      %1837 = vst.msk [vmem:[#allocation2 + $0x88] sm:$0xf] %vm1757, %v1673
      %v1838 = vld [vmem:[#allocation2 + $0x8c] sm:$0x1]
      %v1839 = vsel %vm1760, %v1674, %v1838
      %1840 = vst [vmem:[#allocation2 + $0x8c] sm:$0x1] %v1839
      %v1841 = vld [vmem:[#allocation2 + $0x90] sm:$0xf]
      %v1842 = vsel %vm1753, %v1681, %v1841
      %1843 = vst [vmem:[#allocation2 + $0x90] sm:$0xf] %v1842
      %1844 = vst.msk [vmem:[#allocation2 + $0x94] sm:$0xf] %vm1757, %v1690
      %v1845 = vld [vmem:[#allocation2 + $0x98] sm:$0x1]
      %v1846 = vsel %vm1760, %v1691, %v1845
      %1847 = vst [vmem:[#allocation2 + $0x98] sm:$0x1] %v1846
      %v1848 = vld [vmem:[#allocation2 + $0x9c] sm:$0xf]
      %v1849 = vsel %vm1753, %v1698, %v1848
      %1850 = vst [vmem:[#allocation2 + $0x9c] sm:$0xf] %v1849
      %1851 = vst.msk [vmem:[#allocation2 + $0xa0] sm:$0xf] %vm1757, %v1707
      %v1852 = vld [vmem:[#allocation2 + $0xa4] sm:$0x1]
      %v1853 = vsel %vm1760, %v1708, %v1852
      %1854 = vst [vmem:[#allocation2 + $0xa4] sm:$0x1] %v1853
      %v1855 = vld [vmem:[#allocation2] sm:$0x1]
      %v1856 = vsel %vm1760, 0, %v1855
      %1857 = vst [vmem:[#allocation2] sm:$0x1] %v1856
      %v1858 = vld [vmem:[#allocation2 + $0xc] sm:$0x1]
      %v1859 = vsel %vm1760, 0, %v1858
      %1860 = vst [vmem:[#allocation2 + $0xc] sm:$0x1] %v1859
      %v1861 = vld [vmem:[#allocation2 + $0x18] sm:$0x1]
      %v1862 = vsel %vm1760, 0, %v1861
      %1863 = vst [vmem:[#allocation2 + $0x18] sm:$0x1] %v1862
      %v1864 = vld [vmem:[#allocation2 + $0x24] sm:$0x1]
      %v1865 = vsel %vm1760, 0, %v1864
      %1866 = vst [vmem:[#allocation2 + $0x24] sm:$0x1] %v1865
      %v1867 = vld [vmem:[#allocation2 + $0x30] sm:$0x1]
      %v1868 = vsel %vm1760, 0, %v1867
      %1869 = vst [vmem:[#allocation2 + $0x30] sm:$0x1] %v1868
      %v1870 = vld [vmem:[#allocation2 + $0x3c] sm:$0x1]
      %v1871 = vsel %vm1760, 0, %v1870
      %1872 = vst [vmem:[#allocation2 + $0x3c] sm:$0x1] %v1871
      %v1873 = vld [vmem:[#allocation2 + $0x48] sm:$0x1]
      %v1874 = vsel %vm1760, 0, %v1873
      %1875 = vst [vmem:[#allocation2 + $0x48] sm:$0x1] %v1874
      %v1876 = vld [vmem:[#allocation2 + $0x54] sm:$0x1]
      %v1877 = vsel %vm1760, 0, %v1876
      %1878 = vst [vmem:[#allocation2 + $0x54] sm:$0x1] %v1877
      %v1879 = vld [vmem:[#allocation2 + $0x60] sm:$0x1]
      %v1880 = vsel %vm1760, 0, %v1879
      %1881 = vst [vmem:[#allocation2 + $0x60] sm:$0x1] %v1880
      %v1882 = vld [vmem:[#allocation2 + $0x6c] sm:$0x1]
      %v1883 = vsel %vm1760, 0, %v1882
      %1884 = vst [vmem:[#allocation2 + $0x6c] sm:$0x1] %v1883
      %v1885 = vld [vmem:[#allocation2 + $0x78] sm:$0x1]
      %v1886 = vsel %vm1760, 0, %v1885
      %1887 = vst [vmem:[#allocation2 + $0x78] sm:$0x1] %v1886
      %v1888 = vld [vmem:[#allocation2 + $0x84] sm:$0x1]
      %v1889 = vsel %vm1760, 0, %v1888
      %1890 = vst [vmem:[#allocation2 + $0x84] sm:$0x1] %v1889
      %v1891 = vld [vmem:[#allocation2 + $0x90] sm:$0x1]
      %v1892 = vsel %vm1760, 0, %v1891
      %1893 = vst [vmem:[#allocation2 + $0x90] sm:$0x1] %v1892
      %v1894 = vld [vmem:[#allocation2 + $0x9c] sm:$0x1]
      %v1895 = vsel %vm1760, 0, %v1894
      %1896 = vst [vmem:[#allocation2 + $0x9c] sm:$0x1] %v1895
      %vm1897 = vmand %vm1759, %vm1752
      %v1898 = vld [vmem:[#allocation2 + $0x8] sm:$0x1]
      %v1899 = vsel %vm1897, 0, %v1898
      %1900 = vst [vmem:[#allocation2 + $0x8] sm:$0x1] %v1899
      %v1901 = vld [vmem:[#allocation2 + $0x14] sm:$0x1]
      %v1902 = vsel %vm1897, 0, %v1901
      %1903 = vst [vmem:[#allocation2 + $0x14] sm:$0x1] %v1902
      %v1904 = vld [vmem:[#allocation2 + $0x20] sm:$0x1]
      %v1905 = vsel %vm1897, 0, %v1904
      %1906 = vst [vmem:[#allocation2 + $0x20] sm:$0x1] %v1905
      %v1907 = vld [vmem:[#allocation2 + $0x2c] sm:$0x1]
      %v1908 = vsel %vm1897, 0, %v1907
      %1909 = vst [vmem:[#allocation2 + $0x2c] sm:$0x1] %v1908
      %v1910 = vld [vmem:[#allocation2 + $0x38] sm:$0x1]
      %v1911 = vsel %vm1897, 0, %v1910
      %1912 = vst [vmem:[#allocation2 + $0x38] sm:$0x1] %v1911
      %v1913 = vld [vmem:[#allocation2 + $0x44] sm:$0x1]
      %v1914 = vsel %vm1897, 0, %v1913
      %1915 = vst [vmem:[#allocation2 + $0x44] sm:$0x1] %v1914
      %v1916 = vld [vmem:[#allocation2 + $0x50] sm:$0x1]
      %v1917 = vsel %vm1897, 0, %v1916
      %1918 = vst [vmem:[#allocation2 + $0x50] sm:$0x1] %v1917
      %v1919 = vld [vmem:[#allocation2 + $0x5c] sm:$0x1]
      %v1920 = vsel %vm1897, 0, %v1919
      %1921 = vst [vmem:[#allocation2 + $0x5c] sm:$0x1] %v1920
      %v1922 = vld [vmem:[#allocation2 + $0x68] sm:$0x1]
      %v1923 = vsel %vm1897, 0, %v1922
      %1924 = vst [vmem:[#allocation2 + $0x68] sm:$0x1] %v1923
      %v1925 = vld [vmem:[#allocation2 + $0x74] sm:$0x1]
      %v1926 = vsel %vm1897, 0, %v1925
      %1927 = vst [vmem:[#allocation2 + $0x74] sm:$0x1] %v1926
      %v1928 = vld [vmem:[#allocation2 + $0x80] sm:$0x1]
      %v1929 = vsel %vm1897, 0, %v1928
      %1930 = vst [vmem:[#allocation2 + $0x80] sm:$0x1] %v1929
      %v1931 = vld [vmem:[#allocation2 + $0x8c] sm:$0x1]
      %v1932 = vsel %vm1897, 0, %v1931
      %1933 = vst [vmem:[#allocation2 + $0x8c] sm:$0x1] %v1932
      %v1934 = vld [vmem:[#allocation2 + $0x98] sm:$0x1]
      %v1935 = vsel %vm1897, 0, %v1934
      %1936 = vst [vmem:[#allocation2 + $0x98] sm:$0x1] %v1935
      %v1937 = vld [vmem:[#allocation2 + $0xa4] sm:$0x1]
      %v1938 = vsel %vm1897, 0, %v1937
      %1939 = vst [vmem:[#allocation2 + $0xa4] sm:$0x1] %v1938
      %p1940 = scmp.eq.s32.totalorder %s27, 0
      // Predicated region
      $region57: #{_lambda_.1} parent=55 // pred_check
        %p1941 = pneg %p1940
      $region58: #{_lambda_.1} parent=55 // pred_check_branch
        %1943 = sbr.rel (%p1941) target = $region60
      $region59: #{_lambda_.1} parent=55 // pred_region
        %1944 = vst.msk [vmem:[#allocation2] sm:$0xf] %vm1757, 0
        %1945 = vst.msk [vmem:[#allocation2 + $0x4] sm:$0xf] %vm1757, 0
        %vm1946 = vcmask 516096
        %1947 = vst.msk [vmem:[#allocation2 + $0x8] sm:$0x1] %vm1946, 0
        %1948 = vst.msk [vmem:[#allocation2 + $0xc] sm:$0xf] %vm1757, 0
        %1949 = vst.msk [vmem:[#allocation2 + $0x10] sm:$0xf] %vm1757, 0
        %1950 = vst.msk [vmem:[#allocation2 + $0x14] sm:$0x1] %vm1946, 0
        %1951 = vst.msk [vmem:[#allocation2 + $0x18] sm:$0xf] %vm1757, 0
        %1952 = vst.msk [vmem:[#allocation2 + $0x1c] sm:$0xf] %vm1757, 0
        %1953 = vst.msk [vmem:[#allocation2 + $0x20] sm:$0x1] %vm1946, 0
      $region60: #{_lambda_.1} parent=55 // pred_fallthru
        _
      %p1954 = scmp.eq.s32.totalorder %s27, 1
      // Predicated region
      $region61: #{_lambda_.1} parent=55 // pred_check
        %p1955 = pneg %p1954
      $region62: #{_lambda_.1} parent=55 // pred_check_branch
        %1957 = sbr.rel (%p1955) target = $region64
      $region63: #{_lambda_.1} parent=55 // pred_region
        %s1958 = scalar_lea.vmem [#allocation2], 132
        %1959 = vst.msk [vmem:[%s1958] sm:$0xf] %vm1757, 0
        %1960 = vst.msk [vmem:[%s1958 + $0x4] sm:$0xf] %vm1757, 0
        %vm1961 = vcmask 516096
        %1962 = vst.msk [vmem:[%s1958 + $0x8] sm:$0x1] %vm1961, 0
        %1963 = vst.msk [vmem:[%s1958 + $0xc] sm:$0xf] %vm1757, 0
        %1964 = vst.msk [vmem:[%s1958 + $0x10] sm:$0xf] %vm1757, 0
        %1965 = vst.msk [vmem:[%s1958 + $0x14] sm:$0x1] %vm1961, 0
        %1966 = vst.msk [vmem:[%s1958 + $0x18] sm:$0xf] %vm1757, 0
        %1967 = vst.msk [vmem:[%s1958 + $0x1c] sm:$0xf] %vm1757, 0
        %1968 = vst.msk [vmem:[%s1958 + $0x20] sm:$0x1] %vm1961, 0
      $region64: #{_lambda_.1} parent=55 // pred_fallthru
        _
      %v1969 = vld [vmem:[#allocation2] sm:$0xf]
      %v1970 = vld [vmem:[#allocation2 + $0x4] sm:$0xf]
      %v1971 = vld [vmem:[#allocation2 + $0x8] sm:$0x1]
      %v1972 = vld [vmem:[#allocation2 + $0xc] sm:$0xf]
      %v1973 = vld [vmem:[#allocation2 + $0x10] sm:$0xf]
      %v1974 = vld [vmem:[#allocation2 + $0x14] sm:$0x1]
      %v1975 = vld [vmem:[#allocation2 + $0x18] sm:$0xf]
      %v1976 = vld [vmem:[#allocation2 + $0x1c] sm:$0xf]
      %v1977 = vld [vmem:[#allocation2 + $0x20] sm:$0x1]
      %v1978 = vld [vmem:[#allocation2 + $0x24] sm:$0xf]
      %v1979 = vld [vmem:[#allocation2 + $0x28] sm:$0xf]
      %v1980 = vld [vmem:[#allocation2 + $0x2c] sm:$0x1]
      %v1981 = vld [vmem:[#allocation2 + $0x30] sm:$0xf]
      %v1982 = vld [vmem:[#allocation2 + $0x34] sm:$0xf]
      %v1983 = vld [vmem:[#allocation2 + $0x38] sm:$0x1]
      %v1984 = vld [vmem:[#allocation2 + $0x3c] sm:$0xf]
      %v1985 = vld [vmem:[#allocation2 + $0x40] sm:$0xf]
      %v1986 = vld [vmem:[#allocation2 + $0x44] sm:$0x1]
      %v1987 = vld [vmem:[#allocation2 + $0x48] sm:$0xf]
      %v1988 = vld [vmem:[#allocation2 + $0x4c] sm:$0xf]
      %v1989 = vld [vmem:[#allocation2 + $0x50] sm:$0x1]
      %v1990 = vld [vmem:[#allocation2 + $0x54] sm:$0xf]
      %v1991 = vld [vmem:[#allocation2 + $0x58] sm:$0xf]
      %v1992 = vld [vmem:[#allocation2 + $0x5c] sm:$0x1]
      %v1993 = vld [vmem:[#allocation2 + $0x60] sm:$0xf]
      %v1994 = vld [vmem:[#allocation2 + $0x64] sm:$0xf]
      %v1995 = vld [vmem:[#allocation2 + $0x68] sm:$0x1]
      %v1996 = vld [vmem:[#allocation2 + $0x6c] sm:$0xf]
      %v1997 = vld [vmem:[#allocation2 + $0x70] sm:$0xf]
      %v1998 = vld [vmem:[#allocation2 + $0x74] sm:$0x1]
      %v1999 = vld [vmem:[#allocation2 + $0x78] sm:$0xf]
      %v2000 = vld [vmem:[#allocation2 + $0x7c] sm:$0xf]
      %v2001 = vld [vmem:[#allocation2 + $0x80] sm:$0x1]
      %v2002 = vld [vmem:[#allocation2 + $0x84] sm:$0xf]
      %v2003 = vld [vmem:[#allocation2 + $0x88] sm:$0xf]
      %v2004 = vld [vmem:[#allocation2 + $0x8c] sm:$0x1]
      %v2005 = vld [vmem:[#allocation2 + $0x90] sm:$0xf]
      %v2006 = vld [vmem:[#allocation2 + $0x94] sm:$0xf]
      %v2007 = vld [vmem:[#allocation2 + $0x98] sm:$0x1]
      %v2008 = vld [vmem:[#allocation2 + $0x9c] sm:$0xf]
      %v2009 = vld [vmem:[#allocation2 + $0xa0] sm:$0xf]
      %v2010 = vld [vmem:[#allocation2 + $0xa4] sm:$0x1]
      %v2039 = vunpack.c.l.b16 %v1969
      %v2040 = vunpack.c.l.b16 %v1970
      %v2041 = vunpack.c.l.b16 %v1972
      %v2042 = vunpack.c.l.b16 %v1973
      %v2043 = vunpack.c.l.b16 %v1975
      %v2044 = vunpack.c.l.b16 %v1976
      %v2045 = vunpack.c.l.b16 %v1978
      %v2046 = vunpack.c.l.b16 %v1979
      %v2047 = vunpack.c.l.b16 %v1981
      %v2048 = vunpack.c.l.b16 %v1982
      %v2049 = vunpack.c.l.b16 %v1984
      %v2050 = vunpack.c.l.b16 %v1985
      %v2051 = vunpack.c.l.b16 %v1987
      %v2052 = vunpack.c.l.b16 %v1988
      %v2053 = vunpack.c.l.b16 %v1990
      %v2054 = vunpack.c.l.b16 %v1991
      %v2055 = vunpack.c.l.b16 %v1993
      %v2056 = vunpack.c.l.b16 %v1994
      %v2057 = vunpack.c.l.b16 %v1996
      %v2058 = vunpack.c.l.b16 %v1997
      %v2059 = vunpack.c.l.b16 %v1999
      %v2060 = vunpack.c.l.b16 %v2000
      %v2061 = vunpack.c.l.b16 %v2002
      %v2062 = vunpack.c.l.b16 %v2003
      %v2063 = vunpack.c.l.b16 %v2005
      %v2064 = vunpack.c.l.b16 %v2006
      %v2065 = vunpack.c.l.b16 %v2008
      %v2066 = vunpack.c.l.b16 %v2009
      %v2067 = vpack.c.b16 %v2040, %v2039
      %v2068 = vpack.c.b16 %v2042, %v2041
      %v2069 = vpack.c.b16 %v2044, %v2043
      %v2070 = vpack.c.b16 %v2046, %v2045
      %v2071 = vpack.c.b16 %v2048, %v2047
      %v2072 = vpack.c.b16 %v2050, %v2049
      %v2073 = vpack.c.b16 %v2052, %v2051
      %v2074 = vpack.c.b16 %v2054, %v2053
      %v2075 = vpack.c.b16 %v2056, %v2055
      %v2076 = vpack.c.b16 %v2058, %v2057
      %v2077 = vpack.c.b16 %v2060, %v2059
      %v2078 = vpack.c.b16 %v2062, %v2061
      %v2079 = vpack.c.b16 %v2064, %v2063
      %v2080 = vpack.c.b16 %v2066, %v2065
      %v2095 = vunpack.c.l.b16 %v1971
      %v2096 = vunpack.c.l.b16 %v1974
      %v2097 = vunpack.c.l.b16 %v1977
      %v2098 = vunpack.c.l.b16 %v1980
      %v2099 = vunpack.c.l.b16 %v1983
      %v2100 = vunpack.c.l.b16 %v1986
      %v2101 = vunpack.c.l.b16 %v1989
      %v2102 = vunpack.c.l.b16 %v1992
      %v2103 = vunpack.c.l.b16 %v1995
      %v2104 = vunpack.c.l.b16 %v1998
      %v2105 = vunpack.c.l.b16 %v2001
      %v2106 = vunpack.c.l.b16 %v2004
      %v2107 = vunpack.c.l.b16 %v2007
      %v2108 = vunpack.c.l.b16 %v2010
      %v2109 = vpack.c.b16 %v2095, %v2095
      %v2110 = vpack.c.b16 %v2096, %v2096
      %v2111 = vpack.c.b16 %v2097, %v2097
      %v2112 = vpack.c.b16 %v2098, %v2098
      %v2113 = vpack.c.b16 %v2099, %v2099
      %v2114 = vpack.c.b16 %v2100, %v2100
      %v2115 = vpack.c.b16 %v2101, %v2101
      %v2116 = vpack.c.b16 %v2102, %v2102
      %v2117 = vpack.c.b16 %v2103, %v2103
      %v2118 = vpack.c.b16 %v2104, %v2104
      %v2119 = vpack.c.b16 %v2105, %v2105
      %v2120 = vpack.c.b16 %v2106, %v2106
      %v2121 = vpack.c.b16 %v2107, %v2107
      %v2122 = vpack.c.b16 %v2108, %v2108
      %v2124 = vshrl.u32 %v2067, 16
      %v2126 = vshll.u32 %v2067, 16
      %v2128 = vrot.slane %v2126, 1
      %v2129 = vor.u32 %v2124, %v2128
      %v2131 = vshll.u32 %v2109, 16
      %v2133 = vrot.slane %v2131, 1
      %v2134 = vsel %vm544, %v2129, %v2133
      %v2136 = vshrl.u32 %v2068, 16
      %v2138 = vshll.u32 %v2068, 16
      %v2140 = vrot.slane %v2138, 1
      %v2141 = vor.u32 %v2136, %v2140
      %v2143 = vshll.u32 %v2110, 16
      %v2145 = vrot.slane %v2143, 1
      %v2146 = vsel %vm544, %v2141, %v2145
      %v2148 = vshrl.u32 %v2069, 16
      %v2150 = vshll.u32 %v2069, 16
      %v2152 = vrot.slane %v2150, 1
      %v2153 = vor.u32 %v2148, %v2152
      %v2155 = vshll.u32 %v2111, 16
      %v2157 = vrot.slane %v2155, 1
      %v2158 = vsel %vm544, %v2153, %v2157
      %v2160 = vshrl.u32 %v2070, 16
      %v2162 = vshll.u32 %v2070, 16
      %v2164 = vrot.slane %v2162, 1
      %v2165 = vor.u32 %v2160, %v2164
      %v2167 = vshll.u32 %v2112, 16
      %v2169 = vrot.slane %v2167, 1
      %v2170 = vsel %vm544, %v2165, %v2169
      %v2172 = vshrl.u32 %v2071, 16
      %v2174 = vshll.u32 %v2071, 16
      %v2176 = vrot.slane %v2174, 1
      %v2177 = vor.u32 %v2172, %v2176
      %v2179 = vshll.u32 %v2113, 16
      %v2181 = vrot.slane %v2179, 1
      %v2182 = vsel %vm544, %v2177, %v2181
      %v2184 = vshrl.u32 %v2072, 16
      %v2186 = vshll.u32 %v2072, 16
      %v2188 = vrot.slane %v2186, 1
      %v2189 = vor.u32 %v2184, %v2188
      %v2191 = vshll.u32 %v2114, 16
      %v2193 = vrot.slane %v2191, 1
      %v2194 = vsel %vm544, %v2189, %v2193
      %v2196 = vshrl.u32 %v2073, 16
      %v2198 = vshll.u32 %v2073, 16
      %v2200 = vrot.slane %v2198, 1
      %v2201 = vor.u32 %v2196, %v2200
      %v2203 = vshll.u32 %v2115, 16
      %v2205 = vrot.slane %v2203, 1
      %v2206 = vsel %vm544, %v2201, %v2205
      %v2208 = vshrl.u32 %v2074, 16
      %v2210 = vshll.u32 %v2074, 16
      %v2212 = vrot.slane %v2210, 1
      %v2213 = vor.u32 %v2208, %v2212
      %v2215 = vshll.u32 %v2116, 16
      %v2217 = vrot.slane %v2215, 1
      %v2218 = vsel %vm544, %v2213, %v2217
      %v2220 = vshrl.u32 %v2075, 16
      %v2222 = vshll.u32 %v2075, 16
      %v2224 = vrot.slane %v2222, 1
      %v2225 = vor.u32 %v2220, %v2224
      %v2227 = vshll.u32 %v2117, 16
      %v2229 = vrot.slane %v2227, 1
      %v2230 = vsel %vm544, %v2225, %v2229
      %v2232 = vshrl.u32 %v2076, 16
      %v2234 = vshll.u32 %v2076, 16
      %v2236 = vrot.slane %v2234, 1
      %v2237 = vor.u32 %v2232, %v2236
      %v2239 = vshll.u32 %v2118, 16
      %v2241 = vrot.slane %v2239, 1
      %v2242 = vsel %vm544, %v2237, %v2241
      %v2244 = vshrl.u32 %v2077, 16
      %v2246 = vshll.u32 %v2077, 16
      %v2248 = vrot.slane %v2246, 1
      %v2249 = vor.u32 %v2244, %v2248
      %v2251 = vshll.u32 %v2119, 16
      %v2253 = vrot.slane %v2251, 1
      %v2254 = vsel %vm544, %v2249, %v2253
      %v2256 = vshrl.u32 %v2078, 16
      %v2258 = vshll.u32 %v2078, 16
      %v2260 = vrot.slane %v2258, 1
      %v2261 = vor.u32 %v2256, %v2260
      %v2263 = vshll.u32 %v2120, 16
      %v2265 = vrot.slane %v2263, 1
      %v2266 = vsel %vm544, %v2261, %v2265
      %v2268 = vshrl.u32 %v2079, 16
      %v2270 = vshll.u32 %v2079, 16
      %v2272 = vrot.slane %v2270, 1
      %v2273 = vor.u32 %v2268, %v2272
      %v2275 = vshll.u32 %v2121, 16
      %v2277 = vrot.slane %v2275, 1
      %v2278 = vsel %vm544, %v2273, %v2277
      %v2280 = vshrl.u32 %v2080, 16
      %v2282 = vshll.u32 %v2080, 16
      %v2284 = vrot.slane %v2282, 1
      %v2285 = vor.u32 %v2280, %v2284
      %v2287 = vshll.u32 %v2122, 16
      %v2289 = vrot.slane %v2287, 1
      %v2290 = vsel %vm544, %v2285, %v2289
      %2291 = vrot.lane.b32.xlu0 %v2134, 64
      %v2292 = vpop.permute.xlu0 %2291
      %2293 = vrot.lane.b32.xlu0 %v2146, 64
      %v2294 = vpop.permute.xlu0 %2293
      %2295 = vrot.lane.b32.xlu0 %v2158, 64
      %v2296 = vpop.permute.xlu0 %2295
      %2297 = vrot.lane.b32.xlu0 %v2170, 64
      %v2298 = vpop.permute.xlu0 %2297
      %2299 = vrot.lane.b32.xlu0 %v2182, 64
      %v2300 = vpop.permute.xlu0 %2299
      %2301 = vrot.lane.b32.xlu0 %v2194, 64
      %v2302 = vpop.permute.xlu0 %2301
      %2303 = vrot.lane.b32.xlu0 %v2206, 64
      %v2304 = vpop.permute.xlu0 %2303
      %2305 = vrot.lane.b32.xlu0 %v2218, 64
      %v2306 = vpop.permute.xlu0 %2305
      %2307 = vrot.lane.b32.xlu0 %v2230, 64
      %v2308 = vpop.permute.xlu0 %2307
      %2309 = vrot.lane.b32.xlu0 %v2242, 64
      %v2310 = vpop.permute.xlu0 %2309
      %2311 = vrot.lane.b32.xlu0 %v2254, 64
      %v2312 = vpop.permute.xlu0 %2311
      %2313 = vrot.lane.b32.xlu0 %v2266, 64
      %v2314 = vpop.permute.xlu0 %2313
      %2315 = vrot.lane.b32.xlu0 %v2278, 64
      %v2316 = vpop.permute.xlu0 %2315
      %2317 = vrot.lane.b32.xlu0 %v2290, 64
      %v2318 = vpop.permute.xlu0 %2317
      %v2319 = vrot.slane %v2067, 1
      %v2320 = vrot.slane %v2109, 1
      %v2321 = vsel %vm769, %v2319, %v2320
      %v2322 = vrot.slane %v2068, 1
      %v2323 = vrot.slane %v2110, 1
      %v2324 = vsel %vm769, %v2322, %v2323
      %v2325 = vrot.slane %v2069, 1
      %v2326 = vrot.slane %v2111, 1
      %v2327 = vsel %vm769, %v2325, %v2326
      %v2328 = vrot.slane %v2070, 1
      %v2329 = vrot.slane %v2112, 1
      %v2330 = vsel %vm769, %v2328, %v2329
      %v2331 = vrot.slane %v2071, 1
      %v2332 = vrot.slane %v2113, 1
      %v2333 = vsel %vm769, %v2331, %v2332
      %v2334 = vrot.slane %v2072, 1
      %v2335 = vrot.slane %v2114, 1
      %v2336 = vsel %vm769, %v2334, %v2335
      %v2337 = vrot.slane %v2073, 1
      %v2338 = vrot.slane %v2115, 1
      %v2339 = vsel %vm769, %v2337, %v2338
      %v2340 = vrot.slane %v2074, 1
      %v2341 = vrot.slane %v2116, 1
      %v2342 = vsel %vm769, %v2340, %v2341
      %v2343 = vrot.slane %v2075, 1
      %v2344 = vrot.slane %v2117, 1
      %v2345 = vsel %vm769, %v2343, %v2344
      %v2346 = vrot.slane %v2076, 1
      %v2347 = vrot.slane %v2118, 1
      %v2348 = vsel %vm769, %v2346, %v2347
      %v2349 = vrot.slane %v2077, 1
      %v2350 = vrot.slane %v2119, 1
      %v2351 = vsel %vm769, %v2349, %v2350
      %v2352 = vrot.slane %v2078, 1
      %v2353 = vrot.slane %v2120, 1
      %v2354 = vsel %vm769, %v2352, %v2353
      %v2355 = vrot.slane %v2079, 1
      %v2356 = vrot.slane %v2121, 1
      %v2357 = vsel %vm769, %v2355, %v2356
      %v2358 = vrot.slane %v2080, 1
      %v2359 = vrot.slane %v2122, 1
      %v2360 = vsel %vm769, %v2358, %v2359
      %vm2361 = vcmask 523264
      %v2363 = vsel %vm2361, %v2067, %v2292
      %v2366 = vsel %vm2361, %v2068, %v2294
      %v2369 = vsel %vm2361, %v2069, %v2296
      %v2372 = vsel %vm2361, %v2070, %v2298
      %v2375 = vsel %vm2361, %v2071, %v2300
      %v2378 = vsel %vm2361, %v2072, %v2302
      %v2381 = vsel %vm2361, %v2073, %v2304
      %v2384 = vsel %vm2361, %v2074, %v2306
      %v2387 = vsel %vm2361, %v2075, %v2308
      %v2390 = vsel %vm2361, %v2076, %v2310
      %v2393 = vsel %vm2361, %v2077, %v2312
      %v2396 = vsel %vm2361, %v2078, %v2314
      %v2399 = vsel %vm2361, %v2079, %v2316
      %v2402 = vsel %vm2361, %v2080, %v2318
      %v2404 = vld [vmem:[%s3] sm:$0xff]
      %v2405 = vld [vmem:[%s3 + $0x8] sm:$0xff]
      %v2406 = vld [vmem:[%s3 + $0x10] sm:$0xff]
      %v2407 = vld [vmem:[%s3 + $0x18] sm:$0xff]
      %v2408 = vld [vmem:[%s3 + $0x20] sm:$0xff]
      %v2409 = vld [vmem:[%s3 + $0x28] sm:$0xff]
      %v2410 = vld [vmem:[%s3 + $0x30] sm:$0xff]
      %v2411 = vld [vmem:[%s3 + $0x38] sm:$0xff]
      %v2412 = vld [vmem:[%s3 + $0x40] sm:$0xff]
      %v2413 = vld [vmem:[%s3 + $0x48] sm:$0xff]
      %v2414 = vld [vmem:[%s3 + $0x50] sm:$0xff]
      %v2415 = vld [vmem:[%s3 + $0x58] sm:$0xff]
      %v2416 = vld [vmem:[%s3 + $0x60] sm:$0xff]
      %v2417 = vld [vmem:[%s3 + $0x68] sm:$0xff]
      %v2418 = vld [vmem:[%s3 + $0x70] sm:$0xff]
      %v2419 = vld [vmem:[%s3 + $0x78] sm:$0xff]
      %v2420 = vld [vmem:[%s3 + $0x80] sm:$0xff]
      %v2421 = vld [vmem:[%s3 + $0x88] sm:$0xff]
      %v2422 = vld [vmem:[%s3 + $0x90] sm:$0xff]
      %v2423 = vld [vmem:[%s3 + $0x98] sm:$0xff]
      %v2424 = vld [vmem:[%s3 + $0xa0] sm:$0xff]
      %v2425 = vld [vmem:[%s3 + $0xa8] sm:$0xff]
      %v2426 = vld [vmem:[%s3 + $0xb0] sm:$0xff]
      %v2427 = vld [vmem:[%s3 + $0xb8] sm:$0xff]
      %v2452 = vunpack.c.l.b16 %v2404
      %v2453 = vunpack.c.h.b16 %v2404
      %v2454 = vunpack.c.l.b16 %v2405
      %v2455 = vunpack.c.h.b16 %v2405
      %v2456 = vunpack.c.l.b16 %v2406
      %v2457 = vunpack.c.h.b16 %v2406
      %v2458 = vunpack.c.l.b16 %v2407
      %v2459 = vunpack.c.h.b16 %v2407
      %v2460 = vunpack.c.l.b16 %v2408
      %v2461 = vunpack.c.h.b16 %v2408
      %v2462 = vunpack.c.l.b16 %v2409
      %v2463 = vunpack.c.h.b16 %v2409
      %v2464 = vunpack.c.l.b16 %v2410
      %v2465 = vunpack.c.h.b16 %v2410
      %v2466 = vunpack.c.l.b16 %v2411
      %v2467 = vunpack.c.h.b16 %v2411
      %v2468 = vunpack.c.l.b16 %v2412
      %v2469 = vunpack.c.h.b16 %v2412
      %v2470 = vunpack.c.l.b16 %v2413
      %v2471 = vunpack.c.h.b16 %v2413
      %v2472 = vunpack.c.l.b16 %v2414
      %v2473 = vunpack.c.h.b16 %v2414
      %v2474 = vunpack.c.l.b16 %v2415
      %v2475 = vunpack.c.h.b16 %v2415
      %v2476 = vunpack.c.l.b16 %v2416
      %v2477 = vunpack.c.h.b16 %v2416
      %v2478 = vunpack.c.l.b16 %v2417
      %v2479 = vunpack.c.h.b16 %v2417
      %v2480 = vunpack.c.l.b16 %v2418
      %v2481 = vunpack.c.h.b16 %v2418
      %v2482 = vunpack.c.l.b16 %v2419
      %v2483 = vunpack.c.h.b16 %v2419
      %v2484 = vunpack.c.l.b16 %v2420
      %v2485 = vunpack.c.h.b16 %v2420
      %v2486 = vunpack.c.l.b16 %v2421
      %v2487 = vunpack.c.h.b16 %v2421
      %v2488 = vunpack.c.l.b16 %v2422
      %v2489 = vunpack.c.h.b16 %v2422
      %v2490 = vunpack.c.l.b16 %v2423
      %v2491 = vunpack.c.h.b16 %v2423
      %v2492 = vunpack.c.l.b16 %v2424
      %v2493 = vunpack.c.h.b16 %v2424
      %v2494 = vunpack.c.l.b16 %v2425
      %v2495 = vunpack.c.h.b16 %v2425
      %v2496 = vunpack.c.l.b16 %v2426
      %v2497 = vunpack.c.h.b16 %v2426
      %v2498 = vunpack.c.l.b16 %v2427
      %v2499 = vunpack.c.h.b16 %v2427
      %v2500 = vpack.c.b16 %v2454, %v2452
      %v2501 = vpack.c.b16 %v2455, %v2453
      %v2502 = vpack.c.b16 %v2458, %v2456
      %v2503 = vpack.c.b16 %v2459, %v2457
      %v2504 = vpack.c.b16 %v2462, %v2460
      %v2505 = vpack.c.b16 %v2463, %v2461
      %v2506 = vpack.c.b16 %v2466, %v2464
      %v2507 = vpack.c.b16 %v2467, %v2465
      %v2508 = vpack.c.b16 %v2470, %v2468
      %v2509 = vpack.c.b16 %v2471, %v2469
      %v2510 = vpack.c.b16 %v2474, %v2472
      %v2511 = vpack.c.b16 %v2475, %v2473
      %v2512 = vpack.c.b16 %v2478, %v2476
      %v2513 = vpack.c.b16 %v2479, %v2477
      %v2514 = vpack.c.b16 %v2482, %v2480
      %v2515 = vpack.c.b16 %v2483, %v2481
      %v2516 = vpack.c.b16 %v2486, %v2484
      %v2517 = vpack.c.b16 %v2487, %v2485
      %v2518 = vpack.c.b16 %v2490, %v2488
      %v2519 = vpack.c.b16 %v2491, %v2489
      %v2520 = vpack.c.b16 %v2494, %v2492
      %v2521 = vpack.c.b16 %v2495, %v2493
      %v2522 = vpack.c.b16 %v2498, %v2496
      %v2523 = vpack.c.b16 %v2499, %v2497
      %v2549 = vsel %vm2361, %v2321, 0
      %v2552 = vsel %vm2361, %v2324, 0
      %v2555 = vsel %vm2361, %v2327, 0
      %v2558 = vsel %vm2361, %v2330, 0
      %v2561 = vsel %vm2361, %v2333, 0
      %v2564 = vsel %vm2361, %v2336, 0
      %v2567 = vsel %vm2361, %v2339, 0
      %v2570 = vsel %vm2361, %v2342, 0
      %v2573 = vsel %vm2361, %v2345, 0
      %v2576 = vsel %vm2361, %v2348, 0
      %v2579 = vsel %vm2361, %v2351, 0
      %v2582 = vsel %vm2361, %v2354, 0
      %v2585 = vsel %vm2361, %v2357, 0
      %v2588 = vsel %vm2361, %v2360, 0
      %2590 = vmatprep.subr.bf16.mxu0 %v2501
      %2591 = vmatpush1.bf16.msra.mxu0 %v2500
      %2592 = vmatprep.subr.bf16.mxu0 %v2503
      %2593 = vmatpush1.bf16.msra.mxu0 %v2502
      %2594 = vmatprep.subr.bf16.mxu0 %v2505
      %2595 = vmatpush1.bf16.msra.mxu0 %v2504
      %2596 = vmatprep.subr.bf16.mxu0 %v2507
      %2597 = vmatpush1.bf16.msra.mxu0 %v2506
      %2598 = vmatprep.subr.bf16.mxu0 %v2509
      %2599 = vmatpush1.bf16.msra.mxu0 %v2508
      %2600 = vmatprep.subr.bf16.mxu0 %v2511
      %2601 = vmatpush1.bf16.msra.mxu0 %v2510
      %2602 = vmatprep.subr.bf16.mxu0 %v2513
      %2603 = vmatpush1.bf16.msra.mxu0 %v2512
      %2604 = vmatprep.subr.bf16.mxu0 %v2515
      %2605 = vmatpush1.bf16.msra.mxu0 %v2514
      %2606 = vmatprep.subr.bf16.mxu0 %v2517
      %2607 = vmatpush1.bf16.msra.mxu0 %v2516
      %2608 = vmatprep.subr.bf16.mxu0 %v2519
      %2609 = vmatpush1.bf16.msra.mxu0 %v2518
      %2610 = vmatprep.subr.bf16.mxu0 %v2521
      %2611 = vmatpush1.bf16.msra.mxu0 %v2520
      %2612 = vmatprep.subr.bf16.mxu0 %v2523
      %2613 = vmatpush1.bf16.msra.mxu0 %v2522
      %2614 = vmatprep.subr.bf16.mxu0 0
      %2615 = vmatpush1.bf16.msra.mxu0 0
      %2616 = vmatprep.subr.bf16.mxu0 0
      %2617 = vmatpush1.bf16.msra.mxu0 0
      %2618 = vmatprep.subr.bf16.mxu0 0
      %2619 = vmatpush1.bf16.msra.mxu0 0
      %2620 = vmatprep.subr.bf16.mxu0 0
      %2621 = vmatpush1.bf16.msra.mxu0 0
      %2622 = vmatprep.mubr.bf16.mxu0 %v2549
      %2623 = vmatmul.mubr.bf16.gmra.mrb[0].mxu0 %v2363
      %v2624 = vpop.f32.mrb[0].mxu0
      %v2625 = vadd.f32 0.0, %v2624
      %v2626 = vpop.f32.mrb[0].mxu0
      %v2627 = vpop.f32.mrb[0].mxu0
      %v2628 = vadd.f32 0.0, %v2627
      %v2629 = vpop.f32.mrb[0].mxu0
      %2630 = vmatprep.mubr.bf16.mxu0 %v2552
      %2631 = vmatmul.mubr.bf16.gmra.mrb[0].mxu0 %v2366
      %v2632 = vpop.f32.mrb[0].mxu0
      %v2633 = vadd.f32 0.0, %v2632
      %v2634 = vpop.f32.mrb[0].mxu0
      %v2635 = vpop.f32.mrb[0].mxu0
      %v2636 = vadd.f32 0.0, %v2635
      %v2637 = vpop.f32.mrb[0].mxu0
      %2638 = vmatprep.mubr.bf16.mxu0 %v2555
      %2639 = vmatmul.mubr.bf16.gmra.mrb[0].mxu0 %v2369
      %v2640 = vpop.f32.mrb[0].mxu0
      %v2641 = vadd.f32 0.0, %v2640
      %v2642 = vpop.f32.mrb[0].mxu0
      %v2643 = vadd.f32 0.0, %v2642
      %v2644 = vpop.f32.mrb[0].mxu0
      %v2645 = vadd.f32 0.0, %v2644
      %v2646 = vpop.f32.mrb[0].mxu0
      %v2647 = vadd.f32 0.0, %v2646
      %2648 = vmatprep.mubr.bf16.mxu0 %v2558
      %2649 = vmatmul.mubr.bf16.gmra.mrb[0].mxu0 %v2372
      %v2650 = vpop.f32.mrb[0].mxu0
      %v2651 = vadd.f32 0.0, %v2650
      %v2652 = vpop.f32.mrb[0].mxu0
      %v2653 = vadd.f32 0.0, %v2652
      %v2654 = vpop.f32.mrb[0].mxu0
      %v2655 = vadd.f32 0.0, %v2654
      %v2656 = vpop.f32.mrb[0].mxu0
      %v2657 = vadd.f32 0.0, %v2656
      %2658 = vmatprep.mubr.bf16.mxu0 %v2561
      %2659 = vmatmul.mubr.bf16.gmra.mrb[0].mxu0 %v2375
      %v2660 = vpop.f32.mrb[0].mxu0
      %v2661 = vadd.f32 0.0, %v2660
      %v2662 = vpop.f32.mrb[0].mxu0
      %v2663 = vadd.f32 0.0, %v2662
      %v2664 = vpop.f32.mrb[0].mxu0
      %v2665 = vadd.f32 0.0, %v2664
      %v2666 = vpop.f32.mrb[0].mxu0
      %v2667 = vadd.f32 0.0, %v2666
      %2668 = vmatprep.mubr.bf16.mxu0 %v2564
      %2669 = vmatmul.mubr.bf16.gmra.mrb[0].mxu0 %v2378
      %v2670 = vpop.f32.mrb[0].mxu0
      %v2671 = vadd.f32 0.0, %v2670
      %v2672 = vpop.f32.mrb[0].mxu0
      %v2673 = vadd.f32 0.0, %v2672
      %v2674 = vpop.f32.mrb[0].mxu0
      %v2675 = vadd.f32 0.0, %v2674
      %v2676 = vpop.f32.mrb[0].mxu0
      %v2677 = vadd.f32 0.0, %v2676
      %2678 = vmatprep.mubr.bf16.mxu0 %v2567
      %2679 = vmatmul.mubr.bf16.gmra.mrb[0].mxu0 %v2381
      %v2680 = vpop.f32.mrb[0].mxu0
      %v2681 = vadd.f32 0.0, %v2680
      %v2682 = vpop.f32.mrb[0].mxu0
      %v2683 = vadd.f32 0.0, %v2682
      %v2684 = vpop.f32.mrb[0].mxu0
      %v2685 = vadd.f32 0.0, %v2684
      %v2686 = vpop.f32.mrb[0].mxu0
      %v2687 = vadd.f32 0.0, %v2686
      %2688 = vmatprep.mubr.bf16.mxu0 %v2570
      %2689 = vmatmul.mubr.bf16.gmra.mrb[0].mxu0 %v2384
      %v2690 = vpop.f32.mrb[0].mxu0
      %v2691 = vadd.f32 0.0, %v2690
      %v2692 = vpop.f32.mrb[0].mxu0
      %v2693 = vadd.f32 0.0, %v2692
      %v2694 = vpop.f32.mrb[0].mxu0
      %v2695 = vadd.f32 0.0, %v2694
      %v2696 = vpop.f32.mrb[0].mxu0
      %v2697 = vadd.f32 0.0, %v2696
      %2698 = vmatprep.mubr.bf16.mxu0 %v2573
      %2699 = vmatmul.mubr.bf16.gmra.mrb[0].mxu0 %v2387
      %v2700 = vpop.f32.mrb[0].mxu0
      %v2701 = vadd.f32 0.0, %v2700
      %v2702 = vpop.f32.mrb[0].mxu0
      %v2703 = vadd.f32 0.0, %v2702
      %v2704 = vpop.f32.mrb[0].mxu0
      %v2705 = vadd.f32 0.0, %v2704
      %v2706 = vpop.f32.mrb[0].mxu0
      %v2707 = vadd.f32 0.0, %v2706
      %2708 = vmatprep.mubr.bf16.mxu0 %v2576
      %2709 = vmatmul.mubr.bf16.gmra.mrb[0].mxu0 %v2390
      %v2710 = vpop.f32.mrb[0].mxu0
      %v2711 = vadd.f32 0.0, %v2710
      %v2712 = vpop.f32.mrb[0].mxu0
      %v2713 = vadd.f32 0.0, %v2712
      %v2714 = vpop.f32.mrb[0].mxu0
      %v2715 = vadd.f32 0.0, %v2714
      %v2716 = vpop.f32.mrb[0].mxu0
      %v2717 = vadd.f32 0.0, %v2716
      %2718 = vmatprep.mubr.bf16.mxu0 %v2579
      %2719 = vmatmul.mubr.bf16.gmra.mrb[0].mxu0 %v2393
      %v2720 = vpop.f32.mrb[0].mxu0
      %v2721 = vadd.f32 0.0, %v2720
      %v2722 = vpop.f32.mrb[0].mxu0
      %v2723 = vadd.f32 0.0, %v2722
      %v2724 = vpop.f32.mrb[0].mxu0
      %v2725 = vadd.f32 0.0, %v2724
      %v2726 = vpop.f32.mrb[0].mxu0
      %v2727 = vadd.f32 0.0, %v2726
      %2728 = vmatprep.mubr.bf16.mxu0 %v2582
      %2729 = vmatmul.mubr.bf16.gmra.mrb[0].mxu0 %v2396
      %v2730 = vpop.f32.mrb[0].mxu0
      %v2731 = vadd.f32 0.0, %v2730
      %v2732 = vpop.f32.mrb[0].mxu0
      %v2733 = vadd.f32 0.0, %v2732
      %v2734 = vpop.f32.mrb[0].mxu0
      %v2735 = vadd.f32 0.0, %v2734
      %v2736 = vpop.f32.mrb[0].mxu0
      %v2737 = vadd.f32 0.0, %v2736
      %2738 = vmatprep.mubr.bf16.mxu0 %v2585
      %2739 = vmatmul.mubr.bf16.gmra.mrb[0].mxu0 %v2399
      %v2740 = vpop.f32.mrb[0].mxu0
      %v2741 = vadd.f32 0.0, %v2740
      %v2742 = vpop.f32.mrb[0].mxu0
      %v2743 = vadd.f32 0.0, %v2742
      %v2744 = vpop.f32.mrb[0].mxu0
      %v2745 = vadd.f32 0.0, %v2744
      %v2746 = vpop.f32.mrb[0].mxu0
      %v2747 = vadd.f32 0.0, %v2746
      %2748 = vmatprep.mubr.bf16.mxu0 %v2588
      %2749 = vmatmul.mubr.bf16.gmra.mrb[0].mxu0 %v2402
      %v2750 = vpop.f32.mrb[0].mxu0
      %v2751 = vpop.f32.mrb[0].mxu0
      %v2752 = vadd.f32 0.0, %v2751
      %v2753 = vpop.f32.mrb[0].mxu0
      %v2754 = vpop.f32.mrb[0].mxu0
      %v2755 = vadd.f32 0.0, %v2754
      %2756 = vdwg.mxu0
      %2781 = vrot.lane.b32.xlu0 %v2633, 64
      %v2782 = vpop.permute.xlu0 %2781
      %2783 = vrot.lane.b32.xlu0 %v2636, 64
      %v2784 = vpop.permute.xlu0 %2783
      %2785 = vrot.lane.b32.xlu0 %v2641, 64
      %v2786 = vpop.permute.xlu0 %2785
      %2787 = vrot.lane.b32.xlu0 %v2645, 64
      %v2788 = vpop.permute.xlu0 %2787
      %2789 = vrot.lane.b32.xlu0 %v2651, 64
      %v2790 = vpop.permute.xlu0 %2789
      %2791 = vrot.lane.b32.xlu0 %v2655, 64
      %v2792 = vpop.permute.xlu0 %2791
      %2793 = vrot.lane.b32.xlu0 %v2661, 64
      %v2794 = vpop.permute.xlu0 %2793
      %2795 = vrot.lane.b32.xlu0 %v2665, 64
      %v2796 = vpop.permute.xlu0 %2795
      %2797 = vrot.lane.b32.xlu0 %v2671, 64
      %v2798 = vpop.permute.xlu0 %2797
      %2799 = vrot.lane.b32.xlu0 %v2675, 64
      %v2800 = vpop.permute.xlu0 %2799
      %2801 = vrot.lane.b32.xlu0 %v2681, 64
      %v2802 = vpop.permute.xlu0 %2801
      %2803 = vrot.lane.b32.xlu0 %v2685, 64
      %v2804 = vpop.permute.xlu0 %2803
      %2805 = vrot.lane.b32.xlu0 %v2691, 64
      %v2806 = vpop.permute.xlu0 %2805
      %2807 = vrot.lane.b32.xlu0 %v2695, 64
      %v2808 = vpop.permute.xlu0 %2807
      %2809 = vrot.lane.b32.xlu0 %v2701, 64
      %v2810 = vpop.permute.xlu0 %2809
      %2811 = vrot.lane.b32.xlu0 %v2705, 64
      %v2812 = vpop.permute.xlu0 %2811
      %2813 = vrot.lane.b32.xlu0 %v2711, 64
      %v2814 = vpop.permute.xlu0 %2813
      %2815 = vrot.lane.b32.xlu0 %v2715, 64
      %v2816 = vpop.permute.xlu0 %2815
      %2817 = vrot.lane.b32.xlu0 %v2721, 64
      %v2818 = vpop.permute.xlu0 %2817
      %2819 = vrot.lane.b32.xlu0 %v2725, 64
      %v2820 = vpop.permute.xlu0 %2819
      %2821 = vrot.lane.b32.xlu0 %v2731, 64
      %v2822 = vpop.permute.xlu0 %2821
      %2823 = vrot.lane.b32.xlu0 %v2735, 64
      %v2824 = vpop.permute.xlu0 %2823
      %2825 = vrot.lane.b32.xlu0 %v2741, 64
      %v2826 = vpop.permute.xlu0 %2825
      %2827 = vrot.lane.b32.xlu0 %v2745, 64
      %v2828 = vpop.permute.xlu0 %2827
      %v2853 = vadd.f32 %v2625, %v2782
      %v2854 = vadd.f32 %v2628, %v2784
      %v2855 = vadd.f32 %v2633, %v2786
      %v2856 = vadd.f32 %v2636, %v2788
      %v2857 = vadd.f32 %v2641, %v2790
      %v2858 = vadd.f32 %v2645, %v2792
      %v2859 = vadd.f32 %v2651, %v2794
      %v2860 = vadd.f32 %v2655, %v2796
      %v2861 = vadd.f32 %v2661, %v2798
      %v2862 = vadd.f32 %v2665, %v2800
      %v2863 = vadd.f32 %v2671, %v2802
      %v2864 = vadd.f32 %v2675, %v2804
      %v2865 = vadd.f32 %v2681, %v2806
      %v2866 = vadd.f32 %v2685, %v2808
      %v2867 = vadd.f32 %v2691, %v2810
      %v2868 = vadd.f32 %v2695, %v2812
      %v2869 = vadd.f32 %v2701, %v2814
      %v2870 = vadd.f32 %v2705, %v2816
      %v2871 = vadd.f32 %v2711, %v2818
      %v2872 = vadd.f32 %v2715, %v2820
      %v2873 = vadd.f32 %v2721, %v2822
      %v2874 = vadd.f32 %v2725, %v2824
      %v2875 = vadd.f32 %v2731, %v2826
      %v2876 = vadd.f32 %v2735, %v2828
      %v2877 = vadd.f32 %v2853, %v2643
      %v2878 = vadd.f32 %v2854, %v2647
      %v2879 = vadd.f32 %v2855, %v2653
      %v2880 = vadd.f32 %v2856, %v2657
      %v2881 = vadd.f32 %v2857, %v2663
      %v2882 = vadd.f32 %v2858, %v2667
      %v2883 = vadd.f32 %v2859, %v2673
      %v2884 = vadd.f32 %v2860, %v2677
      %v2885 = vadd.f32 %v2861, %v2683
      %v2886 = vadd.f32 %v2862, %v2687
      %v2887 = vadd.f32 %v2863, %v2693
      %v2888 = vadd.f32 %v2864, %v2697
      %v2889 = vadd.f32 %v2865, %v2703
      %v2890 = vadd.f32 %v2866, %v2707
      %v2891 = vadd.f32 %v2867, %v2713
      %v2892 = vadd.f32 %v2868, %v2717
      %v2893 = vadd.f32 %v2869, %v2723
      %v2894 = vadd.f32 %v2870, %v2727
      %v2895 = vadd.f32 %v2871, %v2733
      %v2896 = vadd.f32 %v2872, %v2737
      %v2897 = vadd.f32 %v2873, %v2743
      %v2898 = vadd.f32 %v2874, %v2747
      %v2899 = vadd.f32 %v2875, %v2752
      %v2900 = vadd.f32 %v2876, %v2755
      %v2901 = vld [vmem:[%s4] sm:$0x1]
      %v2903 = vlaneseq
      %v2904 = vshrl.u32 %v2903, 7
      %v2905 = vsub.s32 0, %v2904
      %v2906 = vrot.slane %v2901, %v2905
      %v2908 = vadd.f32 %v2877, %v2906
      %v2909 = vadd.f32 %v2878, %v2906
      %v2910 = vadd.f32 %v2879, %v2906
      %v2911 = vadd.f32 %v2880, %v2906
      %v2912 = vadd.f32 %v2881, %v2906
      %v2913 = vadd.f32 %v2882, %v2906
      %v2914 = vadd.f32 %v2883, %v2906
      %v2915 = vadd.f32 %v2884, %v2906
      %v2916 = vadd.f32 %v2885, %v2906
      %v2917 = vadd.f32 %v2886, %v2906
      %v2918 = vadd.f32 %v2887, %v2906
      %v2919 = vadd.f32 %v2888, %v2906
      %v2920 = vadd.f32 %v2889, %v2906
      %v2921 = vadd.f32 %v2890, %v2906
      %v2922 = vadd.f32 %v2891, %v2906
      %v2923 = vadd.f32 %v2892, %v2906
      %v2924 = vadd.f32 %v2893, %v2906
      %v2925 = vadd.f32 %v2894, %v2906
      %v2926 = vadd.f32 %v2895, %v2906
      %v2927 = vadd.f32 %v2896, %v2906
      %v2928 = vadd.f32 %v2897, %v2906
      %v2929 = vadd.f32 %v2898, %v2906
      %v2930 = vadd.f32 %v2899, %v2906
      %v2931 = vadd.f32 %v2900, %v2906
      %v2932 = vmax.f32 %v2908, 0.0
      %v2933 = vmax.f32 %v2909, 0.0
      %v2934 = vmax.f32 %v2910, 0.0
      %v2935 = vmax.f32 %v2911, 0.0
      %v2936 = vmax.f32 %v2912, 0.0
      %v2937 = vmax.f32 %v2913, 0.0
      %v2938 = vmax.f32 %v2914, 0.0
      %v2939 = vmax.f32 %v2915, 0.0
      %v2940 = vmax.f32 %v2916, 0.0
      %v2941 = vmax.f32 %v2917, 0.0
      %v2942 = vmax.f32 %v2918, 0.0
      %v2943 = vmax.f32 %v2919, 0.0
      %v2944 = vmax.f32 %v2920, 0.0
      %v2945 = vmax.f32 %v2921, 0.0
      %v2946 = vmax.f32 %v2922, 0.0
      %v2947 = vmax.f32 %v2923, 0.0
      %v2948 = vmax.f32 %v2924, 0.0
      %v2949 = vmax.f32 %v2925, 0.0
      %v2950 = vmax.f32 %v2926, 0.0
      %v2951 = vmax.f32 %v2927, 0.0
      %v2952 = vmax.f32 %v2928, 0.0
      %v2953 = vmax.f32 %v2929, 0.0
      %v2954 = vmax.f32 %v2930, 0.0
      %v2955 = vmax.f32 %v2931, 0.0
      %v2956 = vpack.c.bf16 %v2933, %v2932
      %v2957 = vpack.c.bf16 %v2935, %v2934
      %v2958 = vpack.c.bf16 %v2937, %v2936
      %v2959 = vpack.c.bf16 %v2939, %v2938
      %v2960 = vpack.c.bf16 %v2941, %v2940
      %v2961 = vpack.c.bf16 %v2943, %v2942
      %v2962 = vpack.c.bf16 %v2945, %v2944
      %v2963 = vpack.c.bf16 %v2947, %v2946
      %v2964 = vpack.c.bf16 %v2949, %v2948
      %v2965 = vpack.c.bf16 %v2951, %v2950
      %v2966 = vpack.c.bf16 %v2953, %v2952
      %v2967 = vpack.c.bf16 %v2955, %v2954
      %v2980 = vunpack.c.l.b16 %v2956
      %v2981 = vunpack.c.h.b16 %v2956
      %v2982 = vunpack.c.l.b16 %v2957
      %v2983 = vunpack.c.h.b16 %v2957
      %v2984 = vunpack.c.l.b16 %v2958
      %v2985 = vunpack.c.h.b16 %v2958
      %v2986 = vunpack.c.l.b16 %v2959
      %v2987 = vunpack.c.h.b16 %v2959
      %v2988 = vunpack.c.l.b16 %v2960
      %v2989 = vunpack.c.h.b16 %v2960
      %v2990 = vunpack.c.l.b16 %v2961
      %v2991 = vunpack.c.h.b16 %v2961
      %v2992 = vunpack.c.l.b16 %v2962
      %v2993 = vunpack.c.h.b16 %v2962
      %v2994 = vunpack.c.l.b16 %v2963
      %v2995 = vunpack.c.h.b16 %v2963
      %v2996 = vunpack.c.l.b16 %v2964
      %v2997 = vunpack.c.h.b16 %v2964
      %v2998 = vunpack.c.l.b16 %v2965
      %v2999 = vunpack.c.h.b16 %v2965
      %v3000 = vunpack.c.l.b16 %v2966
      %v3001 = vunpack.c.h.b16 %v2966
      %v3002 = vunpack.c.l.b16 %v2967
      %v3003 = vunpack.c.h.b16 %v2967
      %v3004 = vpack.c.b16 %v2980, %v2980
      %v3005 = vpack.c.b16 %v2981, %v2981
      %v3006 = vpack.c.b16 %v2982, %v2982
      %v3007 = vpack.c.b16 %v2983, %v2983
      %v3008 = vpack.c.b16 %v2984, %v2984
      %v3009 = vpack.c.b16 %v2985, %v2985
      %v3010 = vpack.c.b16 %v2986, %v2986
      %v3011 = vpack.c.b16 %v2987, %v2987
      %v3012 = vpack.c.b16 %v2988, %v2988
      %v3013 = vpack.c.b16 %v2989, %v2989
      %v3014 = vpack.c.b16 %v2990, %v2990
      %v3015 = vpack.c.b16 %v2991, %v2991
      %v3016 = vpack.c.b16 %v2992, %v2992
      %v3017 = vpack.c.b16 %v2993, %v2993
      %v3018 = vpack.c.b16 %v2994, %v2994
      %v3019 = vpack.c.b16 %v2995, %v2995
      %v3020 = vpack.c.b16 %v2996, %v2996
      %v3021 = vpack.c.b16 %v2997, %v2997
      %v3022 = vpack.c.b16 %v2998, %v2998
      %v3023 = vpack.c.b16 %v2999, %v2999
      %v3024 = vpack.c.b16 %v3000, %v3000
      %v3025 = vpack.c.b16 %v3001, %v3001
      %v3026 = vpack.c.b16 %v3002, %v3002
      %v3027 = vpack.c.b16 %v3003, %v3003
      %v3029 = vshrl.u32 %v3004, 16
      %v3031 = vrot.slane %v3029, 7
      %v3032 = vshll.u32 %v3004, 16
      %v3034 = vor.u32 %v3031, %v3032
      %v3035 = vrot.slane %v3031, 4
      %v3037 = vshrl.u32 %v3005, 16
      %v3039 = vrot.slane %v3037, 7
      %v3040 = vshll.u32 %v3005, 16
      %v3042 = vor.u32 %v3039, %v3040
      %v3043 = vsel %vm1470, %v3035, %v3042
      %v3044 = vrot.slane %v3039, 4
      %v3046 = vshrl.u32 %v3006, 16
      %v3048 = vrot.slane %v3046, 7
      %v3049 = vshll.u32 %v3006, 16
      %v3051 = vor.u32 %v3048, %v3049
      %v3052 = vrot.slane %v3048, 4
      %v3054 = vshrl.u32 %v3007, 16
      %v3056 = vrot.slane %v3054, 7
      %v3057 = vshll.u32 %v3007, 16
      %v3059 = vor.u32 %v3056, %v3057
      %v3060 = vsel %vm1470, %v3052, %v3059
      %v3061 = vrot.slane %v3056, 4
      %v3063 = vshrl.u32 %v3008, 16
      %v3065 = vrot.slane %v3063, 7
      %v3066 = vshll.u32 %v3008, 16
      %v3068 = vor.u32 %v3065, %v3066
      %v3069 = vrot.slane %v3065, 4
      %v3071 = vshrl.u32 %v3009, 16
      %v3073 = vrot.slane %v3071, 7
      %v3074 = vshll.u32 %v3009, 16
      %v3076 = vor.u32 %v3073, %v3074
      %v3077 = vsel %vm1470, %v3069, %v3076
      %v3078 = vrot.slane %v3073, 4
      %v3080 = vshrl.u32 %v3010, 16
      %v3082 = vrot.slane %v3080, 7
      %v3083 = vshll.u32 %v3010, 16
      %v3085 = vor.u32 %v3082, %v3083
      %v3086 = vrot.slane %v3082, 4
      %v3088 = vshrl.u32 %v3011, 16
      %v3090 = vrot.slane %v3088, 7
      %v3091 = vshll.u32 %v3011, 16
      %v3093 = vor.u32 %v3090, %v3091
      %v3094 = vsel %vm1470, %v3086, %v3093
      %v3095 = vrot.slane %v3090, 4
      %v3097 = vshrl.u32 %v3012, 16
      %v3099 = vrot.slane %v3097, 7
      %v3100 = vshll.u32 %v3012, 16
      %v3102 = vor.u32 %v3099, %v3100
      %v3103 = vrot.slane %v3099, 4
      %v3105 = vshrl.u32 %v3013, 16
      %v3107 = vrot.slane %v3105, 7
      %v3108 = vshll.u32 %v3013, 16
      %v3110 = vor.u32 %v3107, %v3108
      %v3111 = vsel %vm1470, %v3103, %v3110
      %v3112 = vrot.slane %v3107, 4
      %v3114 = vshrl.u32 %v3014, 16
      %v3116 = vrot.slane %v3114, 7
      %v3117 = vshll.u32 %v3014, 16
      %v3119 = vor.u32 %v3116, %v3117
      %v3120 = vrot.slane %v3116, 4
      %v3122 = vshrl.u32 %v3015, 16
      %v3124 = vrot.slane %v3122, 7
      %v3125 = vshll.u32 %v3015, 16
      %v3127 = vor.u32 %v3124, %v3125
      %v3128 = vsel %vm1470, %v3120, %v3127
      %v3129 = vrot.slane %v3124, 4
      %v3131 = vshrl.u32 %v3016, 16
      %v3133 = vrot.slane %v3131, 7
      %v3134 = vshll.u32 %v3016, 16
      %v3136 = vor.u32 %v3133, %v3134
      %v3137 = vrot.slane %v3133, 4
      %v3139 = vshrl.u32 %v3017, 16
      %v3141 = vrot.slane %v3139, 7
      %v3142 = vshll.u32 %v3017, 16
      %v3144 = vor.u32 %v3141, %v3142
      %v3145 = vsel %vm1470, %v3137, %v3144
      %v3146 = vrot.slane %v3141, 4
      %v3148 = vshrl.u32 %v3018, 16
      %v3150 = vrot.slane %v3148, 7
      %v3151 = vshll.u32 %v3018, 16
      %v3153 = vor.u32 %v3150, %v3151
      %v3154 = vrot.slane %v3150, 4
      %v3156 = vshrl.u32 %v3019, 16
      %v3158 = vrot.slane %v3156, 7
      %v3159 = vshll.u32 %v3019, 16
      %v3161 = vor.u32 %v3158, %v3159
      %v3162 = vsel %vm1470, %v3154, %v3161
      %v3163 = vrot.slane %v3158, 4
      %v3165 = vshrl.u32 %v3020, 16
      %v3167 = vrot.slane %v3165, 7
      %v3168 = vshll.u32 %v3020, 16
      %v3170 = vor.u32 %v3167, %v3168
      %v3171 = vrot.slane %v3167, 4
      %v3173 = vshrl.u32 %v3021, 16
      %v3175 = vrot.slane %v3173, 7
      %v3176 = vshll.u32 %v3021, 16
      %v3178 = vor.u32 %v3175, %v3176
      %v3179 = vsel %vm1470, %v3171, %v3178
      %v3180 = vrot.slane %v3175, 4
      %v3182 = vshrl.u32 %v3022, 16
      %v3184 = vrot.slane %v3182, 7
      %v3185 = vshll.u32 %v3022, 16
      %v3187 = vor.u32 %v3184, %v3185
      %v3188 = vrot.slane %v3184, 4
      %v3190 = vshrl.u32 %v3023, 16
      %v3192 = vrot.slane %v3190, 7
      %v3193 = vshll.u32 %v3023, 16
      %v3195 = vor.u32 %v3192, %v3193
      %v3196 = vsel %vm1470, %v3188, %v3195
      %v3197 = vrot.slane %v3192, 4
      %v3199 = vshrl.u32 %v3024, 16
      %v3201 = vrot.slane %v3199, 7
      %v3202 = vshll.u32 %v3024, 16
      %v3204 = vor.u32 %v3201, %v3202
      %v3205 = vrot.slane %v3201, 4
      %v3207 = vshrl.u32 %v3025, 16
      %v3209 = vrot.slane %v3207, 7
      %v3210 = vshll.u32 %v3025, 16
      %v3212 = vor.u32 %v3209, %v3210
      %v3213 = vsel %vm1470, %v3205, %v3212
      %v3214 = vrot.slane %v3209, 4
      %v3216 = vshrl.u32 %v3026, 16
      %v3218 = vrot.slane %v3216, 7
      %v3219 = vshll.u32 %v3026, 16
      %v3221 = vor.u32 %v3218, %v3219
      %v3222 = vrot.slane %v3218, 4
      %v3224 = vshrl.u32 %v3027, 16
      %v3226 = vrot.slane %v3224, 7
      %v3227 = vshll.u32 %v3027, 16
      %v3229 = vor.u32 %v3226, %v3227
      %v3230 = vsel %vm1470, %v3222, %v3229
      %v3231 = vrot.slane %v3226, 4
      %v3268 = vld [vmem:[#allocation3] sm:$0xf]
      %v3269 = vsel %vm1753, %v3034, %v3268
      %3270 = vst [vmem:[#allocation3] sm:$0xf] %v3269
      %3271 = vst.msk [vmem:[#allocation3 + $0x4] sm:$0xf] %vm1757, %v3043
      %v3272 = vld [vmem:[#allocation3 + $0x8] sm:$0x1]
      %v3273 = vsel %vm1760, %v3044, %v3272
      %3274 = vst [vmem:[#allocation3 + $0x8] sm:$0x1] %v3273
      %v3275 = vld [vmem:[#allocation3 + $0xc] sm:$0xf]
      %v3276 = vsel %vm1753, %v3051, %v3275
      %3277 = vst [vmem:[#allocation3 + $0xc] sm:$0xf] %v3276
      %3278 = vst.msk [vmem:[#allocation3 + $0x10] sm:$0xf] %vm1757, %v3060
      %v3279 = vld [vmem:[#allocation3 + $0x14] sm:$0x1]
      %v3280 = vsel %vm1760, %v3061, %v3279
      %3281 = vst [vmem:[#allocation3 + $0x14] sm:$0x1] %v3280
      %v3282 = vld [vmem:[#allocation3 + $0x18] sm:$0xf]
      %v3283 = vsel %vm1753, %v3068, %v3282
      %3284 = vst [vmem:[#allocation3 + $0x18] sm:$0xf] %v3283
      %3285 = vst.msk [vmem:[#allocation3 + $0x1c] sm:$0xf] %vm1757, %v3077
      %v3286 = vld [vmem:[#allocation3 + $0x20] sm:$0x1]
      %v3287 = vsel %vm1760, %v3078, %v3286
      %3288 = vst [vmem:[#allocation3 + $0x20] sm:$0x1] %v3287
      %v3289 = vld [vmem:[#allocation3 + $0x24] sm:$0xf]
      %v3290 = vsel %vm1753, %v3085, %v3289
      %3291 = vst [vmem:[#allocation3 + $0x24] sm:$0xf] %v3290
      %3292 = vst.msk [vmem:[#allocation3 + $0x28] sm:$0xf] %vm1757, %v3094
      %v3293 = vld [vmem:[#allocation3 + $0x2c] sm:$0x1]
      %v3294 = vsel %vm1760, %v3095, %v3293
      %3295 = vst [vmem:[#allocation3 + $0x2c] sm:$0x1] %v3294
      %v3296 = vld [vmem:[#allocation3 + $0x30] sm:$0xf]
      %v3297 = vsel %vm1753, %v3102, %v3296
      %3298 = vst [vmem:[#allocation3 + $0x30] sm:$0xf] %v3297
      %3299 = vst.msk [vmem:[#allocation3 + $0x34] sm:$0xf] %vm1757, %v3111
      %v3300 = vld [vmem:[#allocation3 + $0x38] sm:$0x1]
      %v3301 = vsel %vm1760, %v3112, %v3300
      %3302 = vst [vmem:[#allocation3 + $0x38] sm:$0x1] %v3301
      %v3303 = vld [vmem:[#allocation3 + $0x3c] sm:$0xf]
      %v3304 = vsel %vm1753, %v3119, %v3303
      %3305 = vst [vmem:[#allocation3 + $0x3c] sm:$0xf] %v3304
      %3306 = vst.msk [vmem:[#allocation3 + $0x40] sm:$0xf] %vm1757, %v3128
      %v3307 = vld [vmem:[#allocation3 + $0x44] sm:$0x1]
      %v3308 = vsel %vm1760, %v3129, %v3307
      %3309 = vst [vmem:[#allocation3 + $0x44] sm:$0x1] %v3308
      %v3310 = vld [vmem:[#allocation3 + $0x48] sm:$0xf]
      %v3311 = vsel %vm1753, %v3136, %v3310
      %3312 = vst [vmem:[#allocation3 + $0x48] sm:$0xf] %v3311
      %3313 = vst.msk [vmem:[#allocation3 + $0x4c] sm:$0xf] %vm1757, %v3145
      %v3314 = vld [vmem:[#allocation3 + $0x50] sm:$0x1]
      %v3315 = vsel %vm1760, %v3146, %v3314
      %3316 = vst [vmem:[#allocation3 + $0x50] sm:$0x1] %v3315
      %v3317 = vld [vmem:[#allocation3 + $0x54] sm:$0xf]
      %v3318 = vsel %vm1753, %v3153, %v3317
      %3319 = vst [vmem:[#allocation3 + $0x54] sm:$0xf] %v3318
      %3320 = vst.msk [vmem:[#allocation3 + $0x58] sm:$0xf] %vm1757, %v3162
      %v3321 = vld [vmem:[#allocation3 + $0x5c] sm:$0x1]
      %v3322 = vsel %vm1760, %v3163, %v3321
      %3323 = vst [vmem:[#allocation3 + $0x5c] sm:$0x1] %v3322
      %v3324 = vld [vmem:[#allocation3 + $0x60] sm:$0xf]
      %v3325 = vsel %vm1753, %v3170, %v3324
      %3326 = vst [vmem:[#allocation3 + $0x60] sm:$0xf] %v3325
      %3327 = vst.msk [vmem:[#allocation3 + $0x64] sm:$0xf] %vm1757, %v3179
      %v3328 = vld [vmem:[#allocation3 + $0x68] sm:$0x1]
      %v3329 = vsel %vm1760, %v3180, %v3328
      %3330 = vst [vmem:[#allocation3 + $0x68] sm:$0x1] %v3329
      %v3331 = vld [vmem:[#allocation3 + $0x6c] sm:$0xf]
      %v3332 = vsel %vm1753, %v3187, %v3331
      %3333 = vst [vmem:[#allocation3 + $0x6c] sm:$0xf] %v3332
      %3334 = vst.msk [vmem:[#allocation3 + $0x70] sm:$0xf] %vm1757, %v3196
      %v3335 = vld [vmem:[#allocation3 + $0x74] sm:$0x1]
      %v3336 = vsel %vm1760, %v3197, %v3335
      %3337 = vst [vmem:[#allocation3 + $0x74] sm:$0x1] %v3336
      %v3338 = vld [vmem:[#allocation3 + $0x78] sm:$0xf]
      %v3339 = vsel %vm1753, %v3204, %v3338
      %3340 = vst [vmem:[#allocation3 + $0x78] sm:$0xf] %v3339
      %3341 = vst.msk [vmem:[#allocation3 + $0x7c] sm:$0xf] %vm1757, %v3213
      %v3342 = vld [vmem:[#allocation3 + $0x80] sm:$0x1]
      %v3343 = vsel %vm1760, %v3214, %v3342
      %3344 = vst [vmem:[#allocation3 + $0x80] sm:$0x1] %v3343
      %v3345 = vld [vmem:[#allocation3 + $0x84] sm:$0xf]
      %v3346 = vsel %vm1753, %v3221, %v3345
      %3347 = vst [vmem:[#allocation3 + $0x84] sm:$0xf] %v3346
      %3348 = vst.msk [vmem:[#allocation3 + $0x88] sm:$0xf] %vm1757, %v3230
      %v3349 = vld [vmem:[#allocation3 + $0x8c] sm:$0x1]
      %v3350 = vsel %vm1760, %v3231, %v3349
      %3351 = vst [vmem:[#allocation3 + $0x8c] sm:$0x1] %v3350
      %v3352 = vld [vmem:[#allocation3] sm:$0x1]
      %v3353 = vsel %vm1760, 0, %v3352
      %3354 = vst [vmem:[#allocation3] sm:$0x1] %v3353
      %v3355 = vld [vmem:[#allocation3 + $0xc] sm:$0x1]
      %v3356 = vsel %vm1760, 0, %v3355
      %3357 = vst [vmem:[#allocation3 + $0xc] sm:$0x1] %v3356
      %v3358 = vld [vmem:[#allocation3 + $0x18] sm:$0x1]
      %v3359 = vsel %vm1760, 0, %v3358
      %3360 = vst [vmem:[#allocation3 + $0x18] sm:$0x1] %v3359
      %v3361 = vld [vmem:[#allocation3 + $0x24] sm:$0x1]
      %v3362 = vsel %vm1760, 0, %v3361
      %3363 = vst [vmem:[#allocation3 + $0x24] sm:$0x1] %v3362
      %v3364 = vld [vmem:[#allocation3 + $0x30] sm:$0x1]
      %v3365 = vsel %vm1760, 0, %v3364
      %3366 = vst [vmem:[#allocation3 + $0x30] sm:$0x1] %v3365
      %v3367 = vld [vmem:[#allocation3 + $0x3c] sm:$0x1]
      %v3368 = vsel %vm1760, 0, %v3367
      %3369 = vst [vmem:[#allocation3 + $0x3c] sm:$0x1] %v3368
      %v3370 = vld [vmem:[#allocation3 + $0x48] sm:$0x1]
      %v3371 = vsel %vm1760, 0, %v3370
      %3372 = vst [vmem:[#allocation3 + $0x48] sm:$0x1] %v3371
      %v3373 = vld [vmem:[#allocation3 + $0x54] sm:$0x1]
      %v3374 = vsel %vm1760, 0, %v3373
      %3375 = vst [vmem:[#allocation3 + $0x54] sm:$0x1] %v3374
      %v3376 = vld [vmem:[#allocation3 + $0x60] sm:$0x1]
      %v3377 = vsel %vm1760, 0, %v3376
      %3378 = vst [vmem:[#allocation3 + $0x60] sm:$0x1] %v3377
      %v3379 = vld [vmem:[#allocation3 + $0x6c] sm:$0x1]
      %v3380 = vsel %vm1760, 0, %v3379
      %3381 = vst [vmem:[#allocation3 + $0x6c] sm:$0x1] %v3380
      %v3382 = vld [vmem:[#allocation3 + $0x78] sm:$0x1]
      %v3383 = vsel %vm1760, 0, %v3382
      %3384 = vst [vmem:[#allocation3 + $0x78] sm:$0x1] %v3383
      %v3385 = vld [vmem:[#allocation3 + $0x84] sm:$0x1]
      %v3386 = vsel %vm1760, 0, %v3385
      %3387 = vst [vmem:[#allocation3 + $0x84] sm:$0x1] %v3386
      %v3388 = vld [vmem:[#allocation3 + $0x8] sm:$0x1]
      %v3389 = vsel %vm1897, 0, %v3388
      %3390 = vst [vmem:[#allocation3 + $0x8] sm:$0x1] %v3389
      %v3391 = vld [vmem:[#allocation3 + $0x14] sm:$0x1]
      %v3392 = vsel %vm1897, 0, %v3391
      %3393 = vst [vmem:[#allocation3 + $0x14] sm:$0x1] %v3392
      %v3394 = vld [vmem:[#allocation3 + $0x20] sm:$0x1]
      %v3395 = vsel %vm1897, 0, %v3394
      %3396 = vst [vmem:[#allocation3 + $0x20] sm:$0x1] %v3395
      %v3397 = vld [vmem:[#allocation3 + $0x2c] sm:$0x1]
      %v3398 = vsel %vm1897, 0, %v3397
      %3399 = vst [vmem:[#allocation3 + $0x2c] sm:$0x1] %v3398
      %v3400 = vld [vmem:[#allocation3 + $0x38] sm:$0x1]
      %v3401 = vsel %vm1897, 0, %v3400
      %3402 = vst [vmem:[#allocation3 + $0x38] sm:$0x1] %v3401
      %v3403 = vld [vmem:[#allocation3 + $0x44] sm:$0x1]
      %v3404 = vsel %vm1897, 0, %v3403
      %3405 = vst [vmem:[#allocation3 + $0x44] sm:$0x1] %v3404
      %v3406 = vld [vmem:[#allocation3 + $0x50] sm:$0x1]
      %v3407 = vsel %vm1897, 0, %v3406
      %3408 = vst [vmem:[#allocation3 + $0x50] sm:$0x1] %v3407
      %v3409 = vld [vmem:[#allocation3 + $0x5c] sm:$0x1]
      %v3410 = vsel %vm1897, 0, %v3409
      %3411 = vst [vmem:[#allocation3 + $0x5c] sm:$0x1] %v3410
      %v3412 = vld [vmem:[#allocation3 + $0x68] sm:$0x1]
      %v3413 = vsel %vm1897, 0, %v3412
      %3414 = vst [vmem:[#allocation3 + $0x68] sm:$0x1] %v3413
      %v3415 = vld [vmem:[#allocation3 + $0x74] sm:$0x1]
      %v3416 = vsel %vm1897, 0, %v3415
      %3417 = vst [vmem:[#allocation3 + $0x74] sm:$0x1] %v3416
      %v3418 = vld [vmem:[#allocation3 + $0x80] sm:$0x1]
      %v3419 = vsel %vm1897, 0, %v3418
      %3420 = vst [vmem:[#allocation3 + $0x80] sm:$0x1] %v3419
      %v3421 = vld [vmem:[#allocation3 + $0x8c] sm:$0x1]
      %v3422 = vsel %vm1897, 0, %v3421
      %3423 = vst [vmem:[#allocation3 + $0x8c] sm:$0x1] %v3422
      // Predicated region
      $region65: #{_lambda_.1} parent=55 // pred_check
        %p3424 = pneg %p1940
      $region66: #{_lambda_.1} parent=55 // pred_check_branch
        %3426 = sbr.rel (%p3424) target = $region68
      $region67: #{_lambda_.1} parent=55 // pred_region
        %3427 = vst.msk [vmem:[#allocation3] sm:$0xf] %vm1757, 0
        %3428 = vst.msk [vmem:[#allocation3 + $0x4] sm:$0xf] %vm1757, 0
        %vm3429 = vcmask 516096
        %3430 = vst.msk [vmem:[#allocation3 + $0x8] sm:$0x1] %vm3429, 0
        %3431 = vst.msk [vmem:[#allocation3 + $0xc] sm:$0xf] %vm1757, 0
        %3432 = vst.msk [vmem:[#allocation3 + $0x10] sm:$0xf] %vm1757, 0
        %3433 = vst.msk [vmem:[#allocation3 + $0x14] sm:$0x1] %vm3429, 0
      $region68: #{_lambda_.1} parent=55 // pred_fallthru
        _
      // Predicated region
      $region69: #{_lambda_.1} parent=55 // pred_check
        %p3434 = pneg %p1954
      $region70: #{_lambda_.1} parent=55 // pred_check_branch
        %3436 = sbr.rel (%p3434) target = $region72
      $region71: #{_lambda_.1} parent=55 // pred_region
        %s3437 = scalar_lea.vmem [#allocation3], 120
        %3438 = vst.msk [vmem:[%s3437] sm:$0xf] %vm1757, 0
        %3439 = vst.msk [vmem:[%s3437 + $0x4] sm:$0xf] %vm1757, 0
        %vm3440 = vcmask 516096
        %3441 = vst.msk [vmem:[%s3437 + $0x8] sm:$0x1] %vm3440, 0
        %3442 = vst.msk [vmem:[%s3437 + $0xc] sm:$0xf] %vm1757, 0
        %3443 = vst.msk [vmem:[%s3437 + $0x10] sm:$0xf] %vm1757, 0
        %3444 = vst.msk [vmem:[%s3437 + $0x14] sm:$0x1] %vm3440, 0
      $region72: #{_lambda_.1} parent=55 // pred_fallthru
        _
      %v3445 = vld [vmem:[#allocation3] sm:$0xf]
      %v3446 = vld [vmem:[#allocation3 + $0x4] sm:$0xf]
      %v3447 = vld [vmem:[#allocation3 + $0x8] sm:$0x1]
      %v3448 = vld [vmem:[#allocation3 + $0xc] sm:$0xf]
      %v3449 = vld [vmem:[#allocation3 + $0x10] sm:$0xf]
      %v3450 = vld [vmem:[#allocation3 + $0x14] sm:$0x1]
      %v3451 = vld [vmem:[#allocation3 + $0x18] sm:$0xf]
      %v3452 = vld [vmem:[#allocation3 + $0x1c] sm:$0xf]
      %v3453 = vld [vmem:[#allocation3 + $0x20] sm:$0x1]
      %v3454 = vld [vmem:[#allocation3 + $0x24] sm:$0xf]
      %v3455 = vld [vmem:[#allocation3 + $0x28] sm:$0xf]
      %v3456 = vld [vmem:[#allocation3 + $0x2c] sm:$0x1]
      %v3457 = vld [vmem:[#allocation3 + $0x30] sm:$0xf]
      %v3458 = vld [vmem:[#allocation3 + $0x34] sm:$0xf]
      %v3459 = vld [vmem:[#allocation3 + $0x38] sm:$0x1]
      %v3460 = vld [vmem:[#allocation3 + $0x3c] sm:$0xf]
      %v3461 = vld [vmem:[#allocation3 + $0x40] sm:$0xf]
      %v3462 = vld [vmem:[#allocation3 + $0x44] sm:$0x1]
      %v3463 = vld [vmem:[#allocation3 + $0x48] sm:$0xf]
      %v3464 = vld [vmem:[#allocation3 + $0x4c] sm:$0xf]
      %v3465 = vld [vmem:[#allocation3 + $0x50] sm:$0x1]
      %v3466 = vld [vmem:[#allocation3 + $0x54] sm:$0xf]
      %v3467 = vld [vmem:[#allocation3 + $0x58] sm:$0xf]
      %v3468 = vld [vmem:[#allocation3 + $0x5c] sm:$0x1]
      %v3469 = vld [vmem:[#allocation3 + $0x60] sm:$0xf]
      %v3470 = vld [vmem:[#allocation3 + $0x64] sm:$0xf]
      %v3471 = vld [vmem:[#allocation3 + $0x68] sm:$0x1]
      %v3472 = vld [vmem:[#allocation3 + $0x6c] sm:$0xf]
      %v3473 = vld [vmem:[#allocation3 + $0x70] sm:$0xf]
      %v3474 = vld [vmem:[#allocation3 + $0x74] sm:$0x1]
      %v3475 = vld [vmem:[#allocation3 + $0x78] sm:$0xf]
      %v3476 = vld [vmem:[#allocation3 + $0x7c] sm:$0xf]
      %v3477 = vld [vmem:[#allocation3 + $0x80] sm:$0x1]
      %v3478 = vld [vmem:[#allocation3 + $0x84] sm:$0xf]
      %v3479 = vld [vmem:[#allocation3 + $0x88] sm:$0xf]
      %v3480 = vld [vmem:[#allocation3 + $0x8c] sm:$0x1]
      %v3505 = vunpack.c.l.b16 %v3445
      %v3506 = vunpack.c.l.b16 %v3446
      %v3507 = vunpack.c.l.b16 %v3448
      %v3508 = vunpack.c.l.b16 %v3449
      %v3509 = vunpack.c.l.b16 %v3451
      %v3510 = vunpack.c.l.b16 %v3452
      %v3511 = vunpack.c.l.b16 %v3454
      %v3512 = vunpack.c.l.b16 %v3455
      %v3513 = vunpack.c.l.b16 %v3457
      %v3514 = vunpack.c.l.b16 %v3458
      %v3515 = vunpack.c.l.b16 %v3460
      %v3516 = vunpack.c.l.b16 %v3461
      %v3517 = vunpack.c.l.b16 %v3463
      %v3518 = vunpack.c.l.b16 %v3464
      %v3519 = vunpack.c.l.b16 %v3466
      %v3520 = vunpack.c.l.b16 %v3467
      %v3521 = vunpack.c.l.b16 %v3469
      %v3522 = vunpack.c.l.b16 %v3470
      %v3523 = vunpack.c.l.b16 %v3472
      %v3524 = vunpack.c.l.b16 %v3473
      %v3525 = vunpack.c.l.b16 %v3475
      %v3526 = vunpack.c.l.b16 %v3476
      %v3527 = vunpack.c.l.b16 %v3478
      %v3528 = vunpack.c.l.b16 %v3479
      %v3529 = vpack.c.b16 %v3506, %v3505
      %v3530 = vpack.c.b16 %v3508, %v3507
      %v3531 = vpack.c.b16 %v3510, %v3509
      %v3532 = vpack.c.b16 %v3512, %v3511
      %v3533 = vpack.c.b16 %v3514, %v3513
      %v3534 = vpack.c.b16 %v3516, %v3515
      %v3535 = vpack.c.b16 %v3518, %v3517
      %v3536 = vpack.c.b16 %v3520, %v3519
      %v3537 = vpack.c.b16 %v3522, %v3521
      %v3538 = vpack.c.b16 %v3524, %v3523
      %v3539 = vpack.c.b16 %v3526, %v3525
      %v3540 = vpack.c.b16 %v3528, %v3527
      %v3553 = vunpack.c.l.b16 %v3447
      %v3554 = vunpack.c.l.b16 %v3450
      %v3555 = vunpack.c.l.b16 %v3453
      %v3556 = vunpack.c.l.b16 %v3456
      %v3557 = vunpack.c.l.b16 %v3459
      %v3558 = vunpack.c.l.b16 %v3462
      %v3559 = vunpack.c.l.b16 %v3465
      %v3560 = vunpack.c.l.b16 %v3468
      %v3561 = vunpack.c.l.b16 %v3471
      %v3562 = vunpack.c.l.b16 %v3474
      %v3563 = vunpack.c.l.b16 %v3477
      %v3564 = vunpack.c.l.b16 %v3480
      %v3565 = vpack.c.b16 %v3553, %v3553
      %v3566 = vpack.c.b16 %v3554, %v3554
      %v3567 = vpack.c.b16 %v3555, %v3555
      %v3568 = vpack.c.b16 %v3556, %v3556
      %v3569 = vpack.c.b16 %v3557, %v3557
      %v3570 = vpack.c.b16 %v3558, %v3558
      %v3571 = vpack.c.b16 %v3559, %v3559
      %v3572 = vpack.c.b16 %v3560, %v3560
      %v3573 = vpack.c.b16 %v3561, %v3561
      %v3574 = vpack.c.b16 %v3562, %v3562
      %v3575 = vpack.c.b16 %v3563, %v3563
      %v3576 = vpack.c.b16 %v3564, %v3564
      %v3578 = vshrl.u32 %v3529, 16
      %v3580 = vshll.u32 %v3529, 16
      %v3582 = vrot.slane %v3580, 1
      %v3583 = vor.u32 %v3578, %v3582
      %v3585 = vshll.u32 %v3565, 16
      %v3587 = vrot.slane %v3585, 1
      %v3588 = vsel %vm544, %v3583, %v3587
      %v3590 = vshrl.u32 %v3530, 16
      %v3592 = vshll.u32 %v3530, 16
      %v3594 = vrot.slane %v3592, 1
      %v3595 = vor.u32 %v3590, %v3594
      %v3597 = vshll.u32 %v3566, 16
      %v3599 = vrot.slane %v3597, 1
      %v3600 = vsel %vm544, %v3595, %v3599
      %v3602 = vshrl.u32 %v3531, 16
      %v3604 = vshll.u32 %v3531, 16
      %v3606 = vrot.slane %v3604, 1
      %v3607 = vor.u32 %v3602, %v3606
      %v3609 = vshll.u32 %v3567, 16
      %v3611 = vrot.slane %v3609, 1
      %v3612 = vsel %vm544, %v3607, %v3611
      %v3614 = vshrl.u32 %v3532, 16
      %v3616 = vshll.u32 %v3532, 16
      %v3618 = vrot.slane %v3616, 1
      %v3619 = vor.u32 %v3614, %v3618
      %v3621 = vshll.u32 %v3568, 16
      %v3623 = vrot.slane %v3621, 1
      %v3624 = vsel %vm544, %v3619, %v3623
      %v3626 = vshrl.u32 %v3533, 16
      %v3628 = vshll.u32 %v3533, 16
      %v3630 = vrot.slane %v3628, 1
      %v3631 = vor.u32 %v3626, %v3630
      %v3633 = vshll.u32 %v3569, 16
      %v3635 = vrot.slane %v3633, 1
      %v3636 = vsel %vm544, %v3631, %v3635
      %v3638 = vshrl.u32 %v3534, 16
      %v3640 = vshll.u32 %v3534, 16
      %v3642 = vrot.slane %v3640, 1
      %v3643 = vor.u32 %v3638, %v3642
      %v3645 = vshll.u32 %v3570, 16
      %v3647 = vrot.slane %v3645, 1
      %v3648 = vsel %vm544, %v3643, %v3647
      %v3650 = vshrl.u32 %v3535, 16
      %v3652 = vshll.u32 %v3535, 16
      %v3654 = vrot.slane %v3652, 1
      %v3655 = vor.u32 %v3650, %v3654
      %v3657 = vshll.u32 %v3571, 16
      %v3659 = vrot.slane %v3657, 1
      %v3660 = vsel %vm544, %v3655, %v3659
      %v3662 = vshrl.u32 %v3536, 16
      %v3664 = vshll.u32 %v3536, 16
      %v3666 = vrot.slane %v3664, 1
      %v3667 = vor.u32 %v3662, %v3666
      %v3669 = vshll.u32 %v3572, 16
      %v3671 = vrot.slane %v3669, 1
      %v3672 = vsel %vm544, %v3667, %v3671
      %v3674 = vshrl.u32 %v3537, 16
      %v3676 = vshll.u32 %v3537, 16
      %v3678 = vrot.slane %v3676, 1
      %v3679 = vor.u32 %v3674, %v3678
      %v3681 = vshll.u32 %v3573, 16
      %v3683 = vrot.slane %v3681, 1
      %v3684 = vsel %vm544, %v3679, %v3683
      %v3686 = vshrl.u32 %v3538, 16
      %v3688 = vshll.u32 %v3538, 16
      %v3690 = vrot.slane %v3688, 1
      %v3691 = vor.u32 %v3686, %v3690
      %v3693 = vshll.u32 %v3574, 16
      %v3695 = vrot.slane %v3693, 1
      %v3696 = vsel %vm544, %v3691, %v3695
      %v3698 = vshrl.u32 %v3539, 16
      %v3700 = vshll.u32 %v3539, 16
      %v3702 = vrot.slane %v3700, 1
      %v3703 = vor.u32 %v3698, %v3702
      %v3705 = vshll.u32 %v3575, 16
      %v3707 = vrot.slane %v3705, 1
      %v3708 = vsel %vm544, %v3703, %v3707
      %v3710 = vshrl.u32 %v3540, 16
      %v3712 = vshll.u32 %v3540, 16
      %v3714 = vrot.slane %v3712, 1
      %v3715 = vor.u32 %v3710, %v3714
      %v3717 = vshll.u32 %v3576, 16
      %v3719 = vrot.slane %v3717, 1
      %v3720 = vsel %vm544, %v3715, %v3719
      %3721 = vrot.lane.b32.xlu0 %v3588, 64
      %v3722 = vpop.permute.xlu0 %3721
      %3723 = vrot.lane.b32.xlu0 %v3600, 64
      %v3724 = vpop.permute.xlu0 %3723
      %3725 = vrot.lane.b32.xlu0 %v3612, 64
      %v3726 = vpop.permute.xlu0 %3725
      %3727 = vrot.lane.b32.xlu0 %v3624, 64
      %v3728 = vpop.permute.xlu0 %3727
      %3729 = vrot.lane.b32.xlu0 %v3636, 64
      %v3730 = vpop.permute.xlu0 %3729
      %3731 = vrot.lane.b32.xlu0 %v3648, 64
      %v3732 = vpop.permute.xlu0 %3731
      %3733 = vrot.lane.b32.xlu0 %v3660, 64
      %v3734 = vpop.permute.xlu0 %3733
      %3735 = vrot.lane.b32.xlu0 %v3672, 64
      %v3736 = vpop.permute.xlu0 %3735
      %3737 = vrot.lane.b32.xlu0 %v3684, 64
      %v3738 = vpop.permute.xlu0 %3737
      %3739 = vrot.lane.b32.xlu0 %v3696, 64
      %v3740 = vpop.permute.xlu0 %3739
      %3741 = vrot.lane.b32.xlu0 %v3708, 64
      %v3742 = vpop.permute.xlu0 %3741
      %3743 = vrot.lane.b32.xlu0 %v3720, 64
      %v3744 = vpop.permute.xlu0 %3743
      %v3745 = vrot.slane %v3529, 1
      %v3746 = vrot.slane %v3565, 1
      %v3747 = vsel %vm769, %v3745, %v3746
      %v3748 = vrot.slane %v3530, 1
      %v3749 = vrot.slane %v3566, 1
      %v3750 = vsel %vm769, %v3748, %v3749
      %v3751 = vrot.slane %v3531, 1
      %v3752 = vrot.slane %v3567, 1
      %v3753 = vsel %vm769, %v3751, %v3752
      %v3754 = vrot.slane %v3532, 1
      %v3755 = vrot.slane %v3568, 1
      %v3756 = vsel %vm769, %v3754, %v3755
      %v3757 = vrot.slane %v3533, 1
      %v3758 = vrot.slane %v3569, 1
      %v3759 = vsel %vm769, %v3757, %v3758
      %v3760 = vrot.slane %v3534, 1
      %v3761 = vrot.slane %v3570, 1
      %v3762 = vsel %vm769, %v3760, %v3761
      %v3763 = vrot.slane %v3535, 1
      %v3764 = vrot.slane %v3571, 1
      %v3765 = vsel %vm769, %v3763, %v3764
      %v3766 = vrot.slane %v3536, 1
      %v3767 = vrot.slane %v3572, 1
      %v3768 = vsel %vm769, %v3766, %v3767
      %v3769 = vrot.slane %v3537, 1
      %v3770 = vrot.slane %v3573, 1
      %v3771 = vsel %vm769, %v3769, %v3770
      %v3772 = vrot.slane %v3538, 1
      %v3773 = vrot.slane %v3574, 1
      %v3774 = vsel %vm769, %v3772, %v3773
      %v3775 = vrot.slane %v3539, 1
      %v3776 = vrot.slane %v3575, 1
      %v3777 = vsel %vm769, %v3775, %v3776
      %v3778 = vrot.slane %v3540, 1
      %v3779 = vrot.slane %v3576, 1
      %v3780 = vsel %vm769, %v3778, %v3779
      %v3782 = vsel %vm2361, %v3529, %v3722
      %v3785 = vsel %vm2361, %v3530, %v3724
      %v3788 = vsel %vm2361, %v3531, %v3726
      %v3791 = vsel %vm2361, %v3532, %v3728
      %v3794 = vsel %vm2361, %v3533, %v3730
      %v3797 = vsel %vm2361, %v3534, %v3732
      %v3800 = vsel %vm2361, %v3535, %v3734
      %v3803 = vsel %vm2361, %v3536, %v3736
      %v3806 = vsel %vm2361, %v3537, %v3738
      %v3809 = vsel %vm2361, %v3538, %v3740
      %v3812 = vsel %vm2361, %v3539, %v3742
      %v3815 = vsel %vm2361, %v3540, %v3744
      %v3817 = vld [vmem:[%s5] sm:$0xff]
      %v3818 = vld [vmem:[%s5 + $0x8] sm:$0xff]
      %v3819 = vld [vmem:[%s5 + $0x10] sm:$0xff]
      %v3820 = vld [vmem:[%s5 + $0x18] sm:$0xff]
      %v3821 = vld [vmem:[%s5 + $0x20] sm:$0xff]
      %v3822 = vld [vmem:[%s5 + $0x28] sm:$0xff]
      %v3823 = vld [vmem:[%s5 + $0x30] sm:$0xff]
      %v3824 = vld [vmem:[%s5 + $0x38] sm:$0xff]
      %v3825 = vld [vmem:[%s5 + $0x40] sm:$0xff]
      %v3826 = vld [vmem:[%s5 + $0x48] sm:$0xff]
      %v3827 = vld [vmem:[%s5 + $0x50] sm:$0xff]
      %v3828 = vld [vmem:[%s5 + $0x58] sm:$0xff]
      %v3829 = vld [vmem:[%s5 + $0x60] sm:$0xff]
      %v3830 = vld [vmem:[%s5 + $0x68] sm:$0xff]
      %v3831 = vld [vmem:[%s5 + $0x70] sm:$0xff]
      %v3832 = vld [vmem:[%s5 + $0x78] sm:$0xff]
      %v3833 = vld [vmem:[%s5 + $0x80] sm:$0xff]
      %v3834 = vld [vmem:[%s5 + $0x88] sm:$0xff]
      %v3835 = vld [vmem:[%s5 + $0x90] sm:$0xff]
      %v3836 = vld [vmem:[%s5 + $0x98] sm:$0xff]
      %v3837 = vld [vmem:[%s5 + $0xa0] sm:$0xff]
      %v3838 = vld [vmem:[%s5 + $0xa8] sm:$0xff]
      %v3839 = vld [vmem:[%s5 + $0xb0] sm:$0xff]
      %v3840 = vld [vmem:[%s5 + $0xb8] sm:$0xff]
      %v3865 = vunpack.c.l.b16 %v3817
      %v3866 = vunpack.c.h.b16 %v3817
      %v3867 = vunpack.c.l.b16 %v3818
      %v3868 = vunpack.c.h.b16 %v3818
      %v3869 = vunpack.c.l.b16 %v3819
      %v3870 = vunpack.c.h.b16 %v3819
      %v3871 = vunpack.c.l.b16 %v3820
      %v3872 = vunpack.c.h.b16 %v3820
      %v3873 = vunpack.c.l.b16 %v3821
      %v3874 = vunpack.c.h.b16 %v3821
      %v3875 = vunpack.c.l.b16 %v3822
      %v3876 = vunpack.c.h.b16 %v3822
      %v3877 = vunpack.c.l.b16 %v3823
      %v3878 = vunpack.c.h.b16 %v3823
      %v3879 = vunpack.c.l.b16 %v3824
      %v3880 = vunpack.c.h.b16 %v3824
      %v3881 = vunpack.c.l.b16 %v3825
      %v3882 = vunpack.c.h.b16 %v3825
      %v3883 = vunpack.c.l.b16 %v3826
      %v3884 = vunpack.c.h.b16 %v3826
      %v3885 = vunpack.c.l.b16 %v3827
      %v3886 = vunpack.c.h.b16 %v3827
      %v3887 = vunpack.c.l.b16 %v3828
      %v3888 = vunpack.c.h.b16 %v3828
      %v3889 = vunpack.c.l.b16 %v3829
      %v3890 = vunpack.c.h.b16 %v3829
      %v3891 = vunpack.c.l.b16 %v3830
      %v3892 = vunpack.c.h.b16 %v3830
      %v3893 = vunpack.c.l.b16 %v3831
      %v3894 = vunpack.c.h.b16 %v3831
      %v3895 = vunpack.c.l.b16 %v3832
      %v3896 = vunpack.c.h.b16 %v3832
      %v3897 = vunpack.c.l.b16 %v3833
      %v3898 = vunpack.c.h.b16 %v3833
      %v3899 = vunpack.c.l.b16 %v3834
      %v3900 = vunpack.c.h.b16 %v3834
      %v3901 = vunpack.c.l.b16 %v3835
      %v3902 = vunpack.c.h.b16 %v3835
      %v3903 = vunpack.c.l.b16 %v3836
      %v3904 = vunpack.c.h.b16 %v3836
      %v3905 = vunpack.c.l.b16 %v3837
      %v3906 = vunpack.c.h.b16 %v3837
      %v3907 = vunpack.c.l.b16 %v3838
      %v3908 = vunpack.c.h.b16 %v3838
      %v3909 = vunpack.c.l.b16 %v3839
      %v3910 = vunpack.c.h.b16 %v3839
      %v3911 = vunpack.c.l.b16 %v3840
      %v3912 = vunpack.c.h.b16 %v3840
      %v3913 = vpack.c.b16 %v3867, %v3865
      %v3914 = vpack.c.b16 %v3868, %v3866
      %v3915 = vpack.c.b16 %v3871, %v3869
      %v3916 = vpack.c.b16 %v3872, %v3870
      %v3917 = vpack.c.b16 %v3875, %v3873
      %v3918 = vpack.c.b16 %v3876, %v3874
      %v3919 = vpack.c.b16 %v3879, %v3877
      %v3920 = vpack.c.b16 %v3880, %v3878
      %v3921 = vpack.c.b16 %v3883, %v3881
      %v3922 = vpack.c.b16 %v3884, %v3882
      %v3923 = vpack.c.b16 %v3887, %v3885
      %v3924 = vpack.c.b16 %v3888, %v3886
      %v3925 = vpack.c.b16 %v3891, %v3889
      %v3926 = vpack.c.b16 %v3892, %v3890
      %v3927 = vpack.c.b16 %v3895, %v3893
      %v3928 = vpack.c.b16 %v3896, %v3894
      %v3929 = vpack.c.b16 %v3899, %v3897
      %v3930 = vpack.c.b16 %v3900, %v3898
      %v3931 = vpack.c.b16 %v3903, %v3901
      %v3932 = vpack.c.b16 %v3904, %v3902
      %v3933 = vpack.c.b16 %v3907, %v3905
      %v3934 = vpack.c.b16 %v3908, %v3906
      %v3935 = vpack.c.b16 %v3911, %v3909
      %v3936 = vpack.c.b16 %v3912, %v3910
      %v3962 = vsel %vm2361, %v3747, 0
      %v3965 = vsel %vm2361, %v3750, 0
      %v3968 = vsel %vm2361, %v3753, 0
      %v3971 = vsel %vm2361, %v3756, 0
      %v3974 = vsel %vm2361, %v3759, 0
      %v3977 = vsel %vm2361, %v3762, 0
      %v3980 = vsel %vm2361, %v3765, 0
      %v3983 = vsel %vm2361, %v3768, 0
      %v3986 = vsel %vm2361, %v3771, 0
      %v3989 = vsel %vm2361, %v3774, 0
      %v3992 = vsel %vm2361, %v3777, 0
      %v3995 = vsel %vm2361, %v3780, 0
      %3997 = vmatprep.subr.bf16.mxu0 %v3914
      %3998 = vmatpush1.bf16.msra.mxu0 %v3913
      %3999 = vmatprep.subr.bf16.mxu0 %v3916
      %4000 = vmatpush1.bf16.msra.mxu0 %v3915
      %4001 = vmatprep.subr.bf16.mxu0 %v3918
      %4002 = vmatpush1.bf16.msra.mxu0 %v3917
      %4003 = vmatprep.subr.bf16.mxu0 %v3920
      %4004 = vmatpush1.bf16.msra.mxu0 %v3919
      %4005 = vmatprep.subr.bf16.mxu0 %v3922
      %4006 = vmatpush1.bf16.msra.mxu0 %v3921
      %4007 = vmatprep.subr.bf16.mxu0 %v3924
      %4008 = vmatpush1.bf16.msra.mxu0 %v3923
      %4009 = vmatprep.subr.bf16.mxu0 %v3926
      %4010 = vmatpush1.bf16.msra.mxu0 %v3925
      %4011 = vmatprep.subr.bf16.mxu0 %v3928
      %4012 = vmatpush1.bf16.msra.mxu0 %v3927
      %4013 = vmatprep.subr.bf16.mxu0 %v3930
      %4014 = vmatpush1.bf16.msra.mxu0 %v3929
      %4015 = vmatprep.subr.bf16.mxu0 %v3932
      %4016 = vmatpush1.bf16.msra.mxu0 %v3931
      %4017 = vmatprep.subr.bf16.mxu0 %v3934
      %4018 = vmatpush1.bf16.msra.mxu0 %v3933
      %4019 = vmatprep.subr.bf16.mxu0 %v3936
      %4020 = vmatpush1.bf16.msra.mxu0 %v3935
      %4021 = vmatprep.subr.bf16.mxu0 0
      %4022 = vmatpush1.bf16.msra.mxu0 0
      %4023 = vmatprep.subr.bf16.mxu0 0
      %4024 = vmatpush1.bf16.msra.mxu0 0
      %4025 = vmatprep.subr.bf16.mxu0 0
      %4026 = vmatpush1.bf16.msra.mxu0 0
      %4027 = vmatprep.subr.bf16.mxu0 0
      %4028 = vmatpush1.bf16.msra.mxu0 0
      %4029 = vmatprep.mubr.bf16.mxu0 %v3962
      %4030 = vmatmul.mubr.bf16.gmra.mrb[0].mxu0 %v3782
      %v4031 = vpop.f32.mrb[0].mxu0
      %v4032 = vadd.f32 0.0, %v4031
      %v4033 = vpop.f32.mrb[0].mxu0
      %v4034 = vpop.f32.mrb[0].mxu0
      %v4035 = vadd.f32 0.0, %v4034
      %v4036 = vpop.f32.mrb[0].mxu0
      %4037 = vmatprep.mubr.bf16.mxu0 %v3965
      %4038 = vmatmul.mubr.bf16.gmra.mrb[0].mxu0 %v3785
      %v4039 = vpop.f32.mrb[0].mxu0
      %v4040 = vadd.f32 0.0, %v4039
      %v4041 = vpop.f32.mrb[0].mxu0
      %v4042 = vpop.f32.mrb[0].mxu0
      %v4043 = vadd.f32 0.0, %v4042
      %v4044 = vpop.f32.mrb[0].mxu0
      %4045 = vmatprep.mubr.bf16.mxu0 %v3968
      %4046 = vmatmul.mubr.bf16.gmra.mrb[0].mxu0 %v3788
      %v4047 = vpop.f32.mrb[0].mxu0
      %v4048 = vadd.f32 0.0, %v4047
      %v4049 = vpop.f32.mrb[0].mxu0
      %v4050 = vadd.f32 0.0, %v4049
      %v4051 = vpop.f32.mrb[0].mxu0
      %v4052 = vadd.f32 0.0, %v4051
      %v4053 = vpop.f32.mrb[0].mxu0
      %v4054 = vadd.f32 0.0, %v4053
      %4055 = vmatprep.mubr.bf16.mxu0 %v3971
      %4056 = vmatmul.mubr.bf16.gmra.mrb[0].mxu0 %v3791
      %v4057 = vpop.f32.mrb[0].mxu0
      %v4058 = vadd.f32 0.0, %v4057
      %v4059 = vpop.f32.mrb[0].mxu0
      %v4060 = vadd.f32 0.0, %v4059
      %v4061 = vpop.f32.mrb[0].mxu0
      %v4062 = vadd.f32 0.0, %v4061
      %v4063 = vpop.f32.mrb[0].mxu0
      %v4064 = vadd.f32 0.0, %v4063
      %4065 = vmatprep.mubr.bf16.mxu0 %v3974
      %4066 = vmatmul.mubr.bf16.gmra.mrb[0].mxu0 %v3794
      %v4067 = vpop.f32.mrb[0].mxu0
      %v4068 = vadd.f32 0.0, %v4067
      %v4069 = vpop.f32.mrb[0].mxu0
      %v4070 = vadd.f32 0.0, %v4069
      %v4071 = vpop.f32.mrb[0].mxu0
      %v4072 = vadd.f32 0.0, %v4071
      %v4073 = vpop.f32.mrb[0].mxu0
      %v4074 = vadd.f32 0.0, %v4073
      %4075 = vmatprep.mubr.bf16.mxu0 %v3977
      %4076 = vmatmul.mubr.bf16.gmra.mrb[0].mxu0 %v3797
      %v4077 = vpop.f32.mrb[0].mxu0
      %v4078 = vadd.f32 0.0, %v4077
      %v4079 = vpop.f32.mrb[0].mxu0
      %v4080 = vadd.f32 0.0, %v4079
      %v4081 = vpop.f32.mrb[0].mxu0
      %v4082 = vadd.f32 0.0, %v4081
      %v4083 = vpop.f32.mrb[0].mxu0
      %v4084 = vadd.f32 0.0, %v4083
      %4085 = vmatprep.mubr.bf16.mxu0 %v3980
      %4086 = vmatmul.mubr.bf16.gmra.mrb[0].mxu0 %v3800
      %v4087 = vpop.f32.mrb[0].mxu0
      %v4088 = vadd.f32 0.0, %v4087
      %v4089 = vpop.f32.mrb[0].mxu0
      %v4090 = vadd.f32 0.0, %v4089
      %v4091 = vpop.f32.mrb[0].mxu0
      %v4092 = vadd.f32 0.0, %v4091
      %v4093 = vpop.f32.mrb[0].mxu0
      %v4094 = vadd.f32 0.0, %v4093
      %4095 = vmatprep.mubr.bf16.mxu0 %v3983
      %4096 = vmatmul.mubr.bf16.gmra.mrb[0].mxu0 %v3803
      %v4097 = vpop.f32.mrb[0].mxu0
      %v4098 = vadd.f32 0.0, %v4097
      %v4099 = vpop.f32.mrb[0].mxu0
      %v4100 = vadd.f32 0.0, %v4099
      %v4101 = vpop.f32.mrb[0].mxu0
      %v4102 = vadd.f32 0.0, %v4101
      %v4103 = vpop.f32.mrb[0].mxu0
      %v4104 = vadd.f32 0.0, %v4103
      %4105 = vmatprep.mubr.bf16.mxu0 %v3986
      %4106 = vmatmul.mubr.bf16.gmra.mrb[0].mxu0 %v3806
      %v4107 = vpop.f32.mrb[0].mxu0
      %v4108 = vadd.f32 0.0, %v4107
      %v4109 = vpop.f32.mrb[0].mxu0
      %v4110 = vadd.f32 0.0, %v4109
      %v4111 = vpop.f32.mrb[0].mxu0
      %v4112 = vadd.f32 0.0, %v4111
      %v4113 = vpop.f32.mrb[0].mxu0
      %v4114 = vadd.f32 0.0, %v4113
      %4115 = vmatprep.mubr.bf16.mxu0 %v3989
      %4116 = vmatmul.mubr.bf16.gmra.mrb[0].mxu0 %v3809
      %v4117 = vpop.f32.mrb[0].mxu0
      %v4118 = vadd.f32 0.0, %v4117
      %v4119 = vpop.f32.mrb[0].mxu0
      %v4120 = vadd.f32 0.0, %v4119
      %v4121 = vpop.f32.mrb[0].mxu0
      %v4122 = vadd.f32 0.0, %v4121
      %v4123 = vpop.f32.mrb[0].mxu0
      %v4124 = vadd.f32 0.0, %v4123
      %4125 = vmatprep.mubr.bf16.mxu0 %v3992
      %4126 = vmatmul.mubr.bf16.gmra.mrb[0].mxu0 %v3812
      %v4127 = vpop.f32.mrb[0].mxu0
      %v4128 = vadd.f32 0.0, %v4127
      %v4129 = vpop.f32.mrb[0].mxu0
      %v4130 = vadd.f32 0.0, %v4129
      %v4131 = vpop.f32.mrb[0].mxu0
      %v4132 = vadd.f32 0.0, %v4131
      %v4133 = vpop.f32.mrb[0].mxu0
      %v4134 = vadd.f32 0.0, %v4133
      %4135 = vmatprep.mubr.bf16.mxu0 %v3995
      %4136 = vmatmul.mubr.bf16.gmra.mrb[0].mxu0 %v3815
      %v4137 = vpop.f32.mrb[0].mxu0
      %v4138 = vpop.f32.mrb[0].mxu0
      %v4139 = vadd.f32 0.0, %v4138
      %v4140 = vpop.f32.mrb[0].mxu0
      %v4141 = vpop.f32.mrb[0].mxu0
      %v4142 = vadd.f32 0.0, %v4141
      %4143 = vdwg.mxu0
      %4164 = vrot.lane.b32.xlu0 %v4040, 64
      %v4165 = vpop.permute.xlu0 %4164
      %4166 = vrot.lane.b32.xlu0 %v4043, 64
      %v4167 = vpop.permute.xlu0 %4166
      %4168 = vrot.lane.b32.xlu0 %v4048, 64
      %v4169 = vpop.permute.xlu0 %4168
      %4170 = vrot.lane.b32.xlu0 %v4052, 64
      %v4171 = vpop.permute.xlu0 %4170
      %4172 = vrot.lane.b32.xlu0 %v4058, 64
      %v4173 = vpop.permute.xlu0 %4172
      %4174 = vrot.lane.b32.xlu0 %v4062, 64
      %v4175 = vpop.permute.xlu0 %4174
      %4176 = vrot.lane.b32.xlu0 %v4068, 64
      %v4177 = vpop.permute.xlu0 %4176
      %4178 = vrot.lane.b32.xlu0 %v4072, 64
      %v4179 = vpop.permute.xlu0 %4178
      %4180 = vrot.lane.b32.xlu0 %v4078, 64
      %v4181 = vpop.permute.xlu0 %4180
      %4182 = vrot.lane.b32.xlu0 %v4082, 64
      %v4183 = vpop.permute.xlu0 %4182
      %4184 = vrot.lane.b32.xlu0 %v4088, 64
      %v4185 = vpop.permute.xlu0 %4184
      %4186 = vrot.lane.b32.xlu0 %v4092, 64
      %v4187 = vpop.permute.xlu0 %4186
      %4188 = vrot.lane.b32.xlu0 %v4098, 64
      %v4189 = vpop.permute.xlu0 %4188
      %4190 = vrot.lane.b32.xlu0 %v4102, 64
      %v4191 = vpop.permute.xlu0 %4190
      %4192 = vrot.lane.b32.xlu0 %v4108, 64
      %v4193 = vpop.permute.xlu0 %4192
      %4194 = vrot.lane.b32.xlu0 %v4112, 64
      %v4195 = vpop.permute.xlu0 %4194
      %4196 = vrot.lane.b32.xlu0 %v4118, 64
      %v4197 = vpop.permute.xlu0 %4196
      %4198 = vrot.lane.b32.xlu0 %v4122, 64
      %v4199 = vpop.permute.xlu0 %4198
      %4200 = vrot.lane.b32.xlu0 %v4128, 64
      %v4201 = vpop.permute.xlu0 %4200
      %4202 = vrot.lane.b32.xlu0 %v4132, 64
      %v4203 = vpop.permute.xlu0 %4202
      %v4224 = vadd.f32 %v4032, %v4165
      %v4225 = vadd.f32 %v4035, %v4167
      %v4226 = vadd.f32 %v4040, %v4169
      %v4227 = vadd.f32 %v4043, %v4171
      %v4228 = vadd.f32 %v4048, %v4173
      %v4229 = vadd.f32 %v4052, %v4175
      %v4230 = vadd.f32 %v4058, %v4177
      %v4231 = vadd.f32 %v4062, %v4179
      %v4232 = vadd.f32 %v4068, %v4181
      %v4233 = vadd.f32 %v4072, %v4183
      %v4234 = vadd.f32 %v4078, %v4185
      %v4235 = vadd.f32 %v4082, %v4187
      %v4236 = vadd.f32 %v4088, %v4189
      %v4237 = vadd.f32 %v4092, %v4191
      %v4238 = vadd.f32 %v4098, %v4193
      %v4239 = vadd.f32 %v4102, %v4195
      %v4240 = vadd.f32 %v4108, %v4197
      %v4241 = vadd.f32 %v4112, %v4199
      %v4242 = vadd.f32 %v4118, %v4201
      %v4243 = vadd.f32 %v4122, %v4203
      %v4244 = vadd.f32 %v4224, %v4050
      %v4245 = vadd.f32 %v4225, %v4054
      %v4246 = vadd.f32 %v4226, %v4060
      %v4247 = vadd.f32 %v4227, %v4064
      %v4248 = vadd.f32 %v4228, %v4070
      %v4249 = vadd.f32 %v4229, %v4074
      %v4250 = vadd.f32 %v4230, %v4080
      %v4251 = vadd.f32 %v4231, %v4084
      %v4252 = vadd.f32 %v4232, %v4090
      %v4253 = vadd.f32 %v4233, %v4094
      %v4254 = vadd.f32 %v4234, %v4100
      %v4255 = vadd.f32 %v4235, %v4104
      %v4256 = vadd.f32 %v4236, %v4110
      %v4257 = vadd.f32 %v4237, %v4114
      %v4258 = vadd.f32 %v4238, %v4120
      %v4259 = vadd.f32 %v4239, %v4124
      %v4260 = vadd.f32 %v4240, %v4130
      %v4261 = vadd.f32 %v4241, %v4134
      %v4262 = vadd.f32 %v4242, %v4139
      %v4263 = vadd.f32 %v4243, %v4142
      %v4264 = vld [vmem:[%s6] sm:$0x1]
      %v4266 = vlaneseq
      %v4267 = vshrl.u32 %v4266, 7
      %v4268 = vsub.s32 0, %v4267
      %v4269 = vrot.slane %v4264, %v4268
      %v4271 = vadd.f32 %v4244, %v4269
      %v4272 = vadd.f32 %v4245, %v4269
      %v4273 = vadd.f32 %v4246, %v4269
      %v4274 = vadd.f32 %v4247, %v4269
      %v4275 = vadd.f32 %v4248, %v4269
      %v4276 = vadd.f32 %v4249, %v4269
      %v4277 = vadd.f32 %v4250, %v4269
      %v4278 = vadd.f32 %v4251, %v4269
      %v4279 = vadd.f32 %v4252, %v4269
      %v4280 = vadd.f32 %v4253, %v4269
      %v4281 = vadd.f32 %v4254, %v4269
      %v4282 = vadd.f32 %v4255, %v4269
      %v4283 = vadd.f32 %v4256, %v4269
      %v4284 = vadd.f32 %v4257, %v4269
      %v4285 = vadd.f32 %v4258, %v4269
      %v4286 = vadd.f32 %v4259, %v4269
      %v4287 = vadd.f32 %v4260, %v4269
      %v4288 = vadd.f32 %v4261, %v4269
      %v4289 = vadd.f32 %v4262, %v4269
      %v4290 = vadd.f32 %v4263, %v4269
      %v4291 = vmax.f32 %v4271, 0.0
      %v4292 = vmax.f32 %v4272, 0.0
      %v4293 = vmax.f32 %v4273, 0.0
      %v4294 = vmax.f32 %v4274, 0.0
      %v4295 = vmax.f32 %v4275, 0.0
      %v4296 = vmax.f32 %v4276, 0.0
      %v4297 = vmax.f32 %v4277, 0.0
      %v4298 = vmax.f32 %v4278, 0.0
      %v4299 = vmax.f32 %v4279, 0.0
      %v4300 = vmax.f32 %v4280, 0.0
      %v4301 = vmax.f32 %v4281, 0.0
      %v4302 = vmax.f32 %v4282, 0.0
      %v4303 = vmax.f32 %v4283, 0.0
      %v4304 = vmax.f32 %v4284, 0.0
      %v4305 = vmax.f32 %v4285, 0.0
      %v4306 = vmax.f32 %v4286, 0.0
      %v4307 = vmax.f32 %v4287, 0.0
      %v4308 = vmax.f32 %v4288, 0.0
      %v4309 = vmax.f32 %v4289, 0.0
      %v4310 = vmax.f32 %v4290, 0.0
      %v4311 = vpack.c.bf16 %v4292, %v4291
      %v4312 = vpack.c.bf16 %v4294, %v4293
      %v4313 = vpack.c.bf16 %v4296, %v4295
      %v4314 = vpack.c.bf16 %v4298, %v4297
      %v4315 = vpack.c.bf16 %v4300, %v4299
      %v4316 = vpack.c.bf16 %v4302, %v4301
      %v4317 = vpack.c.bf16 %v4304, %v4303
      %v4318 = vpack.c.bf16 %v4306, %v4305
      %v4319 = vpack.c.bf16 %v4308, %v4307
      %v4320 = vpack.c.bf16 %v4310, %v4309
      %v4331 = vunpack.c.l.b16 %v4311
      %v4332 = vunpack.c.h.b16 %v4311
      %v4333 = vunpack.c.l.b16 %v4312
      %v4334 = vunpack.c.h.b16 %v4312
      %v4335 = vunpack.c.l.b16 %v4313
      %v4336 = vunpack.c.h.b16 %v4313
      %v4337 = vunpack.c.l.b16 %v4314
      %v4338 = vunpack.c.h.b16 %v4314
      %v4339 = vunpack.c.l.b16 %v4315
      %v4340 = vunpack.c.h.b16 %v4315
      %v4341 = vunpack.c.l.b16 %v4316
      %v4342 = vunpack.c.h.b16 %v4316
      %v4343 = vunpack.c.l.b16 %v4317
      %v4344 = vunpack.c.h.b16 %v4317
      %v4345 = vunpack.c.l.b16 %v4318
      %v4346 = vunpack.c.h.b16 %v4318
      %v4347 = vunpack.c.l.b16 %v4319
      %v4348 = vunpack.c.h.b16 %v4319
      %v4349 = vunpack.c.l.b16 %v4320
      %v4350 = vunpack.c.h.b16 %v4320
      %v4351 = vpack.c.b16 %v4331, %v4331
      %v4352 = vpack.c.b16 %v4332, %v4332
      %v4353 = vpack.c.b16 %v4333, %v4333
      %v4354 = vpack.c.b16 %v4334, %v4334
      %v4355 = vpack.c.b16 %v4335, %v4335
      %v4356 = vpack.c.b16 %v4336, %v4336
      %v4357 = vpack.c.b16 %v4337, %v4337
      %v4358 = vpack.c.b16 %v4338, %v4338
      %v4359 = vpack.c.b16 %v4339, %v4339
      %v4360 = vpack.c.b16 %v4340, %v4340
      %v4361 = vpack.c.b16 %v4341, %v4341
      %v4362 = vpack.c.b16 %v4342, %v4342
      %v4363 = vpack.c.b16 %v4343, %v4343
      %v4364 = vpack.c.b16 %v4344, %v4344
      %v4365 = vpack.c.b16 %v4345, %v4345
      %v4366 = vpack.c.b16 %v4346, %v4346
      %v4367 = vpack.c.b16 %v4347, %v4347
      %v4368 = vpack.c.b16 %v4348, %v4348
      %v4369 = vpack.c.b16 %v4349, %v4349
      %v4370 = vpack.c.b16 %v4350, %v4350
      %v4372 = vshrl.u32 %v4351, 16
      %v4374 = vrot.slane %v4372, 7
      %v4375 = vshll.u32 %v4351, 16
      %v4377 = vor.u32 %v4374, %v4375
      %v4378 = vrot.slane %v4374, 4
      %v4380 = vshrl.u32 %v4352, 16
      %v4382 = vrot.slane %v4380, 7
      %v4383 = vshll.u32 %v4352, 16
      %v4385 = vor.u32 %v4382, %v4383
      %v4386 = vsel %vm1470, %v4378, %v4385
      %v4387 = vrot.slane %v4382, 4
      %v4389 = vshrl.u32 %v4353, 16
      %v4391 = vrot.slane %v4389, 7
      %v4392 = vshll.u32 %v4353, 16
      %v4394 = vor.u32 %v4391, %v4392
      %v4395 = vrot.slane %v4391, 4
      %v4397 = vshrl.u32 %v4354, 16
      %v4399 = vrot.slane %v4397, 7
      %v4400 = vshll.u32 %v4354, 16
      %v4402 = vor.u32 %v4399, %v4400
      %v4403 = vsel %vm1470, %v4395, %v4402
      %v4404 = vrot.slane %v4399, 4
      %v4406 = vshrl.u32 %v4355, 16
      %v4408 = vrot.slane %v4406, 7
      %v4409 = vshll.u32 %v4355, 16
      %v4411 = vor.u32 %v4408, %v4409
      %v4412 = vrot.slane %v4408, 4
      %v4414 = vshrl.u32 %v4356, 16
      %v4416 = vrot.slane %v4414, 7
      %v4417 = vshll.u32 %v4356, 16
      %v4419 = vor.u32 %v4416, %v4417
      %v4420 = vsel %vm1470, %v4412, %v4419
      %v4421 = vrot.slane %v4416, 4
      %v4423 = vshrl.u32 %v4357, 16
      %v4425 = vrot.slane %v4423, 7
      %v4426 = vshll.u32 %v4357, 16
      %v4428 = vor.u32 %v4425, %v4426
      %v4429 = vrot.slane %v4425, 4
      %v4431 = vshrl.u32 %v4358, 16
      %v4433 = vrot.slane %v4431, 7
      %v4434 = vshll.u32 %v4358, 16
      %v4436 = vor.u32 %v4433, %v4434
      %v4437 = vsel %vm1470, %v4429, %v4436
      %v4438 = vrot.slane %v4433, 4
      %v4440 = vshrl.u32 %v4359, 16
      %v4442 = vrot.slane %v4440, 7
      %v4443 = vshll.u32 %v4359, 16
      %v4445 = vor.u32 %v4442, %v4443
      %v4446 = vrot.slane %v4442, 4
      %v4448 = vshrl.u32 %v4360, 16
      %v4450 = vrot.slane %v4448, 7
      %v4451 = vshll.u32 %v4360, 16
      %v4453 = vor.u32 %v4450, %v4451
      %v4454 = vsel %vm1470, %v4446, %v4453
      %v4455 = vrot.slane %v4450, 4
      %v4457 = vshrl.u32 %v4361, 16
      %v4459 = vrot.slane %v4457, 7
      %v4460 = vshll.u32 %v4361, 16
      %v4462 = vor.u32 %v4459, %v4460
      %v4463 = vrot.slane %v4459, 4
      %v4465 = vshrl.u32 %v4362, 16
      %v4467 = vrot.slane %v4465, 7
      %v4468 = vshll.u32 %v4362, 16
      %v4470 = vor.u32 %v4467, %v4468
      %v4471 = vsel %vm1470, %v4463, %v4470
      %v4472 = vrot.slane %v4467, 4
      %v4474 = vshrl.u32 %v4363, 16
      %v4476 = vrot.slane %v4474, 7
      %v4477 = vshll.u32 %v4363, 16
      %v4479 = vor.u32 %v4476, %v4477
      %v4480 = vrot.slane %v4476, 4
      %v4482 = vshrl.u32 %v4364, 16
      %v4484 = vrot.slane %v4482, 7
      %v4485 = vshll.u32 %v4364, 16
      %v4487 = vor.u32 %v4484, %v4485
      %v4488 = vsel %vm1470, %v4480, %v4487
      %v4489 = vrot.slane %v4484, 4
      %v4491 = vshrl.u32 %v4365, 16
      %v4493 = vrot.slane %v4491, 7
      %v4494 = vshll.u32 %v4365, 16
      %v4496 = vor.u32 %v4493, %v4494
      %v4497 = vrot.slane %v4493, 4
      %v4499 = vshrl.u32 %v4366, 16
      %v4501 = vrot.slane %v4499, 7
      %v4502 = vshll.u32 %v4366, 16
      %v4504 = vor.u32 %v4501, %v4502
      %v4505 = vsel %vm1470, %v4497, %v4504
      %v4506 = vrot.slane %v4501, 4
      %v4508 = vshrl.u32 %v4367, 16
      %v4510 = vrot.slane %v4508, 7
      %v4511 = vshll.u32 %v4367, 16
      %v4513 = vor.u32 %v4510, %v4511
      %v4514 = vrot.slane %v4510, 4
      %v4516 = vshrl.u32 %v4368, 16
      %v4518 = vrot.slane %v4516, 7
      %v4519 = vshll.u32 %v4368, 16
      %v4521 = vor.u32 %v4518, %v4519
      %v4522 = vsel %vm1470, %v4514, %v4521
      %v4523 = vrot.slane %v4518, 4
      %v4525 = vshrl.u32 %v4369, 16
      %v4527 = vrot.slane %v4525, 7
      %v4528 = vshll.u32 %v4369, 16
      %v4530 = vor.u32 %v4527, %v4528
      %v4531 = vrot.slane %v4527, 4
      %v4533 = vshrl.u32 %v4370, 16
      %v4535 = vrot.slane %v4533, 7
      %v4536 = vshll.u32 %v4370, 16
      %v4538 = vor.u32 %v4535, %v4536
      %v4539 = vsel %vm1470, %v4531, %v4538
      %v4540 = vrot.slane %v4535, 4
      %v4571 = vld [vmem:[#allocation4] sm:$0xf]
      %v4572 = vsel %vm1753, %v4377, %v4571
      %4573 = vst [vmem:[#allocation4] sm:$0xf] %v4572
      %4574 = vst.msk [vmem:[#allocation4 + $0x4] sm:$0xf] %vm1757, %v4386
      %v4575 = vld [vmem:[#allocation4 + $0x8] sm:$0x1]
      %v4576 = vsel %vm1760, %v4387, %v4575
      %4577 = vst [vmem:[#allocation4 + $0x8] sm:$0x1] %v4576
      %v4578 = vld [vmem:[#allocation4 + $0xc] sm:$0xf]
      %v4579 = vsel %vm1753, %v4394, %v4578
      %4580 = vst [vmem:[#allocation4 + $0xc] sm:$0xf] %v4579
      %4581 = vst.msk [vmem:[#allocation4 + $0x10] sm:$0xf] %vm1757, %v4403
      %v4582 = vld [vmem:[#allocation4 + $0x14] sm:$0x1]
      %v4583 = vsel %vm1760, %v4404, %v4582
      %4584 = vst [vmem:[#allocation4 + $0x14] sm:$0x1] %v4583
      %v4585 = vld [vmem:[#allocation4 + $0x18] sm:$0xf]
      %v4586 = vsel %vm1753, %v4411, %v4585
      %4587 = vst [vmem:[#allocation4 + $0x18] sm:$0xf] %v4586
      %4588 = vst.msk [vmem:[#allocation4 + $0x1c] sm:$0xf] %vm1757, %v4420
      %v4589 = vld [vmem:[#allocation4 + $0x20] sm:$0x1]
      %v4590 = vsel %vm1760, %v4421, %v4589
      %4591 = vst [vmem:[#allocation4 + $0x20] sm:$0x1] %v4590
      %v4592 = vld [vmem:[#allocation4 + $0x24] sm:$0xf]
      %v4593 = vsel %vm1753, %v4428, %v4592
      %4594 = vst [vmem:[#allocation4 + $0x24] sm:$0xf] %v4593
      %4595 = vst.msk [vmem:[#allocation4 + $0x28] sm:$0xf] %vm1757, %v4437
      %v4596 = vld [vmem:[#allocation4 + $0x2c] sm:$0x1]
      %v4597 = vsel %vm1760, %v4438, %v4596
      %4598 = vst [vmem:[#allocation4 + $0x2c] sm:$0x1] %v4597
      %v4599 = vld [vmem:[#allocation4 + $0x30] sm:$0xf]
      %v4600 = vsel %vm1753, %v4445, %v4599
      %4601 = vst [vmem:[#allocation4 + $0x30] sm:$0xf] %v4600
      %4602 = vst.msk [vmem:[#allocation4 + $0x34] sm:$0xf] %vm1757, %v4454
      %v4603 = vld [vmem:[#allocation4 + $0x38] sm:$0x1]
      %v4604 = vsel %vm1760, %v4455, %v4603
      %4605 = vst [vmem:[#allocation4 + $0x38] sm:$0x1] %v4604
      %v4606 = vld [vmem:[#allocation4 + $0x3c] sm:$0xf]
      %v4607 = vsel %vm1753, %v4462, %v4606
      %4608 = vst [vmem:[#allocation4 + $0x3c] sm:$0xf] %v4607
      %4609 = vst.msk [vmem:[#allocation4 + $0x40] sm:$0xf] %vm1757, %v4471
      %v4610 = vld [vmem:[#allocation4 + $0x44] sm:$0x1]
      %v4611 = vsel %vm1760, %v4472, %v4610
      %4612 = vst [vmem:[#allocation4 + $0x44] sm:$0x1] %v4611
      %v4613 = vld [vmem:[#allocation4 + $0x48] sm:$0xf]
      %v4614 = vsel %vm1753, %v4479, %v4613
      %4615 = vst [vmem:[#allocation4 + $0x48] sm:$0xf] %v4614
      %4616 = vst.msk [vmem:[#allocation4 + $0x4c] sm:$0xf] %vm1757, %v4488
      %v4617 = vld [vmem:[#allocation4 + $0x50] sm:$0x1]
      %v4618 = vsel %vm1760, %v4489, %v4617
      %4619 = vst [vmem:[#allocation4 + $0x50] sm:$0x1] %v4618
      %v4620 = vld [vmem:[#allocation4 + $0x54] sm:$0xf]
      %v4621 = vsel %vm1753, %v4496, %v4620
      %4622 = vst [vmem:[#allocation4 + $0x54] sm:$0xf] %v4621
      %4623 = vst.msk [vmem:[#allocation4 + $0x58] sm:$0xf] %vm1757, %v4505
      %v4624 = vld [vmem:[#allocation4 + $0x5c] sm:$0x1]
      %v4625 = vsel %vm1760, %v4506, %v4624
      %4626 = vst [vmem:[#allocation4 + $0x5c] sm:$0x1] %v4625
      %v4627 = vld [vmem:[#allocation4 + $0x60] sm:$0xf]
      %v4628 = vsel %vm1753, %v4513, %v4627
      %4629 = vst [vmem:[#allocation4 + $0x60] sm:$0xf] %v4628
      %4630 = vst.msk [vmem:[#allocation4 + $0x64] sm:$0xf] %vm1757, %v4522
      %v4631 = vld [vmem:[#allocation4 + $0x68] sm:$0x1]
      %v4632 = vsel %vm1760, %v4523, %v4631
      %4633 = vst [vmem:[#allocation4 + $0x68] sm:$0x1] %v4632
      %v4634 = vld [vmem:[#allocation4 + $0x6c] sm:$0xf]
      %v4635 = vsel %vm1753, %v4530, %v4634
      %4636 = vst [vmem:[#allocation4 + $0x6c] sm:$0xf] %v4635
      %4637 = vst.msk [vmem:[#allocation4 + $0x70] sm:$0xf] %vm1757, %v4539
      %v4638 = vld [vmem:[#allocation4 + $0x74] sm:$0x1]
      %v4639 = vsel %vm1760, %v4540, %v4638
      %4640 = vst [vmem:[#allocation4 + $0x74] sm:$0x1] %v4639
      %v4641 = vld [vmem:[#allocation4] sm:$0x1]
      %v4642 = vsel %vm1760, 0, %v4641
      %4643 = vst [vmem:[#allocation4] sm:$0x1] %v4642
      %v4644 = vld [vmem:[#allocation4 + $0xc] sm:$0x1]
      %v4645 = vsel %vm1760, 0, %v4644
      %4646 = vst [vmem:[#allocation4 + $0xc] sm:$0x1] %v4645
      %v4647 = vld [vmem:[#allocation4 + $0x18] sm:$0x1]
      %v4648 = vsel %vm1760, 0, %v4647
      %4649 = vst [vmem:[#allocation4 + $0x18] sm:$0x1] %v4648
      %v4650 = vld [vmem:[#allocation4 + $0x24] sm:$0x1]
      %v4651 = vsel %vm1760, 0, %v4650
      %4652 = vst [vmem:[#allocation4 + $0x24] sm:$0x1] %v4651
      %v4653 = vld [vmem:[#allocation4 + $0x30] sm:$0x1]
      %v4654 = vsel %vm1760, 0, %v4653
      %4655 = vst [vmem:[#allocation4 + $0x30] sm:$0x1] %v4654
      %v4656 = vld [vmem:[#allocation4 + $0x3c] sm:$0x1]
      %v4657 = vsel %vm1760, 0, %v4656
      %4658 = vst [vmem:[#allocation4 + $0x3c] sm:$0x1] %v4657
      %v4659 = vld [vmem:[#allocation4 + $0x48] sm:$0x1]
      %v4660 = vsel %vm1760, 0, %v4659
      %4661 = vst [vmem:[#allocation4 + $0x48] sm:$0x1] %v4660
      %v4662 = vld [vmem:[#allocation4 + $0x54] sm:$0x1]
      %v4663 = vsel %vm1760, 0, %v4662
      %4664 = vst [vmem:[#allocation4 + $0x54] sm:$0x1] %v4663
      %v4665 = vld [vmem:[#allocation4 + $0x60] sm:$0x1]
      %v4666 = vsel %vm1760, 0, %v4665
      %4667 = vst [vmem:[#allocation4 + $0x60] sm:$0x1] %v4666
      %v4668 = vld [vmem:[#allocation4 + $0x6c] sm:$0x1]
      %v4669 = vsel %vm1760, 0, %v4668
      %4670 = vst [vmem:[#allocation4 + $0x6c] sm:$0x1] %v4669
      %v4671 = vld [vmem:[#allocation4 + $0x8] sm:$0x1]
      %v4672 = vsel %vm1897, 0, %v4671
      %4673 = vst [vmem:[#allocation4 + $0x8] sm:$0x1] %v4672
      %v4674 = vld [vmem:[#allocation4 + $0x14] sm:$0x1]
      %v4675 = vsel %vm1897, 0, %v4674
      %4676 = vst [vmem:[#allocation4 + $0x14] sm:$0x1] %v4675
      %v4677 = vld [vmem:[#allocation4 + $0x20] sm:$0x1]
      %v4678 = vsel %vm1897, 0, %v4677
      %4679 = vst [vmem:[#allocation4 + $0x20] sm:$0x1] %v4678
      %v4680 = vld [vmem:[#allocation4 + $0x2c] sm:$0x1]
      %v4681 = vsel %vm1897, 0, %v4680
      %4682 = vst [vmem:[#allocation4 + $0x2c] sm:$0x1] %v4681
      %v4683 = vld [vmem:[#allocation4 + $0x38] sm:$0x1]
      %v4684 = vsel %vm1897, 0, %v4683
      %4685 = vst [vmem:[#allocation4 + $0x38] sm:$0x1] %v4684
      %v4686 = vld [vmem:[#allocation4 + $0x44] sm:$0x1]
      %v4687 = vsel %vm1897, 0, %v4686
      %4688 = vst [vmem:[#allocation4 + $0x44] sm:$0x1] %v4687
      %v4689 = vld [vmem:[#allocation4 + $0x50] sm:$0x1]
      %v4690 = vsel %vm1897, 0, %v4689
      %4691 = vst [vmem:[#allocation4 + $0x50] sm:$0x1] %v4690
      %v4692 = vld [vmem:[#allocation4 + $0x5c] sm:$0x1]
      %v4693 = vsel %vm1897, 0, %v4692
      %4694 = vst [vmem:[#allocation4 + $0x5c] sm:$0x1] %v4693
      %v4695 = vld [vmem:[#allocation4 + $0x68] sm:$0x1]
      %v4696 = vsel %vm1897, 0, %v4695
      %4697 = vst [vmem:[#allocation4 + $0x68] sm:$0x1] %v4696
      %v4698 = vld [vmem:[#allocation4 + $0x74] sm:$0x1]
      %v4699 = vsel %vm1897, 0, %v4698
      %4700 = vst [vmem:[#allocation4 + $0x74] sm:$0x1] %v4699
      // Predicated region
      $region73: #{_lambda_.1} parent=55 // pred_check
        %p4701 = pneg %p1940
      $region74: #{_lambda_.1} parent=55 // pred_check_branch
        %4703 = sbr.rel (%p4701) target = $region76
      $region75: #{_lambda_.1} parent=55 // pred_region
        %4704 = vst.msk [vmem:[#allocation4] sm:$0xf] %vm1757, 0
        %4705 = vst.msk [vmem:[#allocation4 + $0x4] sm:$0xf] %vm1757, 0
        %vm4706 = vcmask 516096
        %4707 = vst.msk [vmem:[#allocation4 + $0x8] sm:$0x1] %vm4706, 0
      $region76: #{_lambda_.1} parent=55 // pred_fallthru
        _
      // Predicated region
      $region77: #{_lambda_.1} parent=55 // pred_check
        %p4708 = pneg %p1954
      $region78: #{_lambda_.1} parent=55 // pred_check_branch
        %4710 = sbr.rel (%p4708) target = $region80
      $region79: #{_lambda_.1} parent=55 // pred_region
        %s4711 = scalar_lea.vmem [#allocation4], 108
        %4712 = vst.msk [vmem:[%s4711] sm:$0xf] %vm1757, 0
        %4713 = vst.msk [vmem:[%s4711 + $0x4] sm:$0xf] %vm1757, 0
        %vm4714 = vcmask 516096
        %4715 = vst.msk [vmem:[%s4711 + $0x8] sm:$0x1] %vm4714, 0
      $region80: #{_lambda_.1} parent=55 // pred_fallthru
        _
      %v4716 = vld [vmem:[#allocation4] sm:$0xf]
      %v4717 = vld [vmem:[#allocation4 + $0x4] sm:$0xf]
      %v4718 = vld [vmem:[#allocation4 + $0x8] sm:$0x1]
      %v4719 = vld [vmem:[#allocation4 + $0xc] sm:$0xf]
      %v4720 = vld [vmem:[#allocation4 + $0x10] sm:$0xf]
      %v4721 = vld [vmem:[#allocation4 + $0x14] sm:$0x1]
      %v4722 = vld [vmem:[#allocation4 + $0x18] sm:$0xf]
      %v4723 = vld [vmem:[#allocation4 + $0x1c] sm:$0xf]
      %v4724 = vld [vmem:[#allocation4 + $0x20] sm:$0x1]
      %v4725 = vld [vmem:[#allocation4 + $0x24] sm:$0xf]
      %v4726 = vld [vmem:[#allocation4 + $0x28] sm:$0xf]
      %v4727 = vld [vmem:[#allocation4 + $0x2c] sm:$0x1]
      %v4728 = vld [vmem:[#allocation4 + $0x30] sm:$0xf]
      %v4729 = vld [vmem:[#allocation4 + $0x34] sm:$0xf]
      %v4730 = vld [vmem:[#allocation4 + $0x38] sm:$0x1]
      %v4731 = vld [vmem:[#allocation4 + $0x3c] sm:$0xf]
      %v4732 = vld [vmem:[#allocation4 + $0x40] sm:$0xf]
      %v4733 = vld [vmem:[#allocation4 + $0x44] sm:$0x1]
      %v4734 = vld [vmem:[#allocation4 + $0x48] sm:$0xf]
      %v4735 = vld [vmem:[#allocation4 + $0x4c] sm:$0xf]
      %v4736 = vld [vmem:[#allocation4 + $0x50] sm:$0x1]
      %v4737 = vld [vmem:[#allocation4 + $0x54] sm:$0xf]
      %v4738 = vld [vmem:[#allocation4 + $0x58] sm:$0xf]
      %v4739 = vld [vmem:[#allocation4 + $0x5c] sm:$0x1]
      %v4740 = vld [vmem:[#allocation4 + $0x60] sm:$0xf]
      %v4741 = vld [vmem:[#allocation4 + $0x64] sm:$0xf]
      %v4742 = vld [vmem:[#allocation4 + $0x68] sm:$0x1]
      %v4743 = vld [vmem:[#allocation4 + $0x6c] sm:$0xf]
      %v4744 = vld [vmem:[#allocation4 + $0x70] sm:$0xf]
      %v4745 = vld [vmem:[#allocation4 + $0x74] sm:$0x1]
      %v4766 = vunpack.c.l.b16 %v4716
      %v4767 = vunpack.c.l.b16 %v4717
      %v4768 = vunpack.c.l.b16 %v4719
      %v4769 = vunpack.c.l.b16 %v4720
      %v4770 = vunpack.c.l.b16 %v4722
      %v4771 = vunpack.c.l.b16 %v4723
      %v4772 = vunpack.c.l.b16 %v4725
      %v4773 = vunpack.c.l.b16 %v4726
      %v4774 = vunpack.c.l.b16 %v4728
      %v4775 = vunpack.c.l.b16 %v4729
      %v4776 = vunpack.c.l.b16 %v4731
      %v4777 = vunpack.c.l.b16 %v4732
      %v4778 = vunpack.c.l.b16 %v4734
      %v4779 = vunpack.c.l.b16 %v4735
      %v4780 = vunpack.c.l.b16 %v4737
      %v4781 = vunpack.c.l.b16 %v4738
      %v4782 = vunpack.c.l.b16 %v4740
      %v4783 = vunpack.c.l.b16 %v4741
      %v4784 = vunpack.c.l.b16 %v4743
      %v4785 = vunpack.c.l.b16 %v4744
      %v4786 = vpack.c.b16 %v4767, %v4766
      %v4787 = vpack.c.b16 %v4769, %v4768
      %v4788 = vpack.c.b16 %v4771, %v4770
      %v4789 = vpack.c.b16 %v4773, %v4772
      %v4790 = vpack.c.b16 %v4775, %v4774
      %v4791 = vpack.c.b16 %v4777, %v4776
      %v4792 = vpack.c.b16 %v4779, %v4778
      %v4793 = vpack.c.b16 %v4781, %v4780
      %v4794 = vpack.c.b16 %v4783, %v4782
      %v4795 = vpack.c.b16 %v4785, %v4784
      %v4806 = vunpack.c.l.b16 %v4718
      %v4807 = vunpack.c.l.b16 %v4721
      %v4808 = vunpack.c.l.b16 %v4724
      %v4809 = vunpack.c.l.b16 %v4727
      %v4810 = vunpack.c.l.b16 %v4730
      %v4811 = vunpack.c.l.b16 %v4733
      %v4812 = vunpack.c.l.b16 %v4736
      %v4813 = vunpack.c.l.b16 %v4739
      %v4814 = vunpack.c.l.b16 %v4742
      %v4815 = vunpack.c.l.b16 %v4745
      %v4816 = vpack.c.b16 %v4806, %v4806
      %v4817 = vpack.c.b16 %v4807, %v4807
      %v4818 = vpack.c.b16 %v4808, %v4808
      %v4819 = vpack.c.b16 %v4809, %v4809
      %v4820 = vpack.c.b16 %v4810, %v4810
      %v4821 = vpack.c.b16 %v4811, %v4811
      %v4822 = vpack.c.b16 %v4812, %v4812
      %v4823 = vpack.c.b16 %v4813, %v4813
      %v4824 = vpack.c.b16 %v4814, %v4814
      %v4825 = vpack.c.b16 %v4815, %v4815
      %v4827 = vshrl.u32 %v4786, 16
      %v4829 = vshll.u32 %v4786, 16
      %v4831 = vrot.slane %v4829, 1
      %v4832 = vor.u32 %v4827, %v4831
      %v4834 = vshll.u32 %v4816, 16
      %v4836 = vrot.slane %v4834, 1
      %v4837 = vsel %vm544, %v4832, %v4836
      %v4839 = vshrl.u32 %v4787, 16
      %v4841 = vshll.u32 %v4787, 16
      %v4843 = vrot.slane %v4841, 1
      %v4844 = vor.u32 %v4839, %v4843
      %v4846 = vshll.u32 %v4817, 16
      %v4848 = vrot.slane %v4846, 1
      %v4849 = vsel %vm544, %v4844, %v4848
      %v4851 = vshrl.u32 %v4788, 16
      %v4853 = vshll.u32 %v4788, 16
      %v4855 = vrot.slane %v4853, 1
      %v4856 = vor.u32 %v4851, %v4855
      %v4858 = vshll.u32 %v4818, 16
      %v4860 = vrot.slane %v4858, 1
      %v4861 = vsel %vm544, %v4856, %v4860
      %v4863 = vshrl.u32 %v4789, 16
      %v4865 = vshll.u32 %v4789, 16
      %v4867 = vrot.slane %v4865, 1
      %v4868 = vor.u32 %v4863, %v4867
      %v4870 = vshll.u32 %v4819, 16
      %v4872 = vrot.slane %v4870, 1
      %v4873 = vsel %vm544, %v4868, %v4872
      %v4875 = vshrl.u32 %v4790, 16
      %v4877 = vshll.u32 %v4790, 16
      %v4879 = vrot.slane %v4877, 1
      %v4880 = vor.u32 %v4875, %v4879
      %v4882 = vshll.u32 %v4820, 16
      %v4884 = vrot.slane %v4882, 1
      %v4885 = vsel %vm544, %v4880, %v4884
      %v4887 = vshrl.u32 %v4791, 16
      %v4889 = vshll.u32 %v4791, 16
      %v4891 = vrot.slane %v4889, 1
      %v4892 = vor.u32 %v4887, %v4891
      %v4894 = vshll.u32 %v4821, 16
      %v4896 = vrot.slane %v4894, 1
      %v4897 = vsel %vm544, %v4892, %v4896
      %v4899 = vshrl.u32 %v4792, 16
      %v4901 = vshll.u32 %v4792, 16
      %v4903 = vrot.slane %v4901, 1
      %v4904 = vor.u32 %v4899, %v4903
      %v4906 = vshll.u32 %v4822, 16
      %v4908 = vrot.slane %v4906, 1
      %v4909 = vsel %vm544, %v4904, %v4908
      %v4911 = vshrl.u32 %v4793, 16
      %v4913 = vshll.u32 %v4793, 16
      %v4915 = vrot.slane %v4913, 1
      %v4916 = vor.u32 %v4911, %v4915
      %v4918 = vshll.u32 %v4823, 16
      %v4920 = vrot.slane %v4918, 1
      %v4921 = vsel %vm544, %v4916, %v4920
      %v4923 = vshrl.u32 %v4794, 16
      %v4925 = vshll.u32 %v4794, 16
      %v4927 = vrot.slane %v4925, 1
      %v4928 = vor.u32 %v4923, %v4927
      %v4930 = vshll.u32 %v4824, 16
      %v4932 = vrot.slane %v4930, 1
      %v4933 = vsel %vm544, %v4928, %v4932
      %v4935 = vshrl.u32 %v4795, 16
      %v4937 = vshll.u32 %v4795, 16
      %v4939 = vrot.slane %v4937, 1
      %v4940 = vor.u32 %v4935, %v4939
      %v4942 = vshll.u32 %v4825, 16
      %v4944 = vrot.slane %v4942, 1
      %v4945 = vsel %vm544, %v4940, %v4944
      %4946 = vrot.lane.b32.xlu0 %v4837, 64
      %v4947 = vpop.permute.xlu0 %4946
      %4948 = vrot.lane.b32.xlu0 %v4849, 64
      %v4949 = vpop.permute.xlu0 %4948
      %4950 = vrot.lane.b32.xlu0 %v4861, 64
      %v4951 = vpop.permute.xlu0 %4950
      %4952 = vrot.lane.b32.xlu0 %v4873, 64
      %v4953 = vpop.permute.xlu0 %4952
      %4954 = vrot.lane.b32.xlu0 %v4885, 64
      %v4955 = vpop.permute.xlu0 %4954
      %4956 = vrot.lane.b32.xlu0 %v4897, 64
      %v4957 = vpop.permute.xlu0 %4956
      %4958 = vrot.lane.b32.xlu0 %v4909, 64
      %v4959 = vpop.permute.xlu0 %4958
      %4960 = vrot.lane.b32.xlu0 %v4921, 64
      %v4961 = vpop.permute.xlu0 %4960
      %4962 = vrot.lane.b32.xlu0 %v4933, 64
      %v4963 = vpop.permute.xlu0 %4962
      %4964 = vrot.lane.b32.xlu0 %v4945, 64
      %v4965 = vpop.permute.xlu0 %4964
      %v4966 = vrot.slane %v4786, 1
      %v4967 = vrot.slane %v4816, 1
      %v4968 = vsel %vm769, %v4966, %v4967
      %v4969 = vrot.slane %v4787, 1
      %v4970 = vrot.slane %v4817, 1
      %v4971 = vsel %vm769, %v4969, %v4970
      %v4972 = vrot.slane %v4788, 1
      %v4973 = vrot.slane %v4818, 1
      %v4974 = vsel %vm769, %v4972, %v4973
      %v4975 = vrot.slane %v4789, 1
      %v4976 = vrot.slane %v4819, 1
      %v4977 = vsel %vm769, %v4975, %v4976
      %v4978 = vrot.slane %v4790, 1
      %v4979 = vrot.slane %v4820, 1
      %v4980 = vsel %vm769, %v4978, %v4979
      %v4981 = vrot.slane %v4791, 1
      %v4982 = vrot.slane %v4821, 1
      %v4983 = vsel %vm769, %v4981, %v4982
      %v4984 = vrot.slane %v4792, 1
      %v4985 = vrot.slane %v4822, 1
      %v4986 = vsel %vm769, %v4984, %v4985
      %v4987 = vrot.slane %v4793, 1
      %v4988 = vrot.slane %v4823, 1
      %v4989 = vsel %vm769, %v4987, %v4988
      %v4990 = vrot.slane %v4794, 1
      %v4991 = vrot.slane %v4824, 1
      %v4992 = vsel %vm769, %v4990, %v4991
      %v4993 = vrot.slane %v4795, 1
      %v4994 = vrot.slane %v4825, 1
      %v4995 = vsel %vm769, %v4993, %v4994
      %v4997 = vsel %vm2361, %v4786, %v4947
      %v5000 = vsel %vm2361, %v4787, %v4949
      %v5003 = vsel %vm2361, %v4788, %v4951
      %v5006 = vsel %vm2361, %v4789, %v4953
      %v5009 = vsel %vm2361, %v4790, %v4955
      %v5012 = vsel %vm2361, %v4791, %v4957
      %v5015 = vsel %vm2361, %v4792, %v4959
      %v5018 = vsel %vm2361, %v4793, %v4961
      %v5021 = vsel %vm2361, %v4794, %v4963
      %v5024 = vsel %vm2361, %v4795, %v4965
      %v5026 = vld [vmem:[%s7] sm:$0xff]
      %v5027 = vld [vmem:[%s7 + $0x8] sm:$0xf]
      %v5028 = vld [vmem:[%s7 + $0xc] sm:$0xff]
      %v5029 = vld [vmem:[%s7 + $0x14] sm:$0xf]
      %v5030 = vld [vmem:[%s7 + $0x18] sm:$0xff]
      %v5031 = vld [vmem:[%s7 + $0x20] sm:$0xf]
      %v5032 = vld [vmem:[%s7 + $0x24] sm:$0xff]
      %v5033 = vld [vmem:[%s7 + $0x2c] sm:$0xf]
      %v5034 = vld [vmem:[%s7 + $0x30] sm:$0xff]
      %v5035 = vld [vmem:[%s7 + $0x38] sm:$0xf]
      %v5036 = vld [vmem:[%s7 + $0x3c] sm:$0xff]
      %v5037 = vld [vmem:[%s7 + $0x44] sm:$0xf]
      %v5038 = vld [vmem:[%s7 + $0x48] sm:$0xff]
      %v5039 = vld [vmem:[%s7 + $0x50] sm:$0xf]
      %v5040 = vld [vmem:[%s7 + $0x54] sm:$0xff]
      %v5041 = vld [vmem:[%s7 + $0x5c] sm:$0xf]
      %v5042 = vld [vmem:[%s7 + $0x60] sm:$0xff]
      %v5043 = vld [vmem:[%s7 + $0x68] sm:$0xf]
      %v5044 = vld [vmem:[%s7 + $0x6c] sm:$0xff]
      %v5045 = vld [vmem:[%s7 + $0x74] sm:$0xf]
      %v5046 = vld [vmem:[%s7 + $0x78] sm:$0xff]
      %v5047 = vld [vmem:[%s7 + $0x80] sm:$0xf]
      %v5048 = vld [vmem:[%s7 + $0x84] sm:$0xff]
      %v5049 = vld [vmem:[%s7 + $0x8c] sm:$0xf]
      %v5050 = vld [vmem:[%s7 + $0x90] sm:$0xff]
      %v5051 = vld [vmem:[%s7 + $0x98] sm:$0xf]
      %v5052 = vld [vmem:[%s7 + $0x9c] sm:$0xff]
      %v5053 = vld [vmem:[%s7 + $0xa4] sm:$0xf]
      %v5054 = vld [vmem:[%s7 + $0xa8] sm:$0xff]
      %v5055 = vld [vmem:[%s7 + $0xb0] sm:$0xf]
      %v5056 = vld [vmem:[%s7 + $0xb4] sm:$0xff]
      %v5057 = vld [vmem:[%s7 + $0xbc] sm:$0xf]
      %v5058 = vld [vmem:[%s7 + $0xc0] sm:$0xff]
      %v5059 = vld [vmem:[%s7 + $0xc8] sm:$0xf]
      %v5060 = vld [vmem:[%s7 + $0xcc] sm:$0xff]
      %v5061 = vld [vmem:[%s7 + $0xd4] sm:$0xf]
      %v5062 = vld [vmem:[%s7 + $0xd8] sm:$0xff]
      %v5063 = vld [vmem:[%s7 + $0xe0] sm:$0xf]
      %v5064 = vld [vmem:[%s7 + $0xe4] sm:$0xff]
      %v5065 = vld [vmem:[%s7 + $0xec] sm:$0xf]
      %v5066 = vld [vmem:[%s7 + $0xf0] sm:$0xff]
      %v5067 = vld [vmem:[%s7 + $0xf8] sm:$0xf]
      %v5068 = vld [vmem:[%s7 + $0xfc] sm:$0xff]
      %v5069 = vld [vmem:[%s7 + $0x104] sm:$0xf]
      %v5070 = vld [vmem:[%s7 + $0x108] sm:$0xff]
      %v5071 = vld [vmem:[%s7 + $0x110] sm:$0xf]
      %v5072 = vld [vmem:[%s7 + $0x114] sm:$0xff]
      %v5073 = vld [vmem:[%s7 + $0x11c] sm:$0xf]
      %v5122 = vunpack.c.l.b16 %v5026
      %v5123 = vunpack.c.h.b16 %v5026
      %v5124 = vunpack.c.l.b16 %v5027
      %v5125 = vunpack.c.l.b16 %v5028
      %v5126 = vunpack.c.h.b16 %v5028
      %v5127 = vunpack.c.l.b16 %v5029
      %v5128 = vunpack.c.l.b16 %v5030
      %v5129 = vunpack.c.h.b16 %v5030
      %v5130 = vunpack.c.l.b16 %v5031
      %v5131 = vunpack.c.l.b16 %v5032
      %v5132 = vunpack.c.h.b16 %v5032
      %v5133 = vunpack.c.l.b16 %v5033
      %v5134 = vunpack.c.l.b16 %v5034
      %v5135 = vunpack.c.h.b16 %v5034
      %v5136 = vunpack.c.l.b16 %v5035
      %v5137 = vunpack.c.l.b16 %v5036
      %v5138 = vunpack.c.h.b16 %v5036
      %v5139 = vunpack.c.l.b16 %v5037
      %v5140 = vunpack.c.l.b16 %v5038
      %v5141 = vunpack.c.h.b16 %v5038
      %v5142 = vunpack.c.l.b16 %v5039
      %v5143 = vunpack.c.l.b16 %v5040
      %v5144 = vunpack.c.h.b16 %v5040
      %v5145 = vunpack.c.l.b16 %v5041
      %v5146 = vunpack.c.l.b16 %v5042
      %v5147 = vunpack.c.h.b16 %v5042
      %v5148 = vunpack.c.l.b16 %v5043
      %v5149 = vunpack.c.l.b16 %v5044
      %v5150 = vunpack.c.h.b16 %v5044
      %v5151 = vunpack.c.l.b16 %v5045
      %v5152 = vunpack.c.l.b16 %v5046
      %v5153 = vunpack.c.h.b16 %v5046
      %v5154 = vunpack.c.l.b16 %v5047
      %v5155 = vunpack.c.l.b16 %v5048
      %v5156 = vunpack.c.h.b16 %v5048
      %v5157 = vunpack.c.l.b16 %v5049
      %v5158 = vunpack.c.l.b16 %v5050
      %v5159 = vunpack.c.h.b16 %v5050
      %v5160 = vunpack.c.l.b16 %v5051
      %v5161 = vunpack.c.l.b16 %v5052
      %v5162 = vunpack.c.h.b16 %v5052
      %v5163 = vunpack.c.l.b16 %v5053
      %v5164 = vunpack.c.l.b16 %v5054
      %v5165 = vunpack.c.h.b16 %v5054
      %v5166 = vunpack.c.l.b16 %v5055
      %v5167 = vunpack.c.l.b16 %v5056
      %v5168 = vunpack.c.h.b16 %v5056
      %v5169 = vunpack.c.l.b16 %v5057
      %v5170 = vunpack.c.l.b16 %v5058
      %v5171 = vunpack.c.h.b16 %v5058
      %v5172 = vunpack.c.l.b16 %v5059
      %v5173 = vunpack.c.l.b16 %v5060
      %v5174 = vunpack.c.h.b16 %v5060
      %v5175 = vunpack.c.l.b16 %v5061
      %v5176 = vunpack.c.l.b16 %v5062
      %v5177 = vunpack.c.h.b16 %v5062
      %v5178 = vunpack.c.l.b16 %v5063
      %v5179 = vunpack.c.l.b16 %v5064
      %v5180 = vunpack.c.h.b16 %v5064
      %v5181 = vunpack.c.l.b16 %v5065
      %v5182 = vunpack.c.l.b16 %v5066
      %v5183 = vunpack.c.h.b16 %v5066
      %v5184 = vunpack.c.l.b16 %v5067
      %v5185 = vunpack.c.l.b16 %v5068
      %v5186 = vunpack.c.h.b16 %v5068
      %v5187 = vunpack.c.l.b16 %v5069
      %v5188 = vunpack.c.l.b16 %v5070
      %v5189 = vunpack.c.h.b16 %v5070
      %v5190 = vunpack.c.l.b16 %v5071
      %v5191 = vunpack.c.l.b16 %v5072
      %v5192 = vunpack.c.h.b16 %v5072
      %v5193 = vunpack.c.l.b16 %v5073
      %v5194 = vpack.c.b16 %v5125, %v5122
      %v5195 = vpack.c.b16 %v5126, %v5123
      %v5196 = vpack.c.b16 %v5127, %v5124
      %v5197 = vpack.c.b16 %v5131, %v5128
      %v5198 = vpack.c.b16 %v5132, %v5129
      %v5199 = vpack.c.b16 %v5133, %v5130
      %v5200 = vpack.c.b16 %v5137, %v5134
      %v5201 = vpack.c.b16 %v5138, %v5135
      %v5202 = vpack.c.b16 %v5139, %v5136
      %v5203 = vpack.c.b16 %v5143, %v5140
      %v5204 = vpack.c.b16 %v5144, %v5141
      %v5205 = vpack.c.b16 %v5145, %v5142
      %v5206 = vpack.c.b16 %v5149, %v5146
      %v5207 = vpack.c.b16 %v5150, %v5147
      %v5208 = vpack.c.b16 %v5151, %v5148
      %v5209 = vpack.c.b16 %v5155, %v5152
      %v5210 = vpack.c.b16 %v5156, %v5153
      %v5211 = vpack.c.b16 %v5157, %v5154
      %v5212 = vpack.c.b16 %v5161, %v5158
      %v5213 = vpack.c.b16 %v5162, %v5159
      %v5214 = vpack.c.b16 %v5163, %v5160
      %v5215 = vpack.c.b16 %v5167, %v5164
      %v5216 = vpack.c.b16 %v5168, %v5165
      %v5217 = vpack.c.b16 %v5169, %v5166
      %v5218 = vpack.c.b16 %v5173, %v5170
      %v5219 = vpack.c.b16 %v5174, %v5171
      %v5220 = vpack.c.b16 %v5175, %v5172
      %v5221 = vpack.c.b16 %v5179, %v5176
      %v5222 = vpack.c.b16 %v5180, %v5177
      %v5223 = vpack.c.b16 %v5181, %v5178
      %v5224 = vpack.c.b16 %v5185, %v5182
      %v5225 = vpack.c.b16 %v5186, %v5183
      %v5226 = vpack.c.b16 %v5187, %v5184
      %v5227 = vpack.c.b16 %v5191, %v5188
      %v5228 = vpack.c.b16 %v5192, %v5189
      %v5229 = vpack.c.b16 %v5193, %v5190
      %v5267 = vsel %vm2361, %v4968, 0
      %v5270 = vsel %vm2361, %v4971, 0
      %v5273 = vsel %vm2361, %v4974, 0
      %v5276 = vsel %vm2361, %v4977, 0
      %v5279 = vsel %vm2361, %v4980, 0
      %v5282 = vsel %vm2361, %v4983, 0
      %v5285 = vsel %vm2361, %v4986, 0
      %v5288 = vsel %vm2361, %v4989, 0
      %v5291 = vsel %vm2361, %v4992, 0
      %v5294 = vsel %vm2361, %v4995, 0
      %5296 = vmatprep.subr.bf16.mxu0 %v5195
      %5297 = vmatpush1.bf16.msra.mxu0 %v5194
      %5298 = vmatprep.subr.bf16.mxu0 %v5198
      %5299 = vmatpush1.bf16.msra.mxu0 %v5197
      %5300 = vmatprep.subr.bf16.mxu0 %v5201
      %5301 = vmatpush1.bf16.msra.mxu0 %v5200
      %5302 = vmatprep.subr.bf16.mxu0 %v5204
      %5303 = vmatpush1.bf16.msra.mxu0 %v5203
      %5304 = vmatprep.subr.bf16.mxu0 %v5207
      %5305 = vmatpush1.bf16.msra.mxu0 %v5206
      %5306 = vmatprep.subr.bf16.mxu0 %v5210
      %5307 = vmatpush1.bf16.msra.mxu0 %v5209
      %5308 = vmatprep.subr.bf16.mxu0 %v5213
      %5309 = vmatpush1.bf16.msra.mxu0 %v5212
      %5310 = vmatprep.subr.bf16.mxu0 %v5216
      %5311 = vmatpush1.bf16.msra.mxu0 %v5215
      %5312 = vmatprep.subr.bf16.mxu0 %v5219
      %5313 = vmatpush1.bf16.msra.mxu0 %v5218
      %5314 = vmatprep.subr.bf16.mxu0 %v5222
      %5315 = vmatpush1.bf16.msra.mxu0 %v5221
      %5316 = vmatprep.subr.bf16.mxu0 %v5225
      %5317 = vmatpush1.bf16.msra.mxu0 %v5224
      %5318 = vmatprep.subr.bf16.mxu0 %v5228
      %5319 = vmatpush1.bf16.msra.mxu0 %v5227
      %5320 = vmatprep.subr.bf16.mxu0 0
      %5321 = vmatpush1.bf16.msra.mxu0 0
      %5322 = vmatprep.subr.bf16.mxu0 0
      %5323 = vmatpush1.bf16.msra.mxu0 0
      %5324 = vmatprep.subr.bf16.mxu0 0
      %5325 = vmatpush1.bf16.msra.mxu0 0
      %5326 = vmatprep.subr.bf16.mxu0 0
      %5327 = vmatpush1.bf16.msra.mxu0 0
      %5328 = vmatprep.mubr.bf16.mxu0 %v5267
      %5329 = vmatmul.mubr.bf16.gmra.mrb[0].mxu0 %v4997
      %v5330 = vpop.f32.mrb[0].mxu0
      %v5331 = vadd.f32 0.0, %v5330
      %v5332 = vpop.f32.mrb[0].mxu0
      %v5333 = vpop.f32.mrb[0].mxu0
      %v5334 = vadd.f32 0.0, %v5333
      %v5335 = vpop.f32.mrb[0].mxu0
      %5336 = vmatprep.mubr.bf16.mxu0 %v5270
      %5337 = vmatmul.mubr.bf16.gmra.mrb[0].mxu0 %v5000
      %v5338 = vpop.f32.mrb[0].mxu0
      %v5339 = vadd.f32 0.0, %v5338
      %v5340 = vpop.f32.mrb[0].mxu0
      %v5341 = vadd.f32 0.0, %v5340
      %v5342 = vpop.f32.mrb[0].mxu0
      %v5343 = vadd.f32 0.0, %v5342
      %v5344 = vpop.f32.mrb[0].mxu0
      %v5345 = vadd.f32 0.0, %v5344
      %5346 = vmatprep.mubr.bf16.mxu0 %v5273
      %5347 = vmatmul.mubr.bf16.gmra.mrb[0].mxu0 %v5003
      %v5348 = vpop.f32.mrb[0].mxu0
      %v5349 = vadd.f32 0.0, %v5348
      %v5350 = vpop.f32.mrb[0].mxu0
      %v5351 = vadd.f32 0.0, %v5350
      %v5352 = vpop.f32.mrb[0].mxu0
      %v5353 = vadd.f32 0.0, %v5352
      %v5354 = vpop.f32.mrb[0].mxu0
      %v5355 = vadd.f32 0.0, %v5354
      %5356 = vmatprep.mubr.bf16.mxu0 %v5276
      %5357 = vmatmul.mubr.bf16.gmra.mrb[0].mxu0 %v5006
      %v5358 = vpop.f32.mrb[0].mxu0
      %v5359 = vadd.f32 0.0, %v5358
      %v5360 = vpop.f32.mrb[0].mxu0
      %v5361 = vadd.f32 0.0, %v5360
      %v5362 = vpop.f32.mrb[0].mxu0
      %v5363 = vadd.f32 0.0, %v5362
      %v5364 = vpop.f32.mrb[0].mxu0
      %v5365 = vadd.f32 0.0, %v5364
      %5366 = vmatprep.mubr.bf16.mxu0 %v5279
      %5367 = vmatmul.mubr.bf16.gmra.mrb[0].mxu0 %v5009
      %v5368 = vpop.f32.mrb[0].mxu0
      %v5369 = vadd.f32 0.0, %v5368
      %v5370 = vpop.f32.mrb[0].mxu0
      %v5371 = vadd.f32 0.0, %v5370
      %v5372 = vpop.f32.mrb[0].mxu0
      %v5373 = vadd.f32 0.0, %v5372
      %v5374 = vpop.f32.mrb[0].mxu0
      %v5375 = vadd.f32 0.0, %v5374
      %5376 = vmatprep.mubr.bf16.mxu0 %v5282
      %5377 = vmatmul.mubr.bf16.gmra.mrb[0].mxu0 %v5012
      %v5378 = vpop.f32.mrb[0].mxu0
      %v5379 = vadd.f32 0.0, %v5378
      %v5380 = vpop.f32.mrb[0].mxu0
      %v5381 = vadd.f32 0.0, %v5380
      %v5382 = vpop.f32.mrb[0].mxu0
      %v5383 = vadd.f32 0.0, %v5382
      %v5384 = vpop.f32.mrb[0].mxu0
      %v5385 = vadd.f32 0.0, %v5384
      %5386 = vmatprep.mubr.bf16.mxu0 %v5285
      %5387 = vmatmul.mubr.bf16.gmra.mrb[0].mxu0 %v5015
      %v5388 = vpop.f32.mrb[0].mxu0
      %v5389 = vadd.f32 0.0, %v5388
      %v5390 = vpop.f32.mrb[0].mxu0
      %v5391 = vadd.f32 0.0, %v5390
      %v5392 = vpop.f32.mrb[0].mxu0
      %v5393 = vadd.f32 0.0, %v5392
      %v5394 = vpop.f32.mrb[0].mxu0
      %v5395 = vadd.f32 0.0, %v5394
      %5396 = vmatprep.mubr.bf16.mxu0 %v5288
      %5397 = vmatmul.mubr.bf16.gmra.mrb[0].mxu0 %v5018
      %v5398 = vpop.f32.mrb[0].mxu0
      %v5399 = vadd.f32 0.0, %v5398
      %v5400 = vpop.f32.mrb[0].mxu0
      %v5401 = vadd.f32 0.0, %v5400
      %v5402 = vpop.f32.mrb[0].mxu0
      %v5403 = vadd.f32 0.0, %v5402
      %v5404 = vpop.f32.mrb[0].mxu0
      %v5405 = vadd.f32 0.0, %v5404
      %5406 = vmatprep.mubr.bf16.mxu0 %v5291
      %5407 = vmatmul.mubr.bf16.gmra.mrb[0].mxu0 %v5021
      %v5408 = vpop.f32.mrb[0].mxu0
      %v5409 = vpop.f32.mrb[0].mxu0
      %v5410 = vadd.f32 0.0, %v5409
      %v5411 = vpop.f32.mrb[0].mxu0
      %v5412 = vpop.f32.mrb[0].mxu0
      %v5413 = vadd.f32 0.0, %v5412
      %5414 = vmatprep.mubr.bf16.mxu0 %v5294
      %5415 = vmatmul.mubr.bf16.gmra.mrb[0].mxu0 %v5024
      %v5416 = vpop.f32.mrb[0].mxu0
      %v5417 = vpop.f32.mrb[0].mxu0
      %v5418 = vpop.f32.mrb[0].mxu0
      %v5419 = vpop.f32.mrb[0].mxu0
      %5420 = vdwg.mxu0
      %5421 = vmatprep.subr.bf16.mxu0 0
      %5422 = vmatpush1.bf16.msra.mxu0 %v5196
      %5423 = vmatprep.subr.bf16.mxu0 0
      %5424 = vmatpush1.bf16.msra.mxu0 %v5199
      %5425 = vmatprep.subr.bf16.mxu0 0
      %5426 = vmatpush1.bf16.msra.mxu0 %v5202
      %5427 = vmatprep.subr.bf16.mxu0 0
      %5428 = vmatpush1.bf16.msra.mxu0 %v5205
      %5429 = vmatprep.subr.bf16.mxu0 0
      %5430 = vmatpush1.bf16.msra.mxu0 %v5208
      %5431 = vmatprep.subr.bf16.mxu0 0
      %5432 = vmatpush1.bf16.msra.mxu0 %v5211
      %5433 = vmatprep.subr.bf16.mxu0 0
      %5434 = vmatpush1.bf16.msra.mxu0 %v5214
      %5435 = vmatprep.subr.bf16.mxu0 0
      %5436 = vmatpush1.bf16.msra.mxu0 %v5217
      %5437 = vmatprep.subr.bf16.mxu0 0
      %5438 = vmatpush1.bf16.msra.mxu0 %v5220
      %5439 = vmatprep.subr.bf16.mxu0 0
      %5440 = vmatpush1.bf16.msra.mxu0 %v5223
      %5441 = vmatprep.subr.bf16.mxu0 0
      %5442 = vmatpush1.bf16.msra.mxu0 %v5226
      %5443 = vmatprep.subr.bf16.mxu0 0
      %5444 = vmatpush1.bf16.msra.mxu0 %v5229
      %5445 = vmatprep.subr.bf16.mxu0 0
      %5446 = vmatpush1.bf16.msra.mxu0 0
      %5447 = vmatprep.subr.bf16.mxu0 0
      %5448 = vmatpush1.bf16.msra.mxu0 0
      %5449 = vmatprep.subr.bf16.mxu0 0
      %5450 = vmatpush1.bf16.msra.mxu0 0
      %5451 = vmatprep.subr.bf16.mxu0 0
      %5452 = vmatpush1.bf16.msra.mxu0 0
      %5453 = vmatprep.mubr.bf16.mxu0 %v5267
      %5454 = vmatmul.mubr.bf16.gmra.mrb[0].mxu0 %v4997
      %v5455 = vpop.f32.mrb[0].mxu0
      %v5456 = vpop.f32.mrb[0].mxu0
      %v5457 = vpop.f32.mrb[0].mxu0
      %v5458 = vpop.f32.mrb[0].mxu0
      %5459 = vmatprep.mubr.bf16.mxu0 %v5270
      %5460 = vmatmul.mubr.bf16.gmra.mrb[0].mxu0 %v5000
      %v5461 = vpop.f32.mrb[0].mxu0
      %v5462 = vpop.f32.mrb[0].mxu0
      %v5463 = vpop.f32.mrb[0].mxu0
      %v5464 = vpop.f32.mrb[0].mxu0
      %5465 = vmatprep.mubr.bf16.mxu0 %v5273
      %5466 = vmatmul.mubr.bf16.gmra.mrb[0].mxu0 %v5003
      %v5467 = vpop.f32.mrb[0].mxu0
      %v5468 = vadd.f32 0.0, %v5467
      %v5469 = vpop.f32.mrb[0].mxu0
      %v5470 = vpop.f32.mrb[0].mxu0
      %v5471 = vadd.f32 0.0, %v5470
      %v5472 = vpop.f32.mrb[0].mxu0
      %5473 = vmatprep.mubr.bf16.mxu0 %v5276
      %5474 = vmatmul.mubr.bf16.gmra.mrb[0].mxu0 %v5006
      %v5475 = vpop.f32.mrb[0].mxu0
      %v5476 = vadd.f32 0.0, %v5475
      %v5477 = vpop.f32.mrb[0].mxu0
      %v5478 = vpop.f32.mrb[0].mxu0
      %v5479 = vadd.f32 0.0, %v5478
      %v5480 = vpop.f32.mrb[0].mxu0
      %5481 = vmatprep.mubr.bf16.mxu0 %v5279
      %5482 = vmatmul.mubr.bf16.gmra.mrb[0].mxu0 %v5009
      %v5483 = vpop.f32.mrb[0].mxu0
      %v5484 = vadd.f32 0.0, %v5483
      %v5485 = vpop.f32.mrb[0].mxu0
      %v5486 = vpop.f32.mrb[0].mxu0
      %v5487 = vadd.f32 0.0, %v5486
      %v5488 = vpop.f32.mrb[0].mxu0
      %5489 = vmatprep.mubr.bf16.mxu0 %v5282
      %5490 = vmatmul.mubr.bf16.gmra.mrb[0].mxu0 %v5012
      %v5491 = vpop.f32.mrb[0].mxu0
      %v5492 = vadd.f32 0.0, %v5491
      %v5493 = vpop.f32.mrb[0].mxu0
      %v5494 = vpop.f32.mrb[0].mxu0
      %v5495 = vadd.f32 0.0, %v5494
      %v5496 = vpop.f32.mrb[0].mxu0
      %5497 = vmatprep.mubr.bf16.mxu0 %v5285
      %5498 = vmatmul.mubr.bf16.gmra.mrb[0].mxu0 %v5015
      %v5499 = vpop.f32.mrb[0].mxu0
      %v5500 = vadd.f32 0.0, %v5499
      %v5501 = vpop.f32.mrb[0].mxu0
      %v5502 = vpop.f32.mrb[0].mxu0
      %v5503 = vadd.f32 0.0, %v5502
      %v5504 = vpop.f32.mrb[0].mxu0
      %5505 = vmatprep.mubr.bf16.mxu0 %v5288
      %5506 = vmatmul.mubr.bf16.gmra.mrb[0].mxu0 %v5018
      %v5507 = vpop.f32.mrb[0].mxu0
      %v5508 = vadd.f32 0.0, %v5507
      %v5509 = vpop.f32.mrb[0].mxu0
      %v5510 = vpop.f32.mrb[0].mxu0
      %v5511 = vadd.f32 0.0, %v5510
      %v5512 = vpop.f32.mrb[0].mxu0
      %5513 = vmatprep.mubr.bf16.mxu0 %v5291
      %5514 = vmatmul.mubr.bf16.gmra.mrb[0].mxu0 %v5021
      %v5515 = vpop.f32.mrb[0].mxu0
      %v5516 = vadd.f32 0.0, %v5515
      %v5517 = vpop.f32.mrb[0].mxu0
      %v5518 = vpop.f32.mrb[0].mxu0
      %v5519 = vadd.f32 0.0, %v5518
      %v5520 = vpop.f32.mrb[0].mxu0
      %5521 = vmatprep.mubr.bf16.mxu0 %v5294
      %5522 = vmatmul.mubr.bf16.gmra.mrb[0].mxu0 %v5024
      %v5523 = vpop.f32.mrb[0].mxu0
      %v5524 = vadd.f32 0.0, %v5523
      %v5525 = vpop.f32.mrb[0].mxu0
      %v5526 = vpop.f32.mrb[0].mxu0
      %v5527 = vadd.f32 0.0, %v5526
      %v5528 = vpop.f32.mrb[0].mxu0
      %5529 = vdwg.mxu0
      %v5530 = vadd.f32 %v5331, %v5341
      %v5531 = vadd.f32 %v5334, %v5345
      %v5532 = vadd.f32 %v5339, %v5351
      %v5533 = vadd.f32 %v5343, %v5355
      %v5534 = vadd.f32 %v5349, %v5361
      %v5535 = vadd.f32 %v5353, %v5365
      %v5536 = vadd.f32 %v5359, %v5371
      %v5537 = vadd.f32 %v5363, %v5375
      %v5538 = vadd.f32 %v5369, %v5381
      %v5539 = vadd.f32 %v5373, %v5385
      %v5540 = vadd.f32 %v5379, %v5391
      %v5541 = vadd.f32 %v5383, %v5395
      %v5542 = vadd.f32 %v5389, %v5401
      %v5543 = vadd.f32 %v5393, %v5405
      %v5544 = vadd.f32 %v5399, %v5410
      %v5545 = vadd.f32 %v5403, %v5413
      %v5546 = vadd.f32 %v5530, %v5468
      %v5547 = vadd.f32 %v5531, %v5471
      %v5548 = vadd.f32 %v5532, %v5476
      %v5549 = vadd.f32 %v5533, %v5479
      %v5550 = vadd.f32 %v5534, %v5484
      %v5551 = vadd.f32 %v5535, %v5487
      %v5552 = vadd.f32 %v5536, %v5492
      %v5553 = vadd.f32 %v5537, %v5495
      %v5554 = vadd.f32 %v5538, %v5500
      %v5555 = vadd.f32 %v5539, %v5503
      %v5556 = vadd.f32 %v5540, %v5508
      %v5557 = vadd.f32 %v5541, %v5511
      %v5558 = vadd.f32 %v5542, %v5516
      %v5559 = vadd.f32 %v5543, %v5519
      %v5560 = vadd.f32 %v5544, %v5524
      %v5561 = vadd.f32 %v5545, %v5527
      %5562 = vxpose.xlu0.b32.start [1/16] %v5546, 128
      %5563 = vxpose.xlu0.b32.cont [2/16] %v5547, 128
      %5564 = vxpose.xlu0.b32.cont [3/16] %v5548, 128
      %5565 = vxpose.xlu0.b32.cont [4/16] %v5549, 128
      %5566 = vxpose.xlu0.b32.cont [5/16] %v5550, 128
      %5567 = vxpose.xlu0.b32.cont [6/16] %v5551, 128
      %5568 = vxpose.xlu0.b32.cont [7/16] %v5552, 128
      %5569 = vxpose.xlu0.b32.cont [8/16] %v5553, 128
      %5570 = vxpose.xlu0.b32.cont [9/16] %v5554, 128
      %5571 = vxpose.xlu0.b32.cont [10/16] %v5555, 128
      %5572 = vxpose.xlu0.b32.cont [11/16] %v5556, 128
      %5573 = vxpose.xlu0.b32.cont [12/16] %v5557, 128
      %5574 = vxpose.xlu0.b32.cont [13/16] %v5558, 128
      %5575 = vxpose.xlu0.b32.cont [14/16] %v5559, 128
      %5576 = vxpose.xlu0.b32.cont [15/16] %v5560, 128
      %5577 = vxpose.xlu0.b32.end [16/16] %v5561, 128
      %v5578 = vpop.trf.xlu0
      %v5579 = vpop.trf.xlu0
      %v5580 = vpop.trf.xlu0
      %v5581 = vpop.trf.xlu0
      %v5582 = vpop.trf.xlu0
      %v5583 = vpop.trf.xlu0
      %v5584 = vpop.trf.xlu0
      %v5585 = vpop.trf.xlu0
      %v5586 = vpop.trf.xlu0
      %v5587 = vpop.trf.xlu0
      %v5588 = vpop.trf.xlu0
      %v5589 = vpop.trf.xlu0
      %v5590 = vpop.trf.xlu0
      %v5591 = vpop.trf.xlu0
      %v5592 = vpop.trf.xlu0
      %v5593 = vpop.trf.xlu0
      %v5594 = vld [vmem:[#allocation5] sm:$0x1]
      %5596 = vset.pattern.permute.xlu0 0
      %5597 = vperm.xlu0 %5596, %v5594
      %v5598 = vpop.permute.xlu0 %5597
      %v5600 = vlaneseq
      %v5601 = vshrl.u32 %v5600, 7
      %v5602 = vsub.s32 0, %v5601
      %v5603 = vrot.slane %v5598, %v5602
      %v5604 = vadd.f32 %v5578, %v5603
      %5605 = vst [vmem:[%s366] sm:$0x1] %v5604
      %p5606 = scmp.lt.s32.totalorder %s26, 1
      %s5607 = scalar_select %p5606, %s26, 1
      %p5608 = scmp.lt.s32.totalorder %s27, 1
      %s5609 = scalar_select %p5608, %s27, 1
      %s5610 = smul.addr %s5607, 2
      %s5611 = sadd.s32 %s5609, %s5610
      %s5612 = scalar_lea.vmem %s9, %s5611
      // Predicated region
      $region81: #{_lambda_.1} parent=55 // pred_check
        %p5613 = pneg %p252
      $region82: #{_lambda_.1} parent=55 // pred_check_branch
        %5615 = sbr.rel (%p5613) target = $region84
      $region83: #{_lambda_.1} parent=55 // pred_region
        _
      $region84: #{_lambda_.1} parent=55 // pred_fallthru
        _
    $region56: #{_lambda_.1} parent=5 // pred_fallthru
      _
    %p5616 = scmp.le.s32.totalorder 2, %s17
    // Predicated region
    $region85: #{_lambda_.1} parent=5 // pred_check
      %p5617 = pneg %p5616
    $region86: #{_lambda_.1} parent=5 // pred_check_branch
      %5619 = sbr.rel (%p5617) target = $region88
    $region87: #{_lambda_.1} parent=5 // pred_region
      %s5620 = ssub.s32 %s17, 2
      // Predicated region
      $region89: #{_lambda_.1} parent=87 // pred_check
        %p5621 = pneg %p258
      $region90: #{_lambda_.1} parent=87 // pred_check_branch
        %5623 = sbr.rel (%p5621) target = $region92
      $region91: #{_lambda_.1} parent=87 // pred_region
        %p5624 = scmp.lt.s32.totalorder %s28, 1
        %s5625 = scalar_select %p5624, %s28, 1
        %p5626 = scmp.lt.s32.totalorder %s29, 1
        %s5627 = scalar_select %p5626, %s29, 1
        %s5628 = smul.addr %s5625, 2
        %s5629 = sadd.s32 %s5627, %s5628
        %s5630 = scalar_lea.vmem %s9, %s5629
      $region92: #{_lambda_.1} parent=87 // pred_fallthru
        _
    $region88: #{_lambda_.1} parent=5 // pred_fallthru
      _
  $region6: #{_lambda_.1} parent=0 // loop_footer
    %s21 = sadd.s32 1, %s17
  $region7: #{_lambda_.1} parent=0 // loop_footer_branch
    %16 = sbr.rel target = $region3
  $region8: #{_lambda_.1} parent=0 // loop_exit
    _

</llo_original>
